<compile_context>
chip_gen: v6e
topology: v6e:2x2x1
jax: 0.10.0
libtpu: 0.0.40
codegen_flags: <defaults>
</compile_context>

<pallas_src>
import jax
import jax.numpy as jnp
from jax.experimental import pallas as pl
from jax.experimental.pallas import tpu as pltpu

IN_DIM = 512
HID_DIM = 4096
OUT_DIM = 512
TILE_H = 2048                 # hidden-dim slice per reduction step
KT = HID_DIM // TILE_H        # = 2 reduction steps
NEG_SLOPE = 0.2               # LeakyReLU negative slope


def generator_kernel(x_ref, w1_ref, s1_ref, b1_ref, w2_ref, s2_ref, b2_ref, out_ref):
    k = pl.program_id(0)

    # Dequantize this step's int8 weight tiles to bf16 (VPU work; MXU stays bf16).
    w1 = w1_ref[0].astype(jnp.float32).astype(jnp.bfloat16)      # (IN_DIM, TILE_H)
    w2 = w2_ref[...].astype(jnp.float32).astype(jnp.bfloat16)    # (TILE_H, OUT_DIM)

    # Hidden slice: leaky_relu((x @ W1_tile) * s1_tile + b1_tile, 0.2), f32 accumulate.
    # Per-column scale applied after the matmul is exact: x @ (Q * diag(s)) == (x @ Q) * s.
    h = jnp.dot(x_ref[...], w1, preferred_element_type=jnp.float32)
    h = h * s1_ref[...] + b1_ref[...]
    h = jnp.where(h > 0, h, NEG_SLOPE * h)

    # This hidden slice's contribution to the output head (unscaled int8 W2).
    part = jnp.dot(h.astype(jnp.bfloat16), w2, preferred_element_type=jnp.float32)

    @pl.when(k == 0)
    def _():
        out_ref[...] = part

    @pl.when(k > 0)
    def _():
        out_ref[...] += part

    # Epilogue on the last reduction step: per-output-channel W2 scale + output bias.
    @pl.when(k == pl.num_programs(0) - 1)
    def _():
        out_ref[...] = out_ref[...] * s2_ref[...] + b2_ref[...]


@jax.jit
def generator_forward(x, w1_q, s1, b1, w2_q, s2, b2):
    """x: (B, 512); w1_q: (KT, 512, TILE_H) int8; s1,b1: (1, 4096) f32;
    w2_q: (4096, 512) int8; s2,b2: (1, 512) f32."""
    B = x.shape[0]
    B_pad = max(8, -(-B // 8) * 8)  # pad batch to a sublane multiple (>= 8 rows)
    x_p = jnp.zeros((B_pad, IN_DIM), jnp.bfloat16).at[:B].set(x.astype(jnp.bfloat16))

    grid_spec = pltpu.PrefetchScalarGridSpec(
        num_scalar_prefetch=0,
        grid=(KT,),
        in_specs=[
            pl.BlockSpec((B_pad, IN_DIM), lambda k: (0, 0)),           # x (resident)
            pl.BlockSpec((1, IN_DIM, TILE_H), lambda k: (k, 0, 0)),    # W1 tile (contiguous)
            pl.BlockSpec((1, TILE_H), lambda k: (0, k)),               # s1 tile
            pl.BlockSpec((1, TILE_H), lambda k: (0, k)),               # b1 tile
            pl.BlockSpec((TILE_H, OUT_DIM), lambda k: (k, 0)),         # W2 tile (contiguous)
            pl.BlockSpec((1, OUT_DIM), lambda k: (0, 0)),              # s2 (resident)
            pl.BlockSpec((1, OUT_DIM), lambda k: (0, 0)),              # b2 (resident)
        ],
        # Output block index constant across the reduction axis -> resident f32 accumulator.
        out_specs=pl.BlockSpec((B_pad, OUT_DIM), lambda k: (0, 0)),
    )

    out = pl.pallas_call(
        generator_kernel,
        out_shape=jax.ShapeDtypeStruct((B_pad, OUT_DIM), jnp.float32),
        grid_spec=grid_spec,
        compiler_params=pltpu.CompilerParams(
            dimension_semantics=("arbitrary",),
        ),
    )(x_p, w1_q, s1, b1, w2_q, s2, b2)

    return out[:B]


def init_params(key):
    """weights_init: weight ~ N(0, 0.02), bias = 0. Weights stored (in, out), f32."""
    k1, k2 = jax.random.split(key)
    w1 = (0.02 * jax.random.normal(k1, (IN_DIM, HID_DIM))).astype(jnp.float32)
    b1 = jnp.zeros((1, HID_DIM), jnp.float32)
    w2 = (0.02 * jax.random.normal(k2, (HID_DIM, OUT_DIM))).astype(jnp.float32)
    b2 = jnp.zeros((1, OUT_DIM), jnp.float32)
    return w1, b1, w2, b2


def _quantize_int8_per_col(w):
    """Symmetric int8 quantization with one scale per output channel (last axis)."""
    amax = jnp.max(jnp.abs(w), axis=0, keepdims=True)
    scale = jnp.maximum(amax, 1e-8) / 127.0
    q = jnp.clip(jnp.round(w / scale), -127, 127).astype(jnp.int8)
    return q, scale.astype(jnp.float32)


def prepare_params(w1, b1, w2, b2):
    """One-time (load-time) weight quantization + layout prep."""
    w1_q, s1 = _quantize_int8_per_col(w1)   # (IN_DIM, HID_DIM) i8, (1, HID_DIM) f32
    w2_q, s2 = _quantize_int8_per_col(w2)   # (HID_DIM, OUT_DIM) i8, (1, OUT_DIM) f32
    # Pre-tile W1 so each (IN_DIM, TILE_H) weight fetch is one contiguous DMA.
    w1_q = jnp.transpose(w1_q.reshape(IN_DIM, KT, TILE_H), (1, 0, 2))
    return w1_q, s1, b1, w2_q, s2, b2


def generator_ref(x, w1, b1, w2, b2):
    h = x @ w1 + b1
    h = jnp.where(h > 0, h, NEG_SLOPE * h)
    return h @ w2 + b2


if __name__ == "__main__":
    key = jax.random.PRNGKey(0)
    kp, kx = jax.random.split(key)

    B = 2
    x = jax.random.normal(kx, (B, IN_DIM), dtype=jnp.float32)

    w1, b1, w2, b2 = init_params(kp)
    params_q = prepare_params(w1, b1, w2, b2)

    out = generator_forward(x, *params_q)
    jax.block_until_ready(out)

    # Correctness check vs. the pure-JAX f32 reference (tolerance covers bf16
    # activations + int8 per-channel weight quantization).
    ref = generator_ref(x, w1, b1, w2, b2)
    assert out.shape == (B, OUT_DIM)
    assert jnp.allclose(out, ref, atol=5e-2, rtol=5e-2), \
        float(jnp.max(jnp.abs(out - ref)))

    print("KERNEL_OK")
</pallas_src>

<mosaic_0001>
module attributes {stable_mosaic.version = 11 : i64} {
  func.func @generator_kernel(%arg0: i32, %arg1: memref<8x512xbf16, #tpu.memory_space<vmem>>, %arg2: memref<1x512x2048xi8, #tpu.memory_space<vmem>>, %arg3: memref<1x2048xf32, #tpu.memory_space<vmem>>, %arg4: memref<1x2048xf32, #tpu.memory_space<vmem>>, %arg5: memref<2048x512xi8, #tpu.memory_space<vmem>>, %arg6: memref<1x512xf32, #tpu.memory_space<vmem>>, %arg7: memref<1x512xf32, #tpu.memory_space<vmem>>, %arg8: memref<8x512xf32, #tpu.memory_space<vmem>>) attributes {dimension_semantics = [#tpu.dimension_semantics<arbitrary>], iteration_bounds = array<i64: 2>, scalar_prefetch = 0 : i64, scratch_operands = 0 : i64, tpu.core_type = #tpu.core_type<tc>, window_params = [{pipeline_mode = #tpu.pipeline_mode<synchronous>, transform_indices = @transform_0, window_bounds = array<i64: 8, 512>}, {transform_indices = @transform_1, window_bounds = array<i64: 1, 512, 2048>}, {transform_indices = @transform_2, window_bounds = array<i64: 1, 2048>}, {transform_indices = @transform_3, window_bounds = array<i64: 1, 2048>}, {transform_indices = @transform_4, window_bounds = array<i64: 2048, 512>}, {pipeline_mode = #tpu.pipeline_mode<synchronous>, transform_indices = @transform_5, window_bounds = array<i64: 1, 512>}, {pipeline_mode = #tpu.pipeline_mode<synchronous>, transform_indices = @transform_6, window_bounds = array<i64: 1, 512>}, {pipeline_mode = #tpu.pipeline_mode<synchronous>, transform_indices = @transform_7, window_bounds = array<i64: 8, 512>}]} {
    %c0 = arith.constant 0 : index
    %c0_0 = arith.constant 0 : index
    %c0_1 = arith.constant 0 : index
    %0 = vector.load %arg2[%c0, %c0_0, %c0_1] : memref<1x512x2048xi8, #tpu.memory_space<vmem>>, vector<1x512x2048xi8>
    %1 = vector.shape_cast %0 : vector<1x512x2048xi8> to vector<512x2048xi8>
    %2 = arith.sitofp %1 : vector<512x2048xi8> to vector<512x2048xf32>
    %3 = arith.truncf %2 : vector<512x2048xf32> to vector<512x2048xbf16>
    %c0_2 = arith.constant 0 : index
    %c0_3 = arith.constant 0 : index
    %4 = vector.load %arg5[%c0_2, %c0_3] : memref<2048x512xi8, #tpu.memory_space<vmem>>, vector<2048x512xi8>
    %5 = arith.sitofp %4 : vector<2048x512xi8> to vector<2048x512xf32>
    %6 = arith.truncf %5 : vector<2048x512xf32> to vector<2048x512xbf16>
    %c0_4 = arith.constant 0 : index
    %c0_5 = arith.constant 0 : index
    %7 = vector.load %arg1[%c0_4, %c0_5] : memref<8x512xbf16, #tpu.memory_space<vmem>>, vector<8x512xbf16>
    %cst = arith.constant dense<0.000000e+00> : vector<8x2048xf32>
    %8 = tpu.matmul %7, %3, %cst {dimension_numbers = #tpu.dot_dimension_numbers<[1], [0], [0], [1], [0, 0, 1, 1], [], []>} : vector<8x512xbf16>, vector<512x2048xbf16>, vector<8x2048xf32> -> vector<8x2048xf32>
    %c0_6 = arith.constant 0 : index
    %c0_7 = arith.constant 0 : index
    %9 = vector.load %arg3[%c0_6, %c0_7] : memref<1x2048xf32, #tpu.memory_space<vmem>>, vector<1x2048xf32>
    %10 = vector.broadcast %9 : vector<1x2048xf32> to vector<8x2048xf32>
    %11 = arith.mulf %8, %10 : vector<8x2048xf32>
    %c0_8 = arith.constant 0 : index
    %c0_9 = arith.constant 0 : index
    %12 = vector.load %arg4[%c0_8, %c0_9] : memref<1x2048xf32, #tpu.memory_space<vmem>>, vector<1x2048xf32>
    %13 = vector.broadcast %12 : vector<1x2048xf32> to vector<8x2048xf32>
    %14 = arith.addf %11, %13 : vector<8x2048xf32>
    %cst_10 = arith.constant 0.000000e+00 : f32
    %15 = vector.broadcast %cst_10 : f32 to vector<8x2048xf32>
    %16 = arith.cmpf ogt, %14, %15 : vector<8x2048xf32>
    %cst_11 = arith.constant 2.000000e-01 : f32
    %17 = vector.broadcast %cst_11 : f32 to vector<8x2048xf32>
    %18 = arith.mulf %17, %14 : vector<8x2048xf32>
    %19 = arith.select %16, %14, %18 : vector<8x2048xi1>, vector<8x2048xf32>
    %20 = arith.truncf %19 : vector<8x2048xf32> to vector<8x2048xbf16>
    %cst_12 = arith.constant dense<0.000000e+00> : vector<8x512xf32>
    %21 = tpu.matmul %20, %6, %cst_12 {dimension_numbers = #tpu.dot_dimension_numbers<[1], [0], [0], [1], [0, 0, 1, 1], [], []>} : vector<8x2048xbf16>, vector<2048x512xbf16>, vector<8x512xf32> -> vector<8x512xf32>
    %c0_i32 = arith.constant 0 : i32
    %22 = arith.cmpi eq, %arg0, %c0_i32 : i32
    %23 = arith.extui %22 : i1 to i32
    %c0_i32_13 = arith.constant 0 : i32
    %24 = arith.cmpi ne, %23, %c0_i32_13 : i32
    scf.if %24 {
      %c0_17 = arith.constant 0 : index
      %c0_18 = arith.constant 0 : index
      %31 = vector.load %arg8[%c0_17, %c0_18] : memref<8x512xf32, #tpu.memory_space<vmem>>, vector<8x512xf32>
      tpu.vector_store %arg8[%c0_17, %c0_18], %21 {strides = array<i32>} : memref<8x512xf32, #tpu.memory_space<vmem>>, vector<8x512xf32>,
    } else {
    }
    %c0_i32_14 = arith.constant 0 : i32
    %25 = arith.cmpi sgt, %arg0, %c0_i32_14 : i32
    %26 = arith.extui %25 : i1 to i32
    %c0_i32_15 = arith.constant 0 : i32
    %27 = arith.cmpi ne, %26, %c0_i32_15 : i32
    scf.if %27 {
      %c0_17 = arith.constant 0 : index
      %c0_18 = arith.constant 0 : index
      %31 = vector.load %arg8[%c0_17, %c0_18] : memref<8x512xf32, #tpu.memory_space<vmem>>, vector<8x512xf32>
      %32 = arith.addf %31, %21 : vector<8x512xf32>
      %c0_19 = arith.constant 0 : index
      %c0_20 = arith.constant 0 : index
      %33 = vector.load %arg8[%c0_19, %c0_20] : memref<8x512xf32, #tpu.memory_space<vmem>>, vector<8x512xf32>
      tpu.vector_store %arg8[%c0_19, %c0_20], %32 {strides = array<i32>} : memref<8x512xf32, #tpu.memory_space<vmem>>, vector<8x512xf32>,
    } else {
    }
    %c1_i32 = arith.constant 1 : i32
    %28 = arith.cmpi eq, %arg0, %c1_i32 : i32
    %29 = arith.extui %28 : i1 to i32
    %c0_i32_16 = arith.constant 0 : i32
    %30 = arith.cmpi ne, %29, %c0_i32_16 : i32
    scf.if %30 {
      %c0_17 = arith.constant 0 : index
      %c0_18 = arith.constant 0 : index
      %31 = vector.load %arg8[%c0_17, %c0_18] : memref<8x512xf32, #tpu.memory_space<vmem>>, vector<8x512xf32>
      %c0_19 = arith.constant 0 : index
      %c0_20 = arith.constant 0 : index
      %32 = vector.load %arg6[%c0_19, %c0_20] : memref<1x512xf32, #tpu.memory_space<vmem>>, vector<1x512xf32>
      %33 = vector.broadcast %32 : vector<1x512xf32> to vector<8x512xf32>
      %34 = arith.mulf %31, %33 : vector<8x512xf32>
      %c0_21 = arith.constant 0 : index
      %c0_22 = arith.constant 0 : index
      %35 = vector.load %arg7[%c0_21, %c0_22] : memref<1x512xf32, #tpu.memory_space<vmem>>, vector<1x512xf32>
      %36 = vector.broadcast %35 : vector<1x512xf32> to vector<8x512xf32>
      %37 = arith.addf %34, %36 : vector<8x512xf32>
      %c0_23 = arith.constant 0 : index
      %c0_24 = arith.constant 0 : index
      %38 = vector.load %arg8[%c0_23, %c0_24] : memref<8x512xf32, #tpu.memory_space<vmem>>, vector<8x512xf32>
      tpu.vector_store %arg8[%c0_23, %c0_24], %37 {strides = array<i32>} : memref<8x512xf32, #tpu.memory_space<vmem>>, vector<8x512xf32>,
    } else {
    }
    return
  }
  func.func @transform_0(%arg0: i32) -> (i32, i32) {
    %c0_i32 = arith.constant 0 : i32
    %c0_i32_0 = arith.constant 0 : i32
    %c0_i32_1 = arith.constant 0 : i32
    return %c0_i32, %c0_i32_0 : i32, i32
  }
  func.func @transform_1(%arg0: i32) -> (i32, i32, i32) {
    %c0_i32 = arith.constant 0 : i32
    %c0_i32_0 = arith.constant 0 : i32
    %c0_i32_1 = arith.constant 0 : i32
    return %arg0, %c0_i32, %c0_i32_0 : i32, i32, i32
  }
  func.func @transform_2(%arg0: i32) -> (i32, i32) {
    %c0_i32 = arith.constant 0 : i32
    %c0_i32_0 = arith.constant 0 : i32
    return %c0_i32, %arg0 : i32, i32
  }
  func.func @transform_3(%arg0: i32) -> (i32, i32) {
    %c0_i32 = arith.constant 0 : i32
    %c0_i32_0 = arith.constant 0 : i32
    return %c0_i32, %arg0 : i32, i32
  }
  func.func @transform_4(%arg0: i32) -> (i32, i32) {
    %c0_i32 = arith.constant 0 : i32
    %c0_i32_0 = arith.constant 0 : i32
    return %arg0, %c0_i32 : i32, i32
  }
  func.func @transform_5(%arg0: i32) -> (i32, i32) {
    %c0_i32 = arith.constant 0 : i32
    %c0_i32_0 = arith.constant 0 : i32
    %c0_i32_1 = arith.constant 0 : i32
    return %c0_i32, %c0_i32_0 : i32, i32
  }
  func.func @transform_6(%arg0: i32) -> (i32, i32) {
    %c0_i32 = arith.constant 0 : i32
    %c0_i32_0 = arith.constant 0 : i32
    %c0_i32_1 = arith.constant 0 : i32
    return %c0_i32, %c0_i32_0 : i32, i32
  }
  func.func @transform_7(%arg0: i32) -> (i32, i32) {
    %c0_i32 = arith.constant 0 : i32
    %c0_i32_0 = arith.constant 0 : i32
    %c0_i32_1 = arith.constant 0 : i32
    return %c0_i32, %c0_i32_0 : i32, i32
  }
}

</mosaic_0001>

<llo_original>
// kernel: generator_forward.1
$region0: #{generator_forward.1}
  #allocation0 [shape = 'u32[]', space=smem, size = 0x4, offset = 0x4, fixed_abs, tag = 'smem constant byte address 0x4 - core index']
  #allocation1 [shape = 'u32[144,128]{1,0:T(1,128)}', space=vmem, size = 0x12000, scoped, tag = 'internal scratch']
  %s0 = inlined_call_operand.vmem [shape: bf16[8,512], index: 0, kind: input, shape index: {}]
  %s1 = inlined_call_operand.hbm [shape: s8[2,512,2048], index: 1, kind: input, shape index: {}]
  %s2 = inlined_call_operand.hbm [shape: f32[1,4096], index: 2, kind: input, shape index: {}]
  %s3 = inlined_call_operand.hbm [shape: f32[1,4096], index: 3, kind: input, shape index: {}]
  %s4 = inlined_call_operand.hbm [shape: s8[4096,512], index: 4, kind: input, shape index: {}]
  %s5 = inlined_call_operand.hbm [shape: f32[1,512], index: 5, kind: input, shape index: {}]
  %s6 = inlined_call_operand.hbm [shape: f32[1,512], index: 6, kind: input, shape index: {}]
  %s7 = inlined_call_operand.vmem [shape: f32[8,512], index: 7, kind: output, shape index: {}]
  %s8 = sld [smem:[#allocation0]]
  $region97: #{generator_forward.1} parent=0
    _
  %s10 = ssub.s32 1, %s8
  %s11 = scalar_select 0, %s10, %s8
  $region1: #{generator_forward.1} parent=0
    #allocation2 [shape = 'u8[2097152]{0}', space=vmem, size = 0x200000, scoped, tag = 'input window, operand 1']
    #allocation3 [shape = 's32[2]{0}', space=sflag, size = 0x8, scoped, tag = 'scoped memory for generator_forward.1']
    #allocation4 [shape = 'u8[16384]{0}', space=vmem, size = 0x4000, scoped, tag = 'input window, operand 2']
    #allocation5 [shape = 's32[2]{0}', space=sflag, size = 0x8, scoped, tag = 'scoped memory for generator_forward.1']
    #allocation6 [shape = 'u8[16384]{0}', space=vmem, size = 0x4000, scoped, tag = 'input window, operand 3']
    #allocation7 [shape = 'u8[2097152]{0}', space=vmem, size = 0x200000, scoped, tag = 'input window, operand 4']
    #allocation8 [shape = 's32[2]{0}', space=sflag, size = 0x8, scoped, tag = 'scoped memory for generator_forward.1']
    #allocation9 [shape = 'u8[2048]{0}', space=vmem, size = 0x800, scoped, tag = 'input window, operand 5, single buffered']
    #allocation10 [shape = 'u8[2048]{0}', space=vmem, size = 0x800, scoped, tag = 'input window, operand 6, single buffered']
    #allocation11 [shape = 's32[1]{0}', space=sflag, size = 0x4, scoped, tag = 'scoped memory for generator_forward.1']
    %12 = vsyncpa [#allocation3], 0
    %s13 = scalar_lea.sflag [#allocation3], 1
    %14 = vsyncpa %s13, 0
    %15 = vsyncpa [#allocation5], 0
    %s16 = scalar_lea.sflag [#allocation5], 1
    %17 = vsyncpa %s16, 0
    %18 = vsyncpa [#allocation8], 0
    %s19 = scalar_lea.sflag [#allocation8], 1
    %20 = vsyncpa %s19, 0
    %21 = vsyncpa [#allocation11], 0
    loop: start=0, step=1, limit=4
    $region2: #{generator_forward.1} parent=1 // loop_pre_header
      _
    $region3: #{generator_forward.1} parent=1 // loop_header
      %s23 = sphi 0, %s27
      %p24 = scmp.ge.s32.totalorder %s23, 4
      %s31 = sphi 0, %s31
      %s33 = sphi 0, %s31
      %s34 = sphi 0, %s33
      %s48 = sphi 0, %s34
      %s54 = sphi 0, %s56
      %s57 = sphi 0, %s54
      %s58 = sphi 0, %s57
      %s74 = sphi 0, %s58
      %s80 = sphi 0, %s82
      %s83 = sphi 0, %s80
      %s84 = sphi 0, %s83
      %s100 = sphi 0, %s84
      %s106 = sphi 0, %s108
      %s109 = sphi 0, %s106
      %s110 = sphi 0, %s109
      %s126 = sphi 0, %s110
      %s132 = sphi 0, %s134
      %s135 = sphi 0, %s132
      %s136 = sphi 0, %s135
      %s152 = sphi 0, %s136
      %s156 = sphi 0, %s156
      %s158 = sphi 0, %s156
      %s159 = sphi 0, %s158
      %s173 = sphi 0, %s159
      %s177 = sphi 0, %s177
      %s179 = sphi 0, %s177
      %s180 = sphi 0, %s179
      %s194 = sphi 0, %s180
      %s198 = sphi 0, %s198
      %s200 = sphi 0, %s198
      %s201 = sphi 0, %s200
      %s215 = sphi 0, %s201
    $region4: #{generator_forward.1} parent=1 // loop_header_branch
      %26 = sbr.rel (%p24) target = $region8
    $region5: #{generator_forward.1} parent=1 // loop_body
      %s28 = ssub.s32 %s23, 1
      %s29 = ssub.s32 %s23, 2
      %s30 = sadd.s32 %s23, 1
      %s32 = sadd.s32 %s31, 1
      %p35 = scmp.eq.s32.totalorder %s23, 1
      %p36 = scmp.ne.s32.totalorder %s31, %s33
      %p37 = scmp.eq.s32.totalorder %s23, 0
      %p38 = por %p36, %p37
      %p39 = scmp.ne.s32.totalorder %s31, %s33
      %p40 = scmp.eq.s32.totalorder %s28, 1
      %p41 = por %p39, %p40
      %p42 = scmp.ne.s32.totalorder %s33, %s34
      %p43 = scmp.eq.s32.totalorder %s28, 0
      %p44 = por %p42, %p43
      %p45 = scmp.ne.s32.totalorder %s33, %s34
      %p46 = scmp.eq.s32.totalorder %s29, 1
      %p47 = por %p45, %p46
      %p49 = scmp.ne.s32.totalorder %s34, %s48
      %p50 = scmp.eq.s32.totalorder %s29, 0
      %p51 = por %p49, %p50
      %s52 = ssub.s32 %s23, %s30
      %p53 = scmp.eq.s32.totalorder %s52, 0
      %s55 = sadd.s32 %s54, 1
      %s56 = scalar_select %p53, %s54, %s55
      %p59 = pneg %p53
      %p60 = scmp.eq.s32.totalorder %s23, 1
      %p61 = por %p59, %p60
      %p62 = scmp.ne.s32.totalorder %s54, %s57
      %p63 = scmp.eq.s32.totalorder %s23, 0
      %p64 = por %p62, %p63
      %p65 = scmp.ne.s32.totalorder %s54, %s57
      %p66 = scmp.eq.s32.totalorder %s28, 1
      %p67 = por %p65, %p66
      %p68 = scmp.ne.s32.totalorder %s57, %s58
      %p69 = scmp.eq.s32.totalorder %s28, 0
      %p70 = por %p68, %p69
      %p71 = scmp.ne.s32.totalorder %s57, %s58
      %p72 = scmp.eq.s32.totalorder %s29, 1
      %p73 = por %p71, %p72
      %p75 = scmp.ne.s32.totalorder %s58, %s74
      %p76 = scmp.eq.s32.totalorder %s29, 0
      %p77 = por %p75, %p76
      %s78 = ssub.s32 %s23, %s30
      %p79 = scmp.eq.s32.totalorder %s78, 0
      %s81 = sadd.s32 %s80, 1
      %s82 = scalar_select %p79, %s80, %s81
      %p85 = pneg %p79
      %p86 = scmp.eq.s32.totalorder %s23, 1
      %p87 = por %p85, %p86
      %p88 = scmp.ne.s32.totalorder %s80, %s83
      %p89 = scmp.eq.s32.totalorder %s23, 0
      %p90 = por %p88, %p89
      %p91 = scmp.ne.s32.totalorder %s80, %s83
      %p92 = scmp.eq.s32.totalorder %s28, 1
      %p93 = por %p91, %p92
      %p94 = scmp.ne.s32.totalorder %s83, %s84
      %p95 = scmp.eq.s32.totalorder %s28, 0
      %p96 = por %p94, %p95
      %p97 = scmp.ne.s32.totalorder %s83, %s84
      %p98 = scmp.eq.s32.totalorder %s29, 1
      %p99 = por %p97, %p98
      %p101 = scmp.ne.s32.totalorder %s84, %s100
      %p102 = scmp.eq.s32.totalorder %s29, 0
      %p103 = por %p101, %p102
      %s104 = ssub.s32 %s23, %s30
      %p105 = scmp.eq.s32.totalorder %s104, 0
      %s107 = sadd.s32 %s106, 1
      %s108 = scalar_select %p105, %s106, %s107
      %p111 = pneg %p105
      %p112 = scmp.eq.s32.totalorder %s23, 1
      %p113 = por %p111, %p112
      %p114 = scmp.ne.s32.totalorder %s106, %s109
      %p115 = scmp.eq.s32.totalorder %s23, 0
      %p116 = por %p114, %p115
      %p117 = scmp.ne.s32.totalorder %s106, %s109
      %p118 = scmp.eq.s32.totalorder %s28, 1
      %p119 = por %p117, %p118
      %p120 = scmp.ne.s32.totalorder %s109, %s110
      %p121 = scmp.eq.s32.totalorder %s28, 0
      %p122 = por %p120, %p121
      %p123 = scmp.ne.s32.totalorder %s109, %s110
      %p124 = scmp.eq.s32.totalorder %s29, 1
      %p125 = por %p123, %p124
      %p127 = scmp.ne.s32.totalorder %s110, %s126
      %p128 = scmp.eq.s32.totalorder %s29, 0
      %p129 = por %p127, %p128
      %s130 = ssub.s32 %s23, %s30
      %p131 = scmp.eq.s32.totalorder %s130, 0
      %s133 = sadd.s32 %s132, 1
      %s134 = scalar_select %p131, %s132, %s133
      %p137 = pneg %p131
      %p138 = scmp.eq.s32.totalorder %s23, 1
      %p139 = por %p137, %p138
      %p140 = scmp.ne.s32.totalorder %s132, %s135
      %p141 = scmp.eq.s32.totalorder %s23, 0
      %p142 = por %p140, %p141
      %p143 = scmp.ne.s32.totalorder %s132, %s135
      %p144 = scmp.eq.s32.totalorder %s28, 1
      %p145 = por %p143, %p144
      %p146 = scmp.ne.s32.totalorder %s135, %s136
      %p147 = scmp.eq.s32.totalorder %s28, 0
      %p148 = por %p146, %p147
      %p149 = scmp.ne.s32.totalorder %s135, %s136
      %p150 = scmp.eq.s32.totalorder %s29, 1
      %p151 = por %p149, %p150
      %p153 = scmp.ne.s32.totalorder %s136, %s152
      %p154 = scmp.eq.s32.totalorder %s29, 0
      %p155 = por %p153, %p154
      %s157 = sadd.s32 %s156, 1
      %p160 = scmp.eq.s32.totalorder %s23, 1
      %p161 = scmp.ne.s32.totalorder %s156, %s158
      %p162 = scmp.eq.s32.totalorder %s23, 0
      %p163 = por %p161, %p162
      %p164 = scmp.ne.s32.totalorder %s156, %s158
      %p165 = scmp.eq.s32.totalorder %s28, 1
      %p166 = por %p164, %p165
      %p167 = scmp.ne.s32.totalorder %s158, %s159
      %p168 = scmp.eq.s32.totalorder %s28, 0
      %p169 = por %p167, %p168
      %p170 = scmp.ne.s32.totalorder %s158, %s159
      %p171 = scmp.eq.s32.totalorder %s29, 1
      %p172 = por %p170, %p171
      %p174 = scmp.ne.s32.totalorder %s159, %s173
      %p175 = scmp.eq.s32.totalorder %s29, 0
      %p176 = por %p174, %p175
      %s178 = sadd.s32 %s177, 1
      %p181 = scmp.eq.s32.totalorder %s23, 1
      %p182 = scmp.ne.s32.totalorder %s177, %s179
      %p183 = scmp.eq.s32.totalorder %s23, 0
      %p184 = por %p182, %p183
      %p185 = scmp.ne.s32.totalorder %s177, %s179
      %p186 = scmp.eq.s32.totalorder %s28, 1
      %p187 = por %p185, %p186
      %p188 = scmp.ne.s32.totalorder %s179, %s180
      %p189 = scmp.eq.s32.totalorder %s28, 0
      %p190 = por %p188, %p189
      %p191 = scmp.ne.s32.totalorder %s179, %s180
      %p192 = scmp.eq.s32.totalorder %s29, 1
      %p193 = por %p191, %p192
      %p195 = scmp.ne.s32.totalorder %s180, %s194
      %p196 = scmp.eq.s32.totalorder %s29, 0
      %p197 = por %p195, %p196
      %s199 = sadd.s32 %s198, 1
      %p202 = scmp.eq.s32.totalorder %s23, 1
      %p203 = scmp.ne.s32.totalorder %s198, %s200
      %p204 = scmp.eq.s32.totalorder %s23, 0
      %p205 = por %p203, %p204
      %p206 = scmp.ne.s32.totalorder %s198, %s200
      %p207 = scmp.eq.s32.totalorder %s28, 1
      %p208 = por %p206, %p207
      %p209 = scmp.ne.s32.totalorder %s200, %s201
      %p210 = scmp.eq.s32.totalorder %s28, 0
      %p211 = por %p209, %p210
      %p212 = scmp.ne.s32.totalorder %s200, %s201
      %p213 = scmp.eq.s32.totalorder %s29, 1
      %p214 = por %p212, %p213
      %p216 = scmp.ne.s32.totalorder %s201, %s215
      %p217 = scmp.eq.s32.totalorder %s29, 0
      %p218 = por %p216, %p217
      %p219 = scmp.le.s32.totalorder 1, %s23
      %p220 = scmp.lt.s32.totalorder %s23, 3
      %p221 = pnand %p219, %p220
      %p222 = pneg %p221
      // Predicated region
      $region9: #{generator_forward.1} parent=5 // pred_check
        _
      $region10: #{generator_forward.1} parent=5 // pred_check_branch
        %224 = sbr.rel (%p221) target = $region12
      $region11: #{generator_forward.1} parent=5 // pred_region
        %s225 = ssub.s32 %s23, 1
        // Predicated region
        $region13: #{generator_forward.1} parent=11 // pred_check
          %p226 = pneg %p44
        $region14: #{generator_forward.1} parent=11 // pred_check_branch
          %228 = sbr.rel (%p226) target = $region16
        $region15: #{generator_forward.1} parent=11 // pred_region
          _
        $region16: #{generator_forward.1} parent=11 // pred_fallthru
          _
        // Predicated region
        $region17: #{generator_forward.1} parent=11 // pred_check
          %p229 = pneg %p169
        $region18: #{generator_forward.1} parent=11 // pred_check_branch
          %231 = sbr.rel (%p229) target = $region20
        $region19: #{generator_forward.1} parent=11 // pred_region
          %s233 = ssub.s32 64, 64
          %234 = vsyncadd [#allocation8], %s233
          %s236 = sshll.u32 [#allocation9], 4
          %s237 = int_to_ptr.vmem [resolvable:$true] %s236
          %239 = dma.hbm_to_vmem [thread:$0]  %s5, 64, %s237, [#allocation8]
        $region20: #{generator_forward.1} parent=11 // pred_fallthru
          _
        // Predicated region
        $region21: #{generator_forward.1} parent=11 // pred_check
          %p240 = pneg %p190
        $region22: #{generator_forward.1} parent=11 // pred_check_branch
          %242 = sbr.rel (%p240) target = $region24
        $region23: #{generator_forward.1} parent=11 // pred_region
          %s244 = ssub.s32 64, 64
          %245 = vsyncadd [#allocation11], %s244
          %s247 = sshll.u32 [#allocation10], 4
          %s248 = int_to_ptr.vmem [resolvable:$true] %s247
          %250 = dma.hbm_to_vmem [thread:$0]  %s6, 64, %s248, [#allocation11]
        $region24: #{generator_forward.1} parent=11 // pred_fallthru
          _
      $region12: #{generator_forward.1} parent=5 // pred_fallthru
        _
      %p251 = scmp.lt.s32.totalorder %s23, 2
      // Predicated region
      $region25: #{generator_forward.1} parent=5 // pred_check
        %p252 = pneg %p251
      $region26: #{generator_forward.1} parent=5 // pred_check_branch
        %254 = sbr.rel (%p252) target = $region28
      $region27: #{generator_forward.1} parent=5 // pred_region
        // Predicated region
        $region29: #{generator_forward.1} parent=27 // pred_check
          %p255 = pneg %p64
        $region30: #{generator_forward.1} parent=27 // pred_check_branch
          %257 = sbr.rel (%p255) target = $region32
        $region31: #{generator_forward.1} parent=27 // pred_region
          %s258 = sand.u32 %s54, 1
          %s259 = scalar_lea.sflag [#allocation3], %s258
          %s260 = sand.u32 %s54, 1
          %s261 = smul.addr %s260, 2048
          %s262 = scalar_lea.vmem [#allocation2], %s261
          %s264 = ssub.s32 32768, 32768
          %265 = vsyncadd %s259, %s264
          %s266 = smul.addr %s23, 256
          %s267 = smul.addr %s266, 128
          %s268 = scalar_lea.hbm %s1, %s267
          %s269 = sshll.u32 %s262, 4
          %s270 = int_to_ptr.vmem [resolvable:$true] %s269
          %275 = dma.hbm_to_vmem [thread:$0]  %s268, 32768, %s270, %s259, 2048, 2048, 128
        $region32: #{generator_forward.1} parent=27 // pred_fallthru
          _
        // Predicated region
        $region33: #{generator_forward.1} parent=27 // pred_check
          %p276 = pneg %p90
        $region34: #{generator_forward.1} parent=27 // pred_check_branch
          %278 = sbr.rel (%p276) target = $region36
        $region35: #{generator_forward.1} parent=27 // pred_region
          %s279 = sand.u32 %s23, 1
          %s280 = scalar_lea.sflag [#allocation5], %s279
          %s281 = sand.u32 %s80, 1
          %s282 = smul.addr %s281, 16
          %s283 = scalar_lea.vmem [#allocation4], %s282
          %s284 = smul.u32 16, %s23
          %s286 = ssub.s32 256, 256
          %287 = vsyncadd %s280, %s286
          %s288 = smul.addr %s284, 16
          %s289 = scalar_lea.hbm %s2, %s288
          %s291 = sshll.u32 %s283, 4
          %s292 = int_to_ptr.vmem [resolvable:$true] %s291
          %294 = dma.hbm_to_vmem [thread:$0]  %s289, 256, %s292, %s280
        $region36: #{generator_forward.1} parent=27 // pred_fallthru
          _
        // Predicated region
        $region37: #{generator_forward.1} parent=27 // pred_check
          %p295 = pneg %p116
        $region38: #{generator_forward.1} parent=27 // pred_check_branch
          %297 = sbr.rel (%p295) target = $region40
        $region39: #{generator_forward.1} parent=27 // pred_region
          %s298 = sand.u32 %s23, 1
          %s299 = scalar_lea.sflag [#allocation5], %s298
          %s300 = sand.u32 %s106, 1
          %s301 = smul.addr %s300, 16
          %s302 = scalar_lea.vmem [#allocation6], %s301
          %s303 = smul.u32 16, %s23
          %s305 = ssub.s32 256, 256
          %306 = vsyncadd %s299, %s305
          %s307 = smul.addr %s303, 16
          %s308 = scalar_lea.hbm %s3, %s307
          %s310 = sshll.u32 %s302, 4
          %s311 = int_to_ptr.vmem [resolvable:$true] %s310
          %313 = dma.hbm_to_vmem [thread:$0]  %s308, 256, %s311, %s299
        $region40: #{generator_forward.1} parent=27 // pred_fallthru
          _
        // Predicated region
        $region41: #{generator_forward.1} parent=27 // pred_check
          %p314 = pneg %p142
        $region42: #{generator_forward.1} parent=27 // pred_check_branch
          %316 = sbr.rel (%p314) target = $region44
        $region43: #{generator_forward.1} parent=27 // pred_region
          %s317 = sand.u32 %s23, 1
          %s318 = scalar_lea.sflag [#allocation8], %s317
          %s319 = sand.u32 %s132, 1
          %s320 = smul.addr %s319, 2048
          %s321 = scalar_lea.vmem [#allocation7], %s320
          %s322 = smul.u32 64, %s23
          %s324 = ssub.s32 32768, 32768
          %325 = vsyncadd %s318, %s324
          %s326 = smul.addr %s322, 4
          %s327 = smul.addr %s326, 128
          %s328 = scalar_lea.hbm %s4, %s327
          %s329 = sshll.u32 %s321, 4
          %s330 = int_to_ptr.vmem [resolvable:$true] %s329
          %335 = dma.hbm_to_vmem [thread:$0]  %s328, 32768, %s330, %s318, 512, 512, 32
        $region44: #{generator_forward.1} parent=27 // pred_fallthru
          _
      $region28: #{generator_forward.1} parent=5 // pred_fallthru
        _
      %p336 = scmp.le.s32.totalorder 1, %s23
      %p337 = scmp.lt.s32.totalorder %s23, 3
      %p338 = pnand %p336, %p337
      %p339 = pneg %p338
      // Predicated region
      $region45: #{generator_forward.1} parent=5 // pred_check
        _
      $region46: #{generator_forward.1} parent=5 // pred_check_branch
        %341 = sbr.rel (%p338) target = $region48
      $region47: #{generator_forward.1} parent=5 // pred_region
        %s342 = ssub.s32 %s23, 1
        %s343 = sand.u32 %s57, 1
        %s344 = scalar_lea.sflag [#allocation3], %s343
        %s345 = sand.u32 %s57, 1
        %s346 = smul.addr %s345, 2048
        %s347 = scalar_lea.vmem [#allocation2], %s346
        // Predicated region
        $region49: #{generator_forward.1} parent=47 // pred_check
          %p348 = pneg %p70
        $region50: #{generator_forward.1} parent=47 // pred_check_branch
          %350 = sbr.rel (%p348) target = $region52
        $region51: #{generator_forward.1} parent=47 // pred_region
          %351 = dma.done %s344, 32768
        $region52: #{generator_forward.1} parent=47 // pred_fallthru
          _
        %s352 = sand.u32 %s28, 1
        %s353 = scalar_lea.sflag [#allocation5], %s352
        %s354 = sand.u32 %s83, 1
        %s355 = smul.addr %s354, 16
        %s356 = scalar_lea.vmem [#allocation4], %s355
        // Predicated region
        $region53: #{generator_forward.1} parent=47 // pred_check
          %p357 = pneg %p96
        $region54: #{generator_forward.1} parent=47 // pred_check_branch
          %359 = sbr.rel (%p357) target = $region56
        $region55: #{generator_forward.1} parent=47 // pred_region
          %360 = dma.done %s353, 256
        $region56: #{generator_forward.1} parent=47 // pred_fallthru
          _
        %s361 = sand.u32 %s28, 1
        %s362 = scalar_lea.sflag [#allocation5], %s361
        %s363 = sand.u32 %s109, 1
        %s364 = smul.addr %s363, 16
        %s365 = scalar_lea.vmem [#allocation6], %s364
        // Predicated region
        $region57: #{generator_forward.1} parent=47 // pred_check
          %p366 = pneg %p122
        $region58: #{generator_forward.1} parent=47 // pred_check_branch
          %368 = sbr.rel (%p366) target = $region60
        $region59: #{generator_forward.1} parent=47 // pred_region
          %369 = dma.done %s362, 256
        $region60: #{generator_forward.1} parent=47 // pred_fallthru
          _
        %s370 = sand.u32 %s28, 1
        %s371 = scalar_lea.sflag [#allocation8], %s370
        %s372 = sand.u32 %s135, 1
        %s373 = smul.addr %s372, 2048
        %s374 = scalar_lea.vmem [#allocation7], %s373
        // Predicated region
        $region61: #{generator_forward.1} parent=47 // pred_check
          %p375 = pneg %p148
        $region62: #{generator_forward.1} parent=47 // pred_check_branch
          %377 = sbr.rel (%p375) target = $region64
        $region63: #{generator_forward.1} parent=47 // pred_region
          %378 = dma.done %s371, 32768
        $region64: #{generator_forward.1} parent=47 // pred_fallthru
          _
        // Predicated region
        $region65: #{generator_forward.1} parent=47 // pred_check
          %p379 = pneg %p169
        $region66: #{generator_forward.1} parent=47 // pred_check_branch
          %381 = sbr.rel (%p379) target = $region68
        $region67: #{generator_forward.1} parent=47 // pred_region
          %382 = dma.done [#allocation8], 64
        $region68: #{generator_forward.1} parent=47 // pred_fallthru
          _
        // Predicated region
        $region69: #{generator_forward.1} parent=47 // pred_check
          %p383 = pneg %p190
        $region70: #{generator_forward.1} parent=47 // pred_check_branch
          %385 = sbr.rel (%p383) target = $region72
        $region71: #{generator_forward.1} parent=47 // pred_region
          %386 = dma.done [#allocation11], 64
        $region72: #{generator_forward.1} parent=47 // pred_fallthru
          _
        %p387 = pneg %p44
        %p388 = pneg %p41
        %s389 = sand.u32 %s57, 1
        %s390 = scalar_lea.sflag [#allocation3], %s389
        %s391 = sand.u32 %s57, 1
        %s392 = smul.addr %s391, 2048
        %s393 = scalar_lea.vmem [#allocation2], %s392
        %p394 = pneg %p70
        %p395 = pneg %p67
        %s396 = sand.u32 %s28, 1
        %s397 = scalar_lea.sflag [#allocation5], %s396
        %s398 = sand.u32 %s83, 1
        %s399 = smul.addr %s398, 16
        %s400 = scalar_lea.vmem [#allocation4], %s399
        %p401 = pneg %p96
        %p402 = pneg %p93
        %s403 = sand.u32 %s28, 1
        %s404 = scalar_lea.sflag [#allocation5], %s403
        %s405 = sand.u32 %s109, 1
        %s406 = smul.addr %s405, 16
        %s407 = scalar_lea.vmem [#allocation6], %s406
        %p408 = pneg %p122
        %p409 = pneg %p119
        %s410 = sand.u32 %s28, 1
        %s411 = scalar_lea.sflag [#allocation8], %s410
        %s412 = sand.u32 %s135, 1
        %s413 = smul.addr %s412, 2048
        %s414 = scalar_lea.vmem [#allocation7], %s413
        %p415 = pneg %p148
        %p416 = pneg %p145
        %p417 = pneg %p169
        %p418 = pneg %p166
        %p419 = pneg %p190
        %p420 = pneg %p187
        %p421 = pneg %p211
        %p422 = pneg %p208
        %s423 = smul.u32 16, %s28
        %s424 = smul.u32 16, %s28
        %s425 = smul.u32 64, %s28
        %v426 = vld [vmem:[%s347] sm:$0xff]
        %v427 = vld [vmem:[%s347 + $0x8] sm:$0xff]
        %v428 = vld [vmem:[%s347 + $0x10] sm:$0xff]
        %v429 = vld [vmem:[%s347 + $0x18] sm:$0xff]
        %v430 = vld [vmem:[%s347 + $0x20] sm:$0xff]
        %v431 = vld [vmem:[%s347 + $0x28] sm:$0xff]
        %v432 = vld [vmem:[%s347 + $0x30] sm:$0xff]
        %v433 = vld [vmem:[%s347 + $0x38] sm:$0xff]
        %v434 = vld [vmem:[%s347 + $0x40] sm:$0xff]
        %v435 = vld [vmem:[%s347 + $0x48] sm:$0xff]
        %v436 = vld [vmem:[%s347 + $0x50] sm:$0xff]
        %v437 = vld [vmem:[%s347 + $0x58] sm:$0xff]
        %v438 = vld [vmem:[%s347 + $0x60] sm:$0xff]
        %v439 = vld [vmem:[%s347 + $0x68] sm:$0xff]
        %v440 = vld [vmem:[%s347 + $0x70] sm:$0xff]
        %v441 = vld [vmem:[%s347 + $0x78] sm:$0xff]
        %v442 = vld [vmem:[%s347 + $0x80] sm:$0xff]
        %v443 = vld [vmem:[%s347 + $0x88] sm:$0xff]
        %v444 = vld [vmem:[%s347 + $0x90] sm:$0xff]
        %v445 = vld [vmem:[%s347 + $0x98] sm:$0xff]
        %v446 = vld [vmem:[%s347 + $0xa0] sm:$0xff]
        %v447 = vld [vmem:[%s347 + $0xa8] sm:$0xff]
        %v448 = vld [vmem:[%s347 + $0xb0] sm:$0xff]
        %v449 = vld [vmem:[%s347 + $0xb8] sm:$0xff]
        %v450 = vld [vmem:[%s347 + $0xc0] sm:$0xff]
        %v451 = vld [vmem:[%s347 + $0xc8] sm:$0xff]
        %v452 = vld [vmem:[%s347 + $0xd0] sm:$0xff]
        %v453 = vld [vmem:[%s347 + $0xd8] sm:$0xff]
        %v454 = vld [vmem:[%s347 + $0xe0] sm:$0xff]
        %v455 = vld [vmem:[%s347 + $0xe8] sm:$0xff]
        %v456 = vld [vmem:[%s347 + $0xf0] sm:$0xff]
        %v457 = vld [vmem:[%s347 + $0xf8] sm:$0xff]
        %v458 = vld [vmem:[%s347 + $0x100] sm:$0xff]
        %v459 = vld [vmem:[%s347 + $0x108] sm:$0xff]
        %v460 = vld [vmem:[%s347 + $0x110] sm:$0xff]
        %v461 = vld [vmem:[%s347 + $0x118] sm:$0xff]
        %v462 = vld [vmem:[%s347 + $0x120] sm:$0xff]
        %v463 = vld [vmem:[%s347 + $0x128] sm:$0xff]
        %v464 = vld [vmem:[%s347 + $0x130] sm:$0xff]
        %v465 = vld [vmem:[%s347 + $0x138] sm:$0xff]
        %v466 = vld [vmem:[%s347 + $0x140] sm:$0xff]
        %v467 = vld [vmem:[%s347 + $0x148] sm:$0xff]
        %v468 = vld [vmem:[%s347 + $0x150] sm:$0xff]
        %v469 = vld [vmem:[%s347 + $0x158] sm:$0xff]
        %v470 = vld [vmem:[%s347 + $0x160] sm:$0xff]
        %v471 = vld [vmem:[%s347 + $0x168] sm:$0xff]
        %v472 = vld [vmem:[%s347 + $0x170] sm:$0xff]
        %v473 = vld [vmem:[%s347 + $0x178] sm:$0xff]
        %v474 = vld [vmem:[%s347 + $0x180] sm:$0xff]
        %v475 = vld [vmem:[%s347 + $0x188] sm:$0xff]
        %v476 = vld [vmem:[%s347 + $0x190] sm:$0xff]
        %v477 = vld [vmem:[%s347 + $0x198] sm:$0xff]
        %v478 = vld [vmem:[%s347 + $0x1a0] sm:$0xff]
        %v479 = vld [vmem:[%s347 + $0x1a8] sm:$0xff]
        %v480 = vld [vmem:[%s347 + $0x1b0] sm:$0xff]
        %v481 = vld [vmem:[%s347 + $0x1b8] sm:$0xff]
        %v482 = vld [vmem:[%s347 + $0x1c0] sm:$0xff]
        %v483 = vld [vmem:[%s347 + $0x1c8] sm:$0xff]
        %v484 = vld [vmem:[%s347 + $0x1d0] sm:$0xff]
        %v485 = vld [vmem:[%s347 + $0x1d8] sm:$0xff]
        %v486 = vld [vmem:[%s347 + $0x1e0] sm:$0xff]
        %v487 = vld [vmem:[%s347 + $0x1e8] sm:$0xff]
        %v488 = vld [vmem:[%s347 + $0x1f0] sm:$0xff]
        %v489 = vld [vmem:[%s347 + $0x1f8] sm:$0xff]
        %v490 = vld [vmem:[%s347 + $0x200] sm:$0xff]
        %v491 = vld [vmem:[%s347 + $0x208] sm:$0xff]
        %v492 = vld [vmem:[%s347 + $0x210] sm:$0xff]
        %v493 = vld [vmem:[%s347 + $0x218] sm:$0xff]
        %v494 = vld [vmem:[%s347 + $0x220] sm:$0xff]
        %v495 = vld [vmem:[%s347 + $0x228] sm:$0xff]
        %v496 = vld [vmem:[%s347 + $0x230] sm:$0xff]
        %v497 = vld [vmem:[%s347 + $0x238] sm:$0xff]
        %v498 = vld [vmem:[%s347 + $0x240] sm:$0xff]
        %v499 = vld [vmem:[%s347 + $0x248] sm:$0xff]
        %v500 = vld [vmem:[%s347 + $0x250] sm:$0xff]
        %v501 = vld [vmem:[%s347 + $0x258] sm:$0xff]
        %v502 = vld [vmem:[%s347 + $0x260] sm:$0xff]
        %v503 = vld [vmem:[%s347 + $0x268] sm:$0xff]
        %v504 = vld [vmem:[%s347 + $0x270] sm:$0xff]
        %v505 = vld [vmem:[%s347 + $0x278] sm:$0xff]
        %v506 = vld [vmem:[%s347 + $0x280] sm:$0xff]
        %v507 = vld [vmem:[%s347 + $0x288] sm:$0xff]
        %v508 = vld [vmem:[%s347 + $0x290] sm:$0xff]
        %v509 = vld [vmem:[%s347 + $0x298] sm:$0xff]
        %v510 = vld [vmem:[%s347 + $0x2a0] sm:$0xff]
        %v511 = vld [vmem:[%s347 + $0x2a8] sm:$0xff]
        %v512 = vld [vmem:[%s347 + $0x2b0] sm:$0xff]
        %v513 = vld [vmem:[%s347 + $0x2b8] sm:$0xff]
        %v514 = vld [vmem:[%s347 + $0x2c0] sm:$0xff]
        %v515 = vld [vmem:[%s347 + $0x2c8] sm:$0xff]
        %v516 = vld [vmem:[%s347 + $0x2d0] sm:$0xff]
        %v517 = vld [vmem:[%s347 + $0x2d8] sm:$0xff]
        %v518 = vld [vmem:[%s347 + $0x2e0] sm:$0xff]
        %v519 = vld [vmem:[%s347 + $0x2e8] sm:$0xff]
        %v520 = vld [vmem:[%s347 + $0x2f0] sm:$0xff]
        %v521 = vld [vmem:[%s347 + $0x2f8] sm:$0xff]
        %v522 = vld [vmem:[%s347 + $0x300] sm:$0xff]
        %v523 = vld [vmem:[%s347 + $0x308] sm:$0xff]
        %v524 = vld [vmem:[%s347 + $0x310] sm:$0xff]
        %v525 = vld [vmem:[%s347 + $0x318] sm:$0xff]
        %v526 = vld [vmem:[%s347 + $0x320] sm:$0xff]
        %v527 = vld [vmem:[%s347 + $0x328] sm:$0xff]
        %v528 = vld [vmem:[%s347 + $0x330] sm:$0xff]
        %v529 = vld [vmem:[%s347 + $0x338] sm:$0xff]
        %v530 = vld [vmem:[%s347 + $0x340] sm:$0xff]
        %v531 = vld [vmem:[%s347 + $0x348] sm:$0xff]
        %v532 = vld [vmem:[%s347 + $0x350] sm:$0xff]
        %v533 = vld [vmem:[%s347 + $0x358] sm:$0xff]
        %v534 = vld [vmem:[%s347 + $0x360] sm:$0xff]
        %v535 = vld [vmem:[%s347 + $0x368] sm:$0xff]
        %v536 = vld [vmem:[%s347 + $0x370] sm:$0xff]
        %v537 = vld [vmem:[%s347 + $0x378] sm:$0xff]
        %v538 = vld [vmem:[%s347 + $0x380] sm:$0xff]
        %v539 = vld [vmem:[%s347 + $0x388] sm:$0xff]
        %v540 = vld [vmem:[%s347 + $0x390] sm:$0xff]
        %v541 = vld [vmem:[%s347 + $0x398] sm:$0xff]
        %v542 = vld [vmem:[%s347 + $0x3a0] sm:$0xff]
        %v543 = vld [vmem:[%s347 + $0x3a8] sm:$0xff]
        %v544 = vld [vmem:[%s347 + $0x3b0] sm:$0xff]
        %v545 = vld [vmem:[%s347 + $0x3b8] sm:$0xff]
        %v546 = vld [vmem:[%s347 + $0x3c0] sm:$0xff]
        %v547 = vld [vmem:[%s347 + $0x3c8] sm:$0xff]
        %v548 = vld [vmem:[%s347 + $0x3d0] sm:$0xff]
        %v549 = vld [vmem:[%s347 + $0x3d8] sm:$0xff]
        %v550 = vld [vmem:[%s347 + $0x3e0] sm:$0xff]
        %v551 = vld [vmem:[%s347 + $0x3e8] sm:$0xff]
        %v552 = vld [vmem:[%s347 + $0x3f0] sm:$0xff]
        %v553 = vld [vmem:[%s347 + $0x3f8] sm:$0xff]
        %v554 = vld [vmem:[%s347 + $0x400] sm:$0xff]
        %v555 = vld [vmem:[%s347 + $0x408] sm:$0xff]
        %v556 = vld [vmem:[%s347 + $0x410] sm:$0xff]
        %v557 = vld [vmem:[%s347 + $0x418] sm:$0xff]
        %v558 = vld [vmem:[%s347 + $0x420] sm:$0xff]
        %v559 = vld [vmem:[%s347 + $0x428] sm:$0xff]
        %v560 = vld [vmem:[%s347 + $0x430] sm:$0xff]
        %v561 = vld [vmem:[%s347 + $0x438] sm:$0xff]
        %v562 = vld [vmem:[%s347 + $0x440] sm:$0xff]
        %v563 = vld [vmem:[%s347 + $0x448] sm:$0xff]
        %v564 = vld [vmem:[%s347 + $0x450] sm:$0xff]
        %v565 = vld [vmem:[%s347 + $0x458] sm:$0xff]
        %v566 = vld [vmem:[%s347 + $0x460] sm:$0xff]
        %v567 = vld [vmem:[%s347 + $0x468] sm:$0xff]
        %v568 = vld [vmem:[%s347 + $0x470] sm:$0xff]
        %v569 = vld [vmem:[%s347 + $0x478] sm:$0xff]
        %v570 = vld [vmem:[%s347 + $0x480] sm:$0xff]
        %v571 = vld [vmem:[%s347 + $0x488] sm:$0xff]
        %v572 = vld [vmem:[%s347 + $0x490] sm:$0xff]
        %v573 = vld [vmem:[%s347 + $0x498] sm:$0xff]
        %v574 = vld [vmem:[%s347 + $0x4a0] sm:$0xff]
        %v575 = vld [vmem:[%s347 + $0x4a8] sm:$0xff]
        %v576 = vld [vmem:[%s347 + $0x4b0] sm:$0xff]
        %v577 = vld [vmem:[%s347 + $0x4b8] sm:$0xff]
        %v578 = vld [vmem:[%s347 + $0x4c0] sm:$0xff]
        %v579 = vld [vmem:[%s347 + $0x4c8] sm:$0xff]
        %v580 = vld [vmem:[%s347 + $0x4d0] sm:$0xff]
        %v581 = vld [vmem:[%s347 + $0x4d8] sm:$0xff]
        %v582 = vld [vmem:[%s347 + $0x4e0] sm:$0xff]
        %v583 = vld [vmem:[%s347 + $0x4e8] sm:$0xff]
        %v584 = vld [vmem:[%s347 + $0x4f0] sm:$0xff]
        %v585 = vld [vmem:[%s347 + $0x4f8] sm:$0xff]
        %v586 = vld [vmem:[%s347 + $0x500] sm:$0xff]
        %v587 = vld [vmem:[%s347 + $0x508] sm:$0xff]
        %v588 = vld [vmem:[%s347 + $0x510] sm:$0xff]
        %v589 = vld [vmem:[%s347 + $0x518] sm:$0xff]
        %v590 = vld [vmem:[%s347 + $0x520] sm:$0xff]
        %v591 = vld [vmem:[%s347 + $0x528] sm:$0xff]
        %v592 = vld [vmem:[%s347 + $0x530] sm:$0xff]
        %v593 = vld [vmem:[%s347 + $0x538] sm:$0xff]
        %v594 = vld [vmem:[%s347 + $0x540] sm:$0xff]
        %v595 = vld [vmem:[%s347 + $0x548] sm:$0xff]
        %v596 = vld [vmem:[%s347 + $0x550] sm:$0xff]
        %v597 = vld [vmem:[%s347 + $0x558] sm:$0xff]
        %v598 = vld [vmem:[%s347 + $0x560] sm:$0xff]
        %v599 = vld [vmem:[%s347 + $0x568] sm:$0xff]
        %v600 = vld [vmem:[%s347 + $0x570] sm:$0xff]
        %v601 = vld [vmem:[%s347 + $0x578] sm:$0xff]
        %v602 = vld [vmem:[%s347 + $0x580] sm:$0xff]
        %v603 = vld [vmem:[%s347 + $0x588] sm:$0xff]
        %v604 = vld [vmem:[%s347 + $0x590] sm:$0xff]
        %v605 = vld [vmem:[%s347 + $0x598] sm:$0xff]
        %v606 = vld [vmem:[%s347 + $0x5a0] sm:$0xff]
        %v607 = vld [vmem:[%s347 + $0x5a8] sm:$0xff]
        %v608 = vld [vmem:[%s347 + $0x5b0] sm:$0xff]
        %v609 = vld [vmem:[%s347 + $0x5b8] sm:$0xff]
        %v610 = vld [vmem:[%s347 + $0x5c0] sm:$0xff]
        %v611 = vld [vmem:[%s347 + $0x5c8] sm:$0xff]
        %v612 = vld [vmem:[%s347 + $0x5d0] sm:$0xff]
        %v613 = vld [vmem:[%s347 + $0x5d8] sm:$0xff]
        %v614 = vld [vmem:[%s347 + $0x5e0] sm:$0xff]
        %v615 = vld [vmem:[%s347 + $0x5e8] sm:$0xff]
        %v616 = vld [vmem:[%s347 + $0x5f0] sm:$0xff]
        %v617 = vld [vmem:[%s347 + $0x5f8] sm:$0xff]
        %v618 = vld [vmem:[%s347 + $0x600] sm:$0xff]
        %v619 = vld [vmem:[%s347 + $0x608] sm:$0xff]
        %v620 = vld [vmem:[%s347 + $0x610] sm:$0xff]
        %v621 = vld [vmem:[%s347 + $0x618] sm:$0xff]
        %v622 = vld [vmem:[%s347 + $0x620] sm:$0xff]
        %v623 = vld [vmem:[%s347 + $0x628] sm:$0xff]
        %v624 = vld [vmem:[%s347 + $0x630] sm:$0xff]
        %v625 = vld [vmem:[%s347 + $0x638] sm:$0xff]
        %v626 = vld [vmem:[%s347 + $0x640] sm:$0xff]
        %v627 = vld [vmem:[%s347 + $0x648] sm:$0xff]
        %v628 = vld [vmem:[%s347 + $0x650] sm:$0xff]
        %v629 = vld [vmem:[%s347 + $0x658] sm:$0xff]
        %v630 = vld [vmem:[%s347 + $0x660] sm:$0xff]
        %v631 = vld [vmem:[%s347 + $0x668] sm:$0xff]
        %v632 = vld [vmem:[%s347 + $0x670] sm:$0xff]
        %v633 = vld [vmem:[%s347 + $0x678] sm:$0xff]
        %v634 = vld [vmem:[%s347 + $0x680] sm:$0xff]
        %v635 = vld [vmem:[%s347 + $0x688] sm:$0xff]
        %v636 = vld [vmem:[%s347 + $0x690] sm:$0xff]
        %v637 = vld [vmem:[%s347 + $0x698] sm:$0xff]
        %v638 = vld [vmem:[%s347 + $0x6a0] sm:$0xff]
        %v639 = vld [vmem:[%s347 + $0x6a8] sm:$0xff]
        %v640 = vld [vmem:[%s347 + $0x6b0] sm:$0xff]
        %v641 = vld [vmem:[%s347 + $0x6b8] sm:$0xff]
        %v642 = vld [vmem:[%s347 + $0x6c0] sm:$0xff]
        %v643 = vld [vmem:[%s347 + $0x6c8] sm:$0xff]
        %v644 = vld [vmem:[%s347 + $0x6d0] sm:$0xff]
        %v645 = vld [vmem:[%s347 + $0x6d8] sm:$0xff]
        %v646 = vld [vmem:[%s347 + $0x6e0] sm:$0xff]
        %v647 = vld [vmem:[%s347 + $0x6e8] sm:$0xff]
        %v648 = vld [vmem:[%s347 + $0x6f0] sm:$0xff]
        %v649 = vld [vmem:[%s347 + $0x6f8] sm:$0xff]
        %v650 = vld [vmem:[%s347 + $0x700] sm:$0xff]
        %v651 = vld [vmem:[%s347 + $0x708] sm:$0xff]
        %v652 = vld [vmem:[%s347 + $0x710] sm:$0xff]
        %v653 = vld [vmem:[%s347 + $0x718] sm:$0xff]
        %v654 = vld [vmem:[%s347 + $0x720] sm:$0xff]
        %v655 = vld [vmem:[%s347 + $0x728] sm:$0xff]
        %v656 = vld [vmem:[%s347 + $0x730] sm:$0xff]
        %v657 = vld [vmem:[%s347 + $0x738] sm:$0xff]
        %v658 = vld [vmem:[%s347 + $0x740] sm:$0xff]
        %v659 = vld [vmem:[%s347 + $0x748] sm:$0xff]
        %v660 = vld [vmem:[%s347 + $0x750] sm:$0xff]
        %v661 = vld [vmem:[%s347 + $0x758] sm:$0xff]
        %v662 = vld [vmem:[%s347 + $0x760] sm:$0xff]
        %v663 = vld [vmem:[%s347 + $0x768] sm:$0xff]
        %v664 = vld [vmem:[%s347 + $0x770] sm:$0xff]
        %v665 = vld [vmem:[%s347 + $0x778] sm:$0xff]
        %v666 = vld [vmem:[%s347 + $0x780] sm:$0xff]
        %v667 = vld [vmem:[%s347 + $0x788] sm:$0xff]
        %v668 = vld [vmem:[%s347 + $0x790] sm:$0xff]
        %v669 = vld [vmem:[%s347 + $0x798] sm:$0xff]
        %v670 = vld [vmem:[%s347 + $0x7a0] sm:$0xff]
        %v671 = vld [vmem:[%s347 + $0x7a8] sm:$0xff]
        %v672 = vld [vmem:[%s347 + $0x7b0] sm:$0xff]
        %v673 = vld [vmem:[%s347 + $0x7b8] sm:$0xff]
        %v674 = vld [vmem:[%s347 + $0x7c0] sm:$0xff]
        %v675 = vld [vmem:[%s347 + $0x7c8] sm:$0xff]
        %v676 = vld [vmem:[%s347 + $0x7d0] sm:$0xff]
        %v677 = vld [vmem:[%s347 + $0x7d8] sm:$0xff]
        %v678 = vld [vmem:[%s347 + $0x7e0] sm:$0xff]
        %v679 = vld [vmem:[%s347 + $0x7e8] sm:$0xff]
        %v680 = vld [vmem:[%s347 + $0x7f0] sm:$0xff]
        %v681 = vld [vmem:[%s347 + $0x7f8] sm:$0xff]
        %v682 = vunpack.c.l.s8.bf16 %v426
        %v683 = vunpack.c.l.s8.bf16 %v427
        %v684 = vunpack.c.l.s8.bf16 %v428
        %v685 = vunpack.c.l.s8.bf16 %v429
        %v686 = vunpack.c.l.s8.bf16 %v430
        %v687 = vunpack.c.l.s8.bf16 %v431
        %v688 = vunpack.c.l.s8.bf16 %v432
        %v689 = vunpack.c.l.s8.bf16 %v433
        %v690 = vunpack.c.l.s8.bf16 %v434
        %v691 = vunpack.c.l.s8.bf16 %v435
        %v692 = vunpack.c.l.s8.bf16 %v436
        %v693 = vunpack.c.l.s8.bf16 %v437
        %v694 = vunpack.c.l.s8.bf16 %v438
        %v695 = vunpack.c.l.s8.bf16 %v439
        %v696 = vunpack.c.l.s8.bf16 %v440
        %v697 = vunpack.c.l.s8.bf16 %v441
        %v698 = vunpack.c.h.s8.bf16 %v426
        %v699 = vunpack.c.h.s8.bf16 %v427
        %v700 = vunpack.c.h.s8.bf16 %v428
        %v701 = vunpack.c.h.s8.bf16 %v429
        %v702 = vunpack.c.h.s8.bf16 %v430
        %v703 = vunpack.c.h.s8.bf16 %v431
        %v704 = vunpack.c.h.s8.bf16 %v432
        %v705 = vunpack.c.h.s8.bf16 %v433
        %v706 = vunpack.c.h.s8.bf16 %v434
        %v707 = vunpack.c.h.s8.bf16 %v435
        %v708 = vunpack.c.h.s8.bf16 %v436
        %v709 = vunpack.c.h.s8.bf16 %v437
        %v710 = vunpack.c.h.s8.bf16 %v438
        %v711 = vunpack.c.h.s8.bf16 %v439
        %v712 = vunpack.c.h.s8.bf16 %v440
        %v713 = vunpack.c.h.s8.bf16 %v441
        %v714 = vunpack.c.l.s8.bf16 %v442
        %v715 = vunpack.c.l.s8.bf16 %v443
        %v716 = vunpack.c.l.s8.bf16 %v444
        %v717 = vunpack.c.l.s8.bf16 %v445
        %v718 = vunpack.c.l.s8.bf16 %v446
        %v719 = vunpack.c.l.s8.bf16 %v447
        %v720 = vunpack.c.l.s8.bf16 %v448
        %v721 = vunpack.c.l.s8.bf16 %v449
        %v722 = vunpack.c.l.s8.bf16 %v450
        %v723 = vunpack.c.l.s8.bf16 %v451
        %v724 = vunpack.c.l.s8.bf16 %v452
        %v725 = vunpack.c.l.s8.bf16 %v453
        %v726 = vunpack.c.l.s8.bf16 %v454
        %v727 = vunpack.c.l.s8.bf16 %v455
        %v728 = vunpack.c.l.s8.bf16 %v456
        %v729 = vunpack.c.l.s8.bf16 %v457
        %v730 = vunpack.c.h.s8.bf16 %v442
        %v731 = vunpack.c.h.s8.bf16 %v443
        %v732 = vunpack.c.h.s8.bf16 %v444
        %v733 = vunpack.c.h.s8.bf16 %v445
        %v734 = vunpack.c.h.s8.bf16 %v446
        %v735 = vunpack.c.h.s8.bf16 %v447
        %v736 = vunpack.c.h.s8.bf16 %v448
        %v737 = vunpack.c.h.s8.bf16 %v449
        %v738 = vunpack.c.h.s8.bf16 %v450
        %v739 = vunpack.c.h.s8.bf16 %v451
        %v740 = vunpack.c.h.s8.bf16 %v452
        %v741 = vunpack.c.h.s8.bf16 %v453
        %v742 = vunpack.c.h.s8.bf16 %v454
        %v743 = vunpack.c.h.s8.bf16 %v455
        %v744 = vunpack.c.h.s8.bf16 %v456
        %v745 = vunpack.c.h.s8.bf16 %v457
        %v746 = vunpack.c.l.s8.bf16 %v458
        %v747 = vunpack.c.l.s8.bf16 %v459
        %v748 = vunpack.c.l.s8.bf16 %v460
        %v749 = vunpack.c.l.s8.bf16 %v461
        %v750 = vunpack.c.l.s8.bf16 %v462
        %v751 = vunpack.c.l.s8.bf16 %v463
        %v752 = vunpack.c.l.s8.bf16 %v464
        %v753 = vunpack.c.l.s8.bf16 %v465
        %v754 = vunpack.c.l.s8.bf16 %v466
        %v755 = vunpack.c.l.s8.bf16 %v467
        %v756 = vunpack.c.l.s8.bf16 %v468
        %v757 = vunpack.c.l.s8.bf16 %v469
        %v758 = vunpack.c.l.s8.bf16 %v470
        %v759 = vunpack.c.l.s8.bf16 %v471
        %v760 = vunpack.c.l.s8.bf16 %v472
        %v761 = vunpack.c.l.s8.bf16 %v473
        %v762 = vunpack.c.h.s8.bf16 %v458
        %v763 = vunpack.c.h.s8.bf16 %v459
        %v764 = vunpack.c.h.s8.bf16 %v460
        %v765 = vunpack.c.h.s8.bf16 %v461
        %v766 = vunpack.c.h.s8.bf16 %v462
        %v767 = vunpack.c.h.s8.bf16 %v463
        %v768 = vunpack.c.h.s8.bf16 %v464
        %v769 = vunpack.c.h.s8.bf16 %v465
        %v770 = vunpack.c.h.s8.bf16 %v466
        %v771 = vunpack.c.h.s8.bf16 %v467
        %v772 = vunpack.c.h.s8.bf16 %v468
        %v773 = vunpack.c.h.s8.bf16 %v469
        %v774 = vunpack.c.h.s8.bf16 %v470
        %v775 = vunpack.c.h.s8.bf16 %v471
        %v776 = vunpack.c.h.s8.bf16 %v472
        %v777 = vunpack.c.h.s8.bf16 %v473
        %v778 = vunpack.c.l.s8.bf16 %v474
        %v779 = vunpack.c.l.s8.bf16 %v475
        %v780 = vunpack.c.l.s8.bf16 %v476
        %v781 = vunpack.c.l.s8.bf16 %v477
        %v782 = vunpack.c.l.s8.bf16 %v478
        %v783 = vunpack.c.l.s8.bf16 %v479
        %v784 = vunpack.c.l.s8.bf16 %v480
        %v785 = vunpack.c.l.s8.bf16 %v481
        %v786 = vunpack.c.l.s8.bf16 %v482
        %v787 = vunpack.c.l.s8.bf16 %v483
        %v788 = vunpack.c.l.s8.bf16 %v484
        %v789 = vunpack.c.l.s8.bf16 %v485
        %v790 = vunpack.c.l.s8.bf16 %v486
        %v791 = vunpack.c.l.s8.bf16 %v487
        %v792 = vunpack.c.l.s8.bf16 %v488
        %v793 = vunpack.c.l.s8.bf16 %v489
        %v794 = vunpack.c.h.s8.bf16 %v474
        %v795 = vunpack.c.h.s8.bf16 %v475
        %v796 = vunpack.c.h.s8.bf16 %v476
        %v797 = vunpack.c.h.s8.bf16 %v477
        %v798 = vunpack.c.h.s8.bf16 %v478
        %v799 = vunpack.c.h.s8.bf16 %v479
        %v800 = vunpack.c.h.s8.bf16 %v480
        %v801 = vunpack.c.h.s8.bf16 %v481
        %v802 = vunpack.c.h.s8.bf16 %v482
        %v803 = vunpack.c.h.s8.bf16 %v483
        %v804 = vunpack.c.h.s8.bf16 %v484
        %v805 = vunpack.c.h.s8.bf16 %v485
        %v806 = vunpack.c.h.s8.bf16 %v486
        %v807 = vunpack.c.h.s8.bf16 %v487
        %v808 = vunpack.c.h.s8.bf16 %v488
        %v809 = vunpack.c.h.s8.bf16 %v489
        %v810 = vunpack.c.l.s8.bf16 %v490
        %v811 = vunpack.c.l.s8.bf16 %v491
        %v812 = vunpack.c.l.s8.bf16 %v492
        %v813 = vunpack.c.l.s8.bf16 %v493
        %v814 = vunpack.c.l.s8.bf16 %v494
        %v815 = vunpack.c.l.s8.bf16 %v495
        %v816 = vunpack.c.l.s8.bf16 %v496
        %v817 = vunpack.c.l.s8.bf16 %v497
        %v818 = vunpack.c.l.s8.bf16 %v498
        %v819 = vunpack.c.l.s8.bf16 %v499
        %v820 = vunpack.c.l.s8.bf16 %v500
        %v821 = vunpack.c.l.s8.bf16 %v501
        %v822 = vunpack.c.l.s8.bf16 %v502
        %v823 = vunpack.c.l.s8.bf16 %v503
        %v824 = vunpack.c.l.s8.bf16 %v504
        %v825 = vunpack.c.l.s8.bf16 %v505
        %v826 = vunpack.c.h.s8.bf16 %v490
        %v827 = vunpack.c.h.s8.bf16 %v491
        %v828 = vunpack.c.h.s8.bf16 %v492
        %v829 = vunpack.c.h.s8.bf16 %v493
        %v830 = vunpack.c.h.s8.bf16 %v494
        %v831 = vunpack.c.h.s8.bf16 %v495
        %v832 = vunpack.c.h.s8.bf16 %v496
        %v833 = vunpack.c.h.s8.bf16 %v497
        %v834 = vunpack.c.h.s8.bf16 %v498
        %v835 = vunpack.c.h.s8.bf16 %v499
        %v836 = vunpack.c.h.s8.bf16 %v500
        %v837 = vunpack.c.h.s8.bf16 %v501
        %v838 = vunpack.c.h.s8.bf16 %v502
        %v839 = vunpack.c.h.s8.bf16 %v503
        %v840 = vunpack.c.h.s8.bf16 %v504
        %v841 = vunpack.c.h.s8.bf16 %v505
        %v842 = vunpack.c.l.s8.bf16 %v506
        %v843 = vunpack.c.l.s8.bf16 %v507
        %v844 = vunpack.c.l.s8.bf16 %v508
        %v845 = vunpack.c.l.s8.bf16 %v509
        %v846 = vunpack.c.l.s8.bf16 %v510
        %v847 = vunpack.c.l.s8.bf16 %v511
        %v848 = vunpack.c.l.s8.bf16 %v512
        %v849 = vunpack.c.l.s8.bf16 %v513
        %v850 = vunpack.c.l.s8.bf16 %v514
        %v851 = vunpack.c.l.s8.bf16 %v515
        %v852 = vunpack.c.l.s8.bf16 %v516
        %v853 = vunpack.c.l.s8.bf16 %v517
        %v854 = vunpack.c.l.s8.bf16 %v518
        %v855 = vunpack.c.l.s8.bf16 %v519
        %v856 = vunpack.c.l.s8.bf16 %v520
        %v857 = vunpack.c.l.s8.bf16 %v521
        %v858 = vunpack.c.h.s8.bf16 %v506
        %v859 = vunpack.c.h.s8.bf16 %v507
        %v860 = vunpack.c.h.s8.bf16 %v508
        %v861 = vunpack.c.h.s8.bf16 %v509
        %v862 = vunpack.c.h.s8.bf16 %v510
        %v863 = vunpack.c.h.s8.bf16 %v511
        %v864 = vunpack.c.h.s8.bf16 %v512
        %v865 = vunpack.c.h.s8.bf16 %v513
        %v866 = vunpack.c.h.s8.bf16 %v514
        %v867 = vunpack.c.h.s8.bf16 %v515
        %v868 = vunpack.c.h.s8.bf16 %v516
        %v869 = vunpack.c.h.s8.bf16 %v517
        %v870 = vunpack.c.h.s8.bf16 %v518
        %v871 = vunpack.c.h.s8.bf16 %v519
        %v872 = vunpack.c.h.s8.bf16 %v520
        %v873 = vunpack.c.h.s8.bf16 %v521
        %v874 = vunpack.c.l.s8.bf16 %v522
        %v875 = vunpack.c.l.s8.bf16 %v523
        %v876 = vunpack.c.l.s8.bf16 %v524
        %v877 = vunpack.c.l.s8.bf16 %v525
        %v878 = vunpack.c.l.s8.bf16 %v526
        %v879 = vunpack.c.l.s8.bf16 %v527
        %v880 = vunpack.c.l.s8.bf16 %v528
        %v881 = vunpack.c.l.s8.bf16 %v529
        %v882 = vunpack.c.l.s8.bf16 %v530
        %v883 = vunpack.c.l.s8.bf16 %v531
        %v884 = vunpack.c.l.s8.bf16 %v532
        %v885 = vunpack.c.l.s8.bf16 %v533
        %v886 = vunpack.c.l.s8.bf16 %v534
        %v887 = vunpack.c.l.s8.bf16 %v535
        %v888 = vunpack.c.l.s8.bf16 %v536
        %v889 = vunpack.c.l.s8.bf16 %v537
        %v890 = vunpack.c.h.s8.bf16 %v522
        %v891 = vunpack.c.h.s8.bf16 %v523
        %v892 = vunpack.c.h.s8.bf16 %v524
        %v893 = vunpack.c.h.s8.bf16 %v525
        %v894 = vunpack.c.h.s8.bf16 %v526
        %v895 = vunpack.c.h.s8.bf16 %v527
        %v896 = vunpack.c.h.s8.bf16 %v528
        %v897 = vunpack.c.h.s8.bf16 %v529
        %v898 = vunpack.c.h.s8.bf16 %v530
        %v899 = vunpack.c.h.s8.bf16 %v531
        %v900 = vunpack.c.h.s8.bf16 %v532
        %v901 = vunpack.c.h.s8.bf16 %v533
        %v902 = vunpack.c.h.s8.bf16 %v534
        %v903 = vunpack.c.h.s8.bf16 %v535
        %v904 = vunpack.c.h.s8.bf16 %v536
        %v905 = vunpack.c.h.s8.bf16 %v537
        %v906 = vunpack.c.l.s8.bf16 %v538
        %v907 = vunpack.c.l.s8.bf16 %v539
        %v908 = vunpack.c.l.s8.bf16 %v540
        %v909 = vunpack.c.l.s8.bf16 %v541
        %v910 = vunpack.c.l.s8.bf16 %v542
        %v911 = vunpack.c.l.s8.bf16 %v543
        %v912 = vunpack.c.l.s8.bf16 %v544
        %v913 = vunpack.c.l.s8.bf16 %v545
        %v914 = vunpack.c.l.s8.bf16 %v546
        %v915 = vunpack.c.l.s8.bf16 %v547
        %v916 = vunpack.c.l.s8.bf16 %v548
        %v917 = vunpack.c.l.s8.bf16 %v549
        %v918 = vunpack.c.l.s8.bf16 %v550
        %v919 = vunpack.c.l.s8.bf16 %v551
        %v920 = vunpack.c.l.s8.bf16 %v552
        %v921 = vunpack.c.l.s8.bf16 %v553
        %v922 = vunpack.c.h.s8.bf16 %v538
        %v923 = vunpack.c.h.s8.bf16 %v539
        %v924 = vunpack.c.h.s8.bf16 %v540
        %v925 = vunpack.c.h.s8.bf16 %v541
        %v926 = vunpack.c.h.s8.bf16 %v542
        %v927 = vunpack.c.h.s8.bf16 %v543
        %v928 = vunpack.c.h.s8.bf16 %v544
        %v929 = vunpack.c.h.s8.bf16 %v545
        %v930 = vunpack.c.h.s8.bf16 %v546
        %v931 = vunpack.c.h.s8.bf16 %v547
        %v932 = vunpack.c.h.s8.bf16 %v548
        %v933 = vunpack.c.h.s8.bf16 %v549
        %v934 = vunpack.c.h.s8.bf16 %v550
        %v935 = vunpack.c.h.s8.bf16 %v551
        %v936 = vunpack.c.h.s8.bf16 %v552
        %v937 = vunpack.c.h.s8.bf16 %v553
        %v938 = vunpack.c.l.s8.bf16 %v554
        %v939 = vunpack.c.l.s8.bf16 %v555
        %v940 = vunpack.c.l.s8.bf16 %v556
        %v941 = vunpack.c.l.s8.bf16 %v557
        %v942 = vunpack.c.l.s8.bf16 %v558
        %v943 = vunpack.c.l.s8.bf16 %v559
        %v944 = vunpack.c.l.s8.bf16 %v560
        %v945 = vunpack.c.l.s8.bf16 %v561
        %v946 = vunpack.c.l.s8.bf16 %v562
        %v947 = vunpack.c.l.s8.bf16 %v563
        %v948 = vunpack.c.l.s8.bf16 %v564
        %v949 = vunpack.c.l.s8.bf16 %v565
        %v950 = vunpack.c.l.s8.bf16 %v566
        %v951 = vunpack.c.l.s8.bf16 %v567
        %v952 = vunpack.c.l.s8.bf16 %v568
        %v953 = vunpack.c.l.s8.bf16 %v569
        %v954 = vunpack.c.h.s8.bf16 %v554
        %v955 = vunpack.c.h.s8.bf16 %v555
        %v956 = vunpack.c.h.s8.bf16 %v556
        %v957 = vunpack.c.h.s8.bf16 %v557
        %v958 = vunpack.c.h.s8.bf16 %v558
        %v959 = vunpack.c.h.s8.bf16 %v559
        %v960 = vunpack.c.h.s8.bf16 %v560
        %v961 = vunpack.c.h.s8.bf16 %v561
        %v962 = vunpack.c.h.s8.bf16 %v562
        %v963 = vunpack.c.h.s8.bf16 %v563
        %v964 = vunpack.c.h.s8.bf16 %v564
        %v965 = vunpack.c.h.s8.bf16 %v565
        %v966 = vunpack.c.h.s8.bf16 %v566
        %v967 = vunpack.c.h.s8.bf16 %v567
        %v968 = vunpack.c.h.s8.bf16 %v568
        %v969 = vunpack.c.h.s8.bf16 %v569
        %v970 = vunpack.c.l.s8.bf16 %v570
        %v971 = vunpack.c.l.s8.bf16 %v571
        %v972 = vunpack.c.l.s8.bf16 %v572
        %v973 = vunpack.c.l.s8.bf16 %v573
        %v974 = vunpack.c.l.s8.bf16 %v574
        %v975 = vunpack.c.l.s8.bf16 %v575
        %v976 = vunpack.c.l.s8.bf16 %v576
        %v977 = vunpack.c.l.s8.bf16 %v577
        %v978 = vunpack.c.l.s8.bf16 %v578
        %v979 = vunpack.c.l.s8.bf16 %v579
        %v980 = vunpack.c.l.s8.bf16 %v580
        %v981 = vunpack.c.l.s8.bf16 %v581
        %v982 = vunpack.c.l.s8.bf16 %v582
        %v983 = vunpack.c.l.s8.bf16 %v583
        %v984 = vunpack.c.l.s8.bf16 %v584
        %v985 = vunpack.c.l.s8.bf16 %v585
        %v986 = vunpack.c.h.s8.bf16 %v570
        %v987 = vunpack.c.h.s8.bf16 %v571
        %v988 = vunpack.c.h.s8.bf16 %v572
        %v989 = vunpack.c.h.s8.bf16 %v573
        %v990 = vunpack.c.h.s8.bf16 %v574
        %v991 = vunpack.c.h.s8.bf16 %v575
        %v992 = vunpack.c.h.s8.bf16 %v576
        %v993 = vunpack.c.h.s8.bf16 %v577
        %v994 = vunpack.c.h.s8.bf16 %v578
        %v995 = vunpack.c.h.s8.bf16 %v579
        %v996 = vunpack.c.h.s8.bf16 %v580
        %v997 = vunpack.c.h.s8.bf16 %v581
        %v998 = vunpack.c.h.s8.bf16 %v582
        %v999 = vunpack.c.h.s8.bf16 %v583
        %v1000 = vunpack.c.h.s8.bf16 %v584
        %v1001 = vunpack.c.h.s8.bf16 %v585
        %v1002 = vunpack.c.l.s8.bf16 %v586
        %v1003 = vunpack.c.l.s8.bf16 %v587
        %v1004 = vunpack.c.l.s8.bf16 %v588
        %v1005 = vunpack.c.l.s8.bf16 %v589
        %v1006 = vunpack.c.l.s8.bf16 %v590
        %v1007 = vunpack.c.l.s8.bf16 %v591
        %v1008 = vunpack.c.l.s8.bf16 %v592
        %v1009 = vunpack.c.l.s8.bf16 %v593
        %v1010 = vunpack.c.l.s8.bf16 %v594
        %v1011 = vunpack.c.l.s8.bf16 %v595
        %v1012 = vunpack.c.l.s8.bf16 %v596
        %v1013 = vunpack.c.l.s8.bf16 %v597
        %v1014 = vunpack.c.l.s8.bf16 %v598
        %v1015 = vunpack.c.l.s8.bf16 %v599
        %v1016 = vunpack.c.l.s8.bf16 %v600
        %v1017 = vunpack.c.l.s8.bf16 %v601
        %v1018 = vunpack.c.h.s8.bf16 %v586
        %v1019 = vunpack.c.h.s8.bf16 %v587
        %v1020 = vunpack.c.h.s8.bf16 %v588
        %v1021 = vunpack.c.h.s8.bf16 %v589
        %v1022 = vunpack.c.h.s8.bf16 %v590
        %v1023 = vunpack.c.h.s8.bf16 %v591
        %v1024 = vunpack.c.h.s8.bf16 %v592
        %v1025 = vunpack.c.h.s8.bf16 %v593
        %v1026 = vunpack.c.h.s8.bf16 %v594
        %v1027 = vunpack.c.h.s8.bf16 %v595
        %v1028 = vunpack.c.h.s8.bf16 %v596
        %v1029 = vunpack.c.h.s8.bf16 %v597
        %v1030 = vunpack.c.h.s8.bf16 %v598
        %v1031 = vunpack.c.h.s8.bf16 %v599
        %v1032 = vunpack.c.h.s8.bf16 %v600
        %v1033 = vunpack.c.h.s8.bf16 %v601
        %v1034 = vunpack.c.l.s8.bf16 %v602
        %v1035 = vunpack.c.l.s8.bf16 %v603
        %v1036 = vunpack.c.l.s8.bf16 %v604
        %v1037 = vunpack.c.l.s8.bf16 %v605
        %v1038 = vunpack.c.l.s8.bf16 %v606
        %v1039 = vunpack.c.l.s8.bf16 %v607
        %v1040 = vunpack.c.l.s8.bf16 %v608
        %v1041 = vunpack.c.l.s8.bf16 %v609
        %v1042 = vunpack.c.l.s8.bf16 %v610
        %v1043 = vunpack.c.l.s8.bf16 %v611
        %v1044 = vunpack.c.l.s8.bf16 %v612
        %v1045 = vunpack.c.l.s8.bf16 %v613
        %v1046 = vunpack.c.l.s8.bf16 %v614
        %v1047 = vunpack.c.l.s8.bf16 %v615
        %v1048 = vunpack.c.l.s8.bf16 %v616
        %v1049 = vunpack.c.l.s8.bf16 %v617
        %v1050 = vunpack.c.h.s8.bf16 %v602
        %v1051 = vunpack.c.h.s8.bf16 %v603
        %v1052 = vunpack.c.h.s8.bf16 %v604
        %v1053 = vunpack.c.h.s8.bf16 %v605
        %v1054 = vunpack.c.h.s8.bf16 %v606
        %v1055 = vunpack.c.h.s8.bf16 %v607
        %v1056 = vunpack.c.h.s8.bf16 %v608
        %v1057 = vunpack.c.h.s8.bf16 %v609
        %v1058 = vunpack.c.h.s8.bf16 %v610
        %v1059 = vunpack.c.h.s8.bf16 %v611
        %v1060 = vunpack.c.h.s8.bf16 %v612
        %v1061 = vunpack.c.h.s8.bf16 %v613
        %v1062 = vunpack.c.h.s8.bf16 %v614
        %v1063 = vunpack.c.h.s8.bf16 %v615
        %v1064 = vunpack.c.h.s8.bf16 %v616
        %v1065 = vunpack.c.h.s8.bf16 %v617
        %v1066 = vunpack.c.l.s8.bf16 %v618
        %v1067 = vunpack.c.l.s8.bf16 %v619
        %v1068 = vunpack.c.l.s8.bf16 %v620
        %v1069 = vunpack.c.l.s8.bf16 %v621
        %v1070 = vunpack.c.l.s8.bf16 %v622
        %v1071 = vunpack.c.l.s8.bf16 %v623
        %v1072 = vunpack.c.l.s8.bf16 %v624
        %v1073 = vunpack.c.l.s8.bf16 %v625
        %v1074 = vunpack.c.l.s8.bf16 %v626
        %v1075 = vunpack.c.l.s8.bf16 %v627
        %v1076 = vunpack.c.l.s8.bf16 %v628
        %v1077 = vunpack.c.l.s8.bf16 %v629
        %v1078 = vunpack.c.l.s8.bf16 %v630
        %v1079 = vunpack.c.l.s8.bf16 %v631
        %v1080 = vunpack.c.l.s8.bf16 %v632
        %v1081 = vunpack.c.l.s8.bf16 %v633
        %v1082 = vunpack.c.h.s8.bf16 %v618
        %v1083 = vunpack.c.h.s8.bf16 %v619
        %v1084 = vunpack.c.h.s8.bf16 %v620
        %v1085 = vunpack.c.h.s8.bf16 %v621
        %v1086 = vunpack.c.h.s8.bf16 %v622
        %v1087 = vunpack.c.h.s8.bf16 %v623
        %v1088 = vunpack.c.h.s8.bf16 %v624
        %v1089 = vunpack.c.h.s8.bf16 %v625
        %v1090 = vunpack.c.h.s8.bf16 %v626
        %v1091 = vunpack.c.h.s8.bf16 %v627
        %v1092 = vunpack.c.h.s8.bf16 %v628
        %v1093 = vunpack.c.h.s8.bf16 %v629
        %v1094 = vunpack.c.h.s8.bf16 %v630
        %v1095 = vunpack.c.h.s8.bf16 %v631
        %v1096 = vunpack.c.h.s8.bf16 %v632
        %v1097 = vunpack.c.h.s8.bf16 %v633
        %v1098 = vunpack.c.l.s8.bf16 %v634
        %v1099 = vunpack.c.l.s8.bf16 %v635
        %v1100 = vunpack.c.l.s8.bf16 %v636
        %v1101 = vunpack.c.l.s8.bf16 %v637
        %v1102 = vunpack.c.l.s8.bf16 %v638
        %v1103 = vunpack.c.l.s8.bf16 %v639
        %v1104 = vunpack.c.l.s8.bf16 %v640
        %v1105 = vunpack.c.l.s8.bf16 %v641
        %v1106 = vunpack.c.l.s8.bf16 %v642
        %v1107 = vunpack.c.l.s8.bf16 %v643
        %v1108 = vunpack.c.l.s8.bf16 %v644
        %v1109 = vunpack.c.l.s8.bf16 %v645
        %v1110 = vunpack.c.l.s8.bf16 %v646
        %v1111 = vunpack.c.l.s8.bf16 %v647
        %v1112 = vunpack.c.l.s8.bf16 %v648
        %v1113 = vunpack.c.l.s8.bf16 %v649
        %v1114 = vunpack.c.h.s8.bf16 %v634
        %v1115 = vunpack.c.h.s8.bf16 %v635
        %v1116 = vunpack.c.h.s8.bf16 %v636
        %v1117 = vunpack.c.h.s8.bf16 %v637
        %v1118 = vunpack.c.h.s8.bf16 %v638
        %v1119 = vunpack.c.h.s8.bf16 %v639
        %v1120 = vunpack.c.h.s8.bf16 %v640
        %v1121 = vunpack.c.h.s8.bf16 %v641
        %v1122 = vunpack.c.h.s8.bf16 %v642
        %v1123 = vunpack.c.h.s8.bf16 %v643
        %v1124 = vunpack.c.h.s8.bf16 %v644
        %v1125 = vunpack.c.h.s8.bf16 %v645
        %v1126 = vunpack.c.h.s8.bf16 %v646
        %v1127 = vunpack.c.h.s8.bf16 %v647
        %v1128 = vunpack.c.h.s8.bf16 %v648
        %v1129 = vunpack.c.h.s8.bf16 %v649
        %v1130 = vunpack.c.l.s8.bf16 %v650
        %v1131 = vunpack.c.l.s8.bf16 %v651
        %v1132 = vunpack.c.l.s8.bf16 %v652
        %v1133 = vunpack.c.l.s8.bf16 %v653
        %v1134 = vunpack.c.l.s8.bf16 %v654
        %v1135 = vunpack.c.l.s8.bf16 %v655
        %v1136 = vunpack.c.l.s8.bf16 %v656
        %v1137 = vunpack.c.l.s8.bf16 %v657
        %v1138 = vunpack.c.l.s8.bf16 %v658
        %v1139 = vunpack.c.l.s8.bf16 %v659
        %v1140 = vunpack.c.l.s8.bf16 %v660
        %v1141 = vunpack.c.l.s8.bf16 %v661
        %v1142 = vunpack.c.l.s8.bf16 %v662
        %v1143 = vunpack.c.l.s8.bf16 %v663
        %v1144 = vunpack.c.l.s8.bf16 %v664
        %v1145 = vunpack.c.l.s8.bf16 %v665
        %v1146 = vunpack.c.h.s8.bf16 %v650
        %v1147 = vunpack.c.h.s8.bf16 %v651
        %v1148 = vunpack.c.h.s8.bf16 %v652
        %v1149 = vunpack.c.h.s8.bf16 %v653
        %v1150 = vunpack.c.h.s8.bf16 %v654
        %v1151 = vunpack.c.h.s8.bf16 %v655
        %v1152 = vunpack.c.h.s8.bf16 %v656
        %v1153 = vunpack.c.h.s8.bf16 %v657
        %v1154 = vunpack.c.h.s8.bf16 %v658
        %v1155 = vunpack.c.h.s8.bf16 %v659
        %v1156 = vunpack.c.h.s8.bf16 %v660
        %v1157 = vunpack.c.h.s8.bf16 %v661
        %v1158 = vunpack.c.h.s8.bf16 %v662
        %v1159 = vunpack.c.h.s8.bf16 %v663
        %v1160 = vunpack.c.h.s8.bf16 %v664
        %v1161 = vunpack.c.h.s8.bf16 %v665
        %v1162 = vunpack.c.l.s8.bf16 %v666
        %v1163 = vunpack.c.l.s8.bf16 %v667
        %v1164 = vunpack.c.l.s8.bf16 %v668
        %v1165 = vunpack.c.l.s8.bf16 %v669
        %v1166 = vunpack.c.l.s8.bf16 %v670
        %v1167 = vunpack.c.l.s8.bf16 %v671
        %v1168 = vunpack.c.l.s8.bf16 %v672
        %v1169 = vunpack.c.l.s8.bf16 %v673
        %v1170 = vunpack.c.l.s8.bf16 %v674
        %v1171 = vunpack.c.l.s8.bf16 %v675
        %v1172 = vunpack.c.l.s8.bf16 %v676
        %v1173 = vunpack.c.l.s8.bf16 %v677
        %v1174 = vunpack.c.l.s8.bf16 %v678
        %v1175 = vunpack.c.l.s8.bf16 %v679
        %v1176 = vunpack.c.l.s8.bf16 %v680
        %v1177 = vunpack.c.l.s8.bf16 %v681
        %v1178 = vunpack.c.h.s8.bf16 %v666
        %v1179 = vunpack.c.h.s8.bf16 %v667
        %v1180 = vunpack.c.h.s8.bf16 %v668
        %v1181 = vunpack.c.h.s8.bf16 %v669
        %v1182 = vunpack.c.h.s8.bf16 %v670
        %v1183 = vunpack.c.h.s8.bf16 %v671
        %v1184 = vunpack.c.h.s8.bf16 %v672
        %v1185 = vunpack.c.h.s8.bf16 %v673
        %v1186 = vunpack.c.h.s8.bf16 %v674
        %v1187 = vunpack.c.h.s8.bf16 %v675
        %v1188 = vunpack.c.h.s8.bf16 %v676
        %v1189 = vunpack.c.h.s8.bf16 %v677
        %v1190 = vunpack.c.h.s8.bf16 %v678
        %v1191 = vunpack.c.h.s8.bf16 %v679
        %v1192 = vunpack.c.h.s8.bf16 %v680
        %v1193 = vunpack.c.h.s8.bf16 %v681
        %v1194 = vld [vmem:[%s374] sm:$0xff]
        %v1195 = vld [vmem:[%s374 + $0x8] sm:$0xff]
        %v1196 = vld [vmem:[%s374 + $0x10] sm:$0xff]
        %v1197 = vld [vmem:[%s374 + $0x18] sm:$0xff]
        %v1198 = vld [vmem:[%s374 + $0x20] sm:$0xff]
        %v1199 = vld [vmem:[%s374 + $0x28] sm:$0xff]
        %v1200 = vld [vmem:[%s374 + $0x30] sm:$0xff]
        %v1201 = vld [vmem:[%s374 + $0x38] sm:$0xff]
        %v1202 = vld [vmem:[%s374 + $0x40] sm:$0xff]
        %v1203 = vld [vmem:[%s374 + $0x48] sm:$0xff]
        %v1204 = vld [vmem:[%s374 + $0x50] sm:$0xff]
        %v1205 = vld [vmem:[%s374 + $0x58] sm:$0xff]
        %v1206 = vld [vmem:[%s374 + $0x60] sm:$0xff]
        %v1207 = vld [vmem:[%s374 + $0x68] sm:$0xff]
        %v1208 = vld [vmem:[%s374 + $0x70] sm:$0xff]
        %v1209 = vld [vmem:[%s374 + $0x78] sm:$0xff]
        %v1210 = vld [vmem:[%s374 + $0x80] sm:$0xff]
        %v1211 = vld [vmem:[%s374 + $0x88] sm:$0xff]
        %v1212 = vld [vmem:[%s374 + $0x90] sm:$0xff]
        %v1213 = vld [vmem:[%s374 + $0x98] sm:$0xff]
        %v1214 = vld [vmem:[%s374 + $0xa0] sm:$0xff]
        %v1215 = vld [vmem:[%s374 + $0xa8] sm:$0xff]
        %v1216 = vld [vmem:[%s374 + $0xb0] sm:$0xff]
        %v1217 = vld [vmem:[%s374 + $0xb8] sm:$0xff]
        %v1218 = vld [vmem:[%s374 + $0xc0] sm:$0xff]
        %v1219 = vld [vmem:[%s374 + $0xc8] sm:$0xff]
        %v1220 = vld [vmem:[%s374 + $0xd0] sm:$0xff]
        %v1221 = vld [vmem:[%s374 + $0xd8] sm:$0xff]
        %v1222 = vld [vmem:[%s374 + $0xe0] sm:$0xff]
        %v1223 = vld [vmem:[%s374 + $0xe8] sm:$0xff]
        %v1224 = vld [vmem:[%s374 + $0xf0] sm:$0xff]
        %v1225 = vld [vmem:[%s374 + $0xf8] sm:$0xff]
        %v1226 = vld [vmem:[%s374 + $0x100] sm:$0xff]
        %v1227 = vld [vmem:[%s374 + $0x108] sm:$0xff]
        %v1228 = vld [vmem:[%s374 + $0x110] sm:$0xff]
        %v1229 = vld [vmem:[%s374 + $0x118] sm:$0xff]
        %v1230 = vld [vmem:[%s374 + $0x120] sm:$0xff]
        %v1231 = vld [vmem:[%s374 + $0x128] sm:$0xff]
        %v1232 = vld [vmem:[%s374 + $0x130] sm:$0xff]
        %v1233 = vld [vmem:[%s374 + $0x138] sm:$0xff]
        %v1234 = vld [vmem:[%s374 + $0x140] sm:$0xff]
        %v1235 = vld [vmem:[%s374 + $0x148] sm:$0xff]
        %v1236 = vld [vmem:[%s374 + $0x150] sm:$0xff]
        %v1237 = vld [vmem:[%s374 + $0x158] sm:$0xff]
        %v1238 = vld [vmem:[%s374 + $0x160] sm:$0xff]
        %v1239 = vld [vmem:[%s374 + $0x168] sm:$0xff]
        %v1240 = vld [vmem:[%s374 + $0x170] sm:$0xff]
        %v1241 = vld [vmem:[%s374 + $0x178] sm:$0xff]
        %v1242 = vld [vmem:[%s374 + $0x180] sm:$0xff]
        %v1243 = vld [vmem:[%s374 + $0x188] sm:$0xff]
        %v1244 = vld [vmem:[%s374 + $0x190] sm:$0xff]
        %v1245 = vld [vmem:[%s374 + $0x198] sm:$0xff]
        %v1246 = vld [vmem:[%s374 + $0x1a0] sm:$0xff]
        %v1247 = vld [vmem:[%s374 + $0x1a8] sm:$0xff]
        %v1248 = vld [vmem:[%s374 + $0x1b0] sm:$0xff]
        %v1249 = vld [vmem:[%s374 + $0x1b8] sm:$0xff]
        %v1250 = vld [vmem:[%s374 + $0x1c0] sm:$0xff]
        %v1251 = vld [vmem:[%s374 + $0x1c8] sm:$0xff]
        %v1252 = vld [vmem:[%s374 + $0x1d0] sm:$0xff]
        %v1253 = vld [vmem:[%s374 + $0x1d8] sm:$0xff]
        %v1254 = vld [vmem:[%s374 + $0x1e0] sm:$0xff]
        %v1255 = vld [vmem:[%s374 + $0x1e8] sm:$0xff]
        %v1256 = vld [vmem:[%s374 + $0x1f0] sm:$0xff]
        %v1257 = vld [vmem:[%s374 + $0x1f8] sm:$0xff]
        %v1258 = vld [vmem:[%s374 + $0x200] sm:$0xff]
        %v1259 = vld [vmem:[%s374 + $0x208] sm:$0xff]
        %v1260 = vld [vmem:[%s374 + $0x210] sm:$0xff]
        %v1261 = vld [vmem:[%s374 + $0x218] sm:$0xff]
        %v1262 = vld [vmem:[%s374 + $0x220] sm:$0xff]
        %v1263 = vld [vmem:[%s374 + $0x228] sm:$0xff]
        %v1264 = vld [vmem:[%s374 + $0x230] sm:$0xff]
        %v1265 = vld [vmem:[%s374 + $0x238] sm:$0xff]
        %v1266 = vld [vmem:[%s374 + $0x240] sm:$0xff]
        %v1267 = vld [vmem:[%s374 + $0x248] sm:$0xff]
        %v1268 = vld [vmem:[%s374 + $0x250] sm:$0xff]
        %v1269 = vld [vmem:[%s374 + $0x258] sm:$0xff]
        %v1270 = vld [vmem:[%s374 + $0x260] sm:$0xff]
        %v1271 = vld [vmem:[%s374 + $0x268] sm:$0xff]
        %v1272 = vld [vmem:[%s374 + $0x270] sm:$0xff]
        %v1273 = vld [vmem:[%s374 + $0x278] sm:$0xff]
        %v1274 = vld [vmem:[%s374 + $0x280] sm:$0xff]
        %v1275 = vld [vmem:[%s374 + $0x288] sm:$0xff]
        %v1276 = vld [vmem:[%s374 + $0x290] sm:$0xff]
        %v1277 = vld [vmem:[%s374 + $0x298] sm:$0xff]
        %v1278 = vld [vmem:[%s374 + $0x2a0] sm:$0xff]
        %v1279 = vld [vmem:[%s374 + $0x2a8] sm:$0xff]
        %v1280 = vld [vmem:[%s374 + $0x2b0] sm:$0xff]
        %v1281 = vld [vmem:[%s374 + $0x2b8] sm:$0xff]
        %v1282 = vld [vmem:[%s374 + $0x2c0] sm:$0xff]
        %v1283 = vld [vmem:[%s374 + $0x2c8] sm:$0xff]
        %v1284 = vld [vmem:[%s374 + $0x2d0] sm:$0xff]
        %v1285 = vld [vmem:[%s374 + $0x2d8] sm:$0xff]
        %v1286 = vld [vmem:[%s374 + $0x2e0] sm:$0xff]
        %v1287 = vld [vmem:[%s374 + $0x2e8] sm:$0xff]
        %v1288 = vld [vmem:[%s374 + $0x2f0] sm:$0xff]
        %v1289 = vld [vmem:[%s374 + $0x2f8] sm:$0xff]
        %v1290 = vld [vmem:[%s374 + $0x300] sm:$0xff]
        %v1291 = vld [vmem:[%s374 + $0x308] sm:$0xff]
        %v1292 = vld [vmem:[%s374 + $0x310] sm:$0xff]
        %v1293 = vld [vmem:[%s374 + $0x318] sm:$0xff]
        %v1294 = vld [vmem:[%s374 + $0x320] sm:$0xff]
        %v1295 = vld [vmem:[%s374 + $0x328] sm:$0xff]
        %v1296 = vld [vmem:[%s374 + $0x330] sm:$0xff]
        %v1297 = vld [vmem:[%s374 + $0x338] sm:$0xff]
        %v1298 = vld [vmem:[%s374 + $0x340] sm:$0xff]
        %v1299 = vld [vmem:[%s374 + $0x348] sm:$0xff]
        %v1300 = vld [vmem:[%s374 + $0x350] sm:$0xff]
        %v1301 = vld [vmem:[%s374 + $0x358] sm:$0xff]
        %v1302 = vld [vmem:[%s374 + $0x360] sm:$0xff]
        %v1303 = vld [vmem:[%s374 + $0x368] sm:$0xff]
        %v1304 = vld [vmem:[%s374 + $0x370] sm:$0xff]
        %v1305 = vld [vmem:[%s374 + $0x378] sm:$0xff]
        %v1306 = vld [vmem:[%s374 + $0x380] sm:$0xff]
        %v1307 = vld [vmem:[%s374 + $0x388] sm:$0xff]
        %v1308 = vld [vmem:[%s374 + $0x390] sm:$0xff]
        %v1309 = vld [vmem:[%s374 + $0x398] sm:$0xff]
        %v1310 = vld [vmem:[%s374 + $0x3a0] sm:$0xff]
        %v1311 = vld [vmem:[%s374 + $0x3a8] sm:$0xff]
        %v1312 = vld [vmem:[%s374 + $0x3b0] sm:$0xff]
        %v1313 = vld [vmem:[%s374 + $0x3b8] sm:$0xff]
        %v1314 = vld [vmem:[%s374 + $0x3c0] sm:$0xff]
        %v1315 = vld [vmem:[%s374 + $0x3c8] sm:$0xff]
        %v1316 = vld [vmem:[%s374 + $0x3d0] sm:$0xff]
        %v1317 = vld [vmem:[%s374 + $0x3d8] sm:$0xff]
        %v1318 = vld [vmem:[%s374 + $0x3e0] sm:$0xff]
        %v1319 = vld [vmem:[%s374 + $0x3e8] sm:$0xff]
        %v1320 = vld [vmem:[%s374 + $0x3f0] sm:$0xff]
        %v1321 = vld [vmem:[%s374 + $0x3f8] sm:$0xff]
        %v1322 = vld [vmem:[%s374 + $0x400] sm:$0xff]
        %v1323 = vld [vmem:[%s374 + $0x408] sm:$0xff]
        %v1324 = vld [vmem:[%s374 + $0x410] sm:$0xff]
        %v1325 = vld [vmem:[%s374 + $0x418] sm:$0xff]
        %v1326 = vld [vmem:[%s374 + $0x420] sm:$0xff]
        %v1327 = vld [vmem:[%s374 + $0x428] sm:$0xff]
        %v1328 = vld [vmem:[%s374 + $0x430] sm:$0xff]
        %v1329 = vld [vmem:[%s374 + $0x438] sm:$0xff]
        %v1330 = vld [vmem:[%s374 + $0x440] sm:$0xff]
        %v1331 = vld [vmem:[%s374 + $0x448] sm:$0xff]
        %v1332 = vld [vmem:[%s374 + $0x450] sm:$0xff]
        %v1333 = vld [vmem:[%s374 + $0x458] sm:$0xff]
        %v1334 = vld [vmem:[%s374 + $0x460] sm:$0xff]
        %v1335 = vld [vmem:[%s374 + $0x468] sm:$0xff]
        %v1336 = vld [vmem:[%s374 + $0x470] sm:$0xff]
        %v1337 = vld [vmem:[%s374 + $0x478] sm:$0xff]
        %v1338 = vld [vmem:[%s374 + $0x480] sm:$0xff]
        %v1339 = vld [vmem:[%s374 + $0x488] sm:$0xff]
        %v1340 = vld [vmem:[%s374 + $0x490] sm:$0xff]
        %v1341 = vld [vmem:[%s374 + $0x498] sm:$0xff]
        %v1342 = vld [vmem:[%s374 + $0x4a0] sm:$0xff]
        %v1343 = vld [vmem:[%s374 + $0x4a8] sm:$0xff]
        %v1344 = vld [vmem:[%s374 + $0x4b0] sm:$0xff]
        %v1345 = vld [vmem:[%s374 + $0x4b8] sm:$0xff]
        %v1346 = vld [vmem:[%s374 + $0x4c0] sm:$0xff]
        %v1347 = vld [vmem:[%s374 + $0x4c8] sm:$0xff]
        %v1348 = vld [vmem:[%s374 + $0x4d0] sm:$0xff]
        %v1349 = vld [vmem:[%s374 + $0x4d8] sm:$0xff]
        %v1350 = vld [vmem:[%s374 + $0x4e0] sm:$0xff]
        %v1351 = vld [vmem:[%s374 + $0x4e8] sm:$0xff]
        %v1352 = vld [vmem:[%s374 + $0x4f0] sm:$0xff]
        %v1353 = vld [vmem:[%s374 + $0x4f8] sm:$0xff]
        %v1354 = vld [vmem:[%s374 + $0x500] sm:$0xff]
        %v1355 = vld [vmem:[%s374 + $0x508] sm:$0xff]
        %v1356 = vld [vmem:[%s374 + $0x510] sm:$0xff]
        %v1357 = vld [vmem:[%s374 + $0x518] sm:$0xff]
        %v1358 = vld [vmem:[%s374 + $0x520] sm:$0xff]
        %v1359 = vld [vmem:[%s374 + $0x528] sm:$0xff]
        %v1360 = vld [vmem:[%s374 + $0x530] sm:$0xff]
        %v1361 = vld [vmem:[%s374 + $0x538] sm:$0xff]
        %v1362 = vld [vmem:[%s374 + $0x540] sm:$0xff]
        %v1363 = vld [vmem:[%s374 + $0x548] sm:$0xff]
        %v1364 = vld [vmem:[%s374 + $0x550] sm:$0xff]
        %v1365 = vld [vmem:[%s374 + $0x558] sm:$0xff]
        %v1366 = vld [vmem:[%s374 + $0x560] sm:$0xff]
        %v1367 = vld [vmem:[%s374 + $0x568] sm:$0xff]
        %v1368 = vld [vmem:[%s374 + $0x570] sm:$0xff]
        %v1369 = vld [vmem:[%s374 + $0x578] sm:$0xff]
        %v1370 = vld [vmem:[%s374 + $0x580] sm:$0xff]
        %v1371 = vld [vmem:[%s374 + $0x588] sm:$0xff]
        %v1372 = vld [vmem:[%s374 + $0x590] sm:$0xff]
        %v1373 = vld [vmem:[%s374 + $0x598] sm:$0xff]
        %v1374 = vld [vmem:[%s374 + $0x5a0] sm:$0xff]
        %v1375 = vld [vmem:[%s374 + $0x5a8] sm:$0xff]
        %v1376 = vld [vmem:[%s374 + $0x5b0] sm:$0xff]
        %v1377 = vld [vmem:[%s374 + $0x5b8] sm:$0xff]
        %v1378 = vld [vmem:[%s374 + $0x5c0] sm:$0xff]
        %v1379 = vld [vmem:[%s374 + $0x5c8] sm:$0xff]
        %v1380 = vld [vmem:[%s374 + $0x5d0] sm:$0xff]
        %v1381 = vld [vmem:[%s374 + $0x5d8] sm:$0xff]
        %v1382 = vld [vmem:[%s374 + $0x5e0] sm:$0xff]
        %v1383 = vld [vmem:[%s374 + $0x5e8] sm:$0xff]
        %v1384 = vld [vmem:[%s374 + $0x5f0] sm:$0xff]
        %v1385 = vld [vmem:[%s374 + $0x5f8] sm:$0xff]
        %v1386 = vld [vmem:[%s374 + $0x600] sm:$0xff]
        %v1387 = vld [vmem:[%s374 + $0x608] sm:$0xff]
        %v1388 = vld [vmem:[%s374 + $0x610] sm:$0xff]
        %v1389 = vld [vmem:[%s374 + $0x618] sm:$0xff]
        %v1390 = vld [vmem:[%s374 + $0x620] sm:$0xff]
        %v1391 = vld [vmem:[%s374 + $0x628] sm:$0xff]
        %v1392 = vld [vmem:[%s374 + $0x630] sm:$0xff]
        %v1393 = vld [vmem:[%s374 + $0x638] sm:$0xff]
        %v1394 = vld [vmem:[%s374 + $0x640] sm:$0xff]
        %v1395 = vld [vmem:[%s374 + $0x648] sm:$0xff]
        %v1396 = vld [vmem:[%s374 + $0x650] sm:$0xff]
        %v1397 = vld [vmem:[%s374 + $0x658] sm:$0xff]
        %v1398 = vld [vmem:[%s374 + $0x660] sm:$0xff]
        %v1399 = vld [vmem:[%s374 + $0x668] sm:$0xff]
        %v1400 = vld [vmem:[%s374 + $0x670] sm:$0xff]
        %v1401 = vld [vmem:[%s374 + $0x678] sm:$0xff]
        %v1402 = vld [vmem:[%s374 + $0x680] sm:$0xff]
        %v1403 = vld [vmem:[%s374 + $0x688] sm:$0xff]
        %v1404 = vld [vmem:[%s374 + $0x690] sm:$0xff]
        %v1405 = vld [vmem:[%s374 + $0x698] sm:$0xff]
        %v1406 = vld [vmem:[%s374 + $0x6a0] sm:$0xff]
        %v1407 = vld [vmem:[%s374 + $0x6a8] sm:$0xff]
        %v1408 = vld [vmem:[%s374 + $0x6b0] sm:$0xff]
        %v1409 = vld [vmem:[%s374 + $0x6b8] sm:$0xff]
        %v1410 = vld [vmem:[%s374 + $0x6c0] sm:$0xff]
        %v1411 = vld [vmem:[%s374 + $0x6c8] sm:$0xff]
        %v1412 = vld [vmem:[%s374 + $0x6d0] sm:$0xff]
        %v1413 = vld [vmem:[%s374 + $0x6d8] sm:$0xff]
        %v1414 = vld [vmem:[%s374 + $0x6e0] sm:$0xff]
        %v1415 = vld [vmem:[%s374 + $0x6e8] sm:$0xff]
        %v1416 = vld [vmem:[%s374 + $0x6f0] sm:$0xff]
        %v1417 = vld [vmem:[%s374 + $0x6f8] sm:$0xff]
        %v1418 = vld [vmem:[%s374 + $0x700] sm:$0xff]
        %v1419 = vld [vmem:[%s374 + $0x708] sm:$0xff]
        %v1420 = vld [vmem:[%s374 + $0x710] sm:$0xff]
        %v1421 = vld [vmem:[%s374 + $0x718] sm:$0xff]
        %v1422 = vld [vmem:[%s374 + $0x720] sm:$0xff]
        %v1423 = vld [vmem:[%s374 + $0x728] sm:$0xff]
        %v1424 = vld [vmem:[%s374 + $0x730] sm:$0xff]
        %v1425 = vld [vmem:[%s374 + $0x738] sm:$0xff]
        %v1426 = vld [vmem:[%s374 + $0x740] sm:$0xff]
        %v1427 = vld [vmem:[%s374 + $0x748] sm:$0xff]
        %v1428 = vld [vmem:[%s374 + $0x750] sm:$0xff]
        %v1429 = vld [vmem:[%s374 + $0x758] sm:$0xff]
        %v1430 = vld [vmem:[%s374 + $0x760] sm:$0xff]
        %v1431 = vld [vmem:[%s374 + $0x768] sm:$0xff]
        %v1432 = vld [vmem:[%s374 + $0x770] sm:$0xff]
        %v1433 = vld [vmem:[%s374 + $0x778] sm:$0xff]
        %v1434 = vld [vmem:[%s374 + $0x780] sm:$0xff]
        %v1435 = vld [vmem:[%s374 + $0x788] sm:$0xff]
        %v1436 = vld [vmem:[%s374 + $0x790] sm:$0xff]
        %v1437 = vld [vmem:[%s374 + $0x798] sm:$0xff]
        %v1438 = vld [vmem:[%s374 + $0x7a0] sm:$0xff]
        %v1439 = vld [vmem:[%s374 + $0x7a8] sm:$0xff]
        %v1440 = vld [vmem:[%s374 + $0x7b0] sm:$0xff]
        %v1441 = vld [vmem:[%s374 + $0x7b8] sm:$0xff]
        %v1442 = vld [vmem:[%s374 + $0x7c0] sm:$0xff]
        %v1443 = vld [vmem:[%s374 + $0x7c8] sm:$0xff]
        %v1444 = vld [vmem:[%s374 + $0x7d0] sm:$0xff]
        %v1445 = vld [vmem:[%s374 + $0x7d8] sm:$0xff]
        %v1446 = vld [vmem:[%s374 + $0x7e0] sm:$0xff]
        %v1447 = vld [vmem:[%s374 + $0x7e8] sm:$0xff]
        %v1448 = vld [vmem:[%s374 + $0x7f0] sm:$0xff]
        %v1449 = vld [vmem:[%s374 + $0x7f8] sm:$0xff]
        %v1450 = vunpack.c.l.s8.bf16 %v1194
        %v1451 = vunpack.c.l.s8.bf16 %v1195
        %v1452 = vunpack.c.l.s8.bf16 %v1196
        %v1453 = vunpack.c.l.s8.bf16 %v1197
        %v1454 = vunpack.c.h.s8.bf16 %v1194
        %v1455 = vunpack.c.h.s8.bf16 %v1195
        %v1456 = vunpack.c.h.s8.bf16 %v1196
        %v1457 = vunpack.c.h.s8.bf16 %v1197
        %v1458 = vunpack.c.l.s8.bf16 %v1198
        %v1459 = vunpack.c.l.s8.bf16 %v1199
        %v1460 = vunpack.c.l.s8.bf16 %v1200
        %v1461 = vunpack.c.l.s8.bf16 %v1201
        %v1462 = vunpack.c.h.s8.bf16 %v1198
        %v1463 = vunpack.c.h.s8.bf16 %v1199
        %v1464 = vunpack.c.h.s8.bf16 %v1200
        %v1465 = vunpack.c.h.s8.bf16 %v1201
        %v1466 = vunpack.c.l.s8.bf16 %v1202
        %v1467 = vunpack.c.l.s8.bf16 %v1203
        %v1468 = vunpack.c.l.s8.bf16 %v1204
        %v1469 = vunpack.c.l.s8.bf16 %v1205
        %v1470 = vunpack.c.h.s8.bf16 %v1202
        %v1471 = vunpack.c.h.s8.bf16 %v1203
        %v1472 = vunpack.c.h.s8.bf16 %v1204
        %v1473 = vunpack.c.h.s8.bf16 %v1205
        %v1474 = vunpack.c.l.s8.bf16 %v1206
        %v1475 = vunpack.c.l.s8.bf16 %v1207
        %v1476 = vunpack.c.l.s8.bf16 %v1208
        %v1477 = vunpack.c.l.s8.bf16 %v1209
        %v1478 = vunpack.c.h.s8.bf16 %v1206
        %v1479 = vunpack.c.h.s8.bf16 %v1207
        %v1480 = vunpack.c.h.s8.bf16 %v1208
        %v1481 = vunpack.c.h.s8.bf16 %v1209
        %v1482 = vunpack.c.l.s8.bf16 %v1210
        %v1483 = vunpack.c.l.s8.bf16 %v1211
        %v1484 = vunpack.c.l.s8.bf16 %v1212
        %v1485 = vunpack.c.l.s8.bf16 %v1213
        %v1486 = vunpack.c.h.s8.bf16 %v1210
        %v1487 = vunpack.c.h.s8.bf16 %v1211
        %v1488 = vunpack.c.h.s8.bf16 %v1212
        %v1489 = vunpack.c.h.s8.bf16 %v1213
        %v1490 = vunpack.c.l.s8.bf16 %v1214
        %v1491 = vunpack.c.l.s8.bf16 %v1215
        %v1492 = vunpack.c.l.s8.bf16 %v1216
        %v1493 = vunpack.c.l.s8.bf16 %v1217
        %v1494 = vunpack.c.h.s8.bf16 %v1214
        %v1495 = vunpack.c.h.s8.bf16 %v1215
        %v1496 = vunpack.c.h.s8.bf16 %v1216
        %v1497 = vunpack.c.h.s8.bf16 %v1217
        %v1498 = vunpack.c.l.s8.bf16 %v1218
        %v1499 = vunpack.c.l.s8.bf16 %v1219
        %v1500 = vunpack.c.l.s8.bf16 %v1220
        %v1501 = vunpack.c.l.s8.bf16 %v1221
        %v1502 = vunpack.c.h.s8.bf16 %v1218
        %v1503 = vunpack.c.h.s8.bf16 %v1219
        %v1504 = vunpack.c.h.s8.bf16 %v1220
        %v1505 = vunpack.c.h.s8.bf16 %v1221
        %v1506 = vunpack.c.l.s8.bf16 %v1222
        %v1507 = vunpack.c.l.s8.bf16 %v1223
        %v1508 = vunpack.c.l.s8.bf16 %v1224
        %v1509 = vunpack.c.l.s8.bf16 %v1225
        %v1510 = vunpack.c.h.s8.bf16 %v1222
        %v1511 = vunpack.c.h.s8.bf16 %v1223
        %v1512 = vunpack.c.h.s8.bf16 %v1224
        %v1513 = vunpack.c.h.s8.bf16 %v1225
        %v1514 = vunpack.c.l.s8.bf16 %v1226
        %v1515 = vunpack.c.l.s8.bf16 %v1227
        %v1516 = vunpack.c.l.s8.bf16 %v1228
        %v1517 = vunpack.c.l.s8.bf16 %v1229
        %v1518 = vunpack.c.h.s8.bf16 %v1226
        %v1519 = vunpack.c.h.s8.bf16 %v1227
        %v1520 = vunpack.c.h.s8.bf16 %v1228
        %v1521 = vunpack.c.h.s8.bf16 %v1229
        %v1522 = vunpack.c.l.s8.bf16 %v1230
        %v1523 = vunpack.c.l.s8.bf16 %v1231
        %v1524 = vunpack.c.l.s8.bf16 %v1232
        %v1525 = vunpack.c.l.s8.bf16 %v1233
        %v1526 = vunpack.c.h.s8.bf16 %v1230
        %v1527 = vunpack.c.h.s8.bf16 %v1231
        %v1528 = vunpack.c.h.s8.bf16 %v1232
        %v1529 = vunpack.c.h.s8.bf16 %v1233
        %v1530 = vunpack.c.l.s8.bf16 %v1234
        %v1531 = vunpack.c.l.s8.bf16 %v1235
        %v1532 = vunpack.c.l.s8.bf16 %v1236
        %v1533 = vunpack.c.l.s8.bf16 %v1237
        %v1534 = vunpack.c.h.s8.bf16 %v1234
        %v1535 = vunpack.c.h.s8.bf16 %v1235
        %v1536 = vunpack.c.h.s8.bf16 %v1236
        %v1537 = vunpack.c.h.s8.bf16 %v1237
        %v1538 = vunpack.c.l.s8.bf16 %v1238
        %v1539 = vunpack.c.l.s8.bf16 %v1239
        %v1540 = vunpack.c.l.s8.bf16 %v1240
        %v1541 = vunpack.c.l.s8.bf16 %v1241
        %v1542 = vunpack.c.h.s8.bf16 %v1238
        %v1543 = vunpack.c.h.s8.bf16 %v1239
        %v1544 = vunpack.c.h.s8.bf16 %v1240
        %v1545 = vunpack.c.h.s8.bf16 %v1241
        %v1546 = vunpack.c.l.s8.bf16 %v1242
        %v1547 = vunpack.c.l.s8.bf16 %v1243
        %v1548 = vunpack.c.l.s8.bf16 %v1244
        %v1549 = vunpack.c.l.s8.bf16 %v1245
        %v1550 = vunpack.c.h.s8.bf16 %v1242
        %v1551 = vunpack.c.h.s8.bf16 %v1243
        %v1552 = vunpack.c.h.s8.bf16 %v1244
        %v1553 = vunpack.c.h.s8.bf16 %v1245
        %v1554 = vunpack.c.l.s8.bf16 %v1246
        %v1555 = vunpack.c.l.s8.bf16 %v1247
        %v1556 = vunpack.c.l.s8.bf16 %v1248
        %v1557 = vunpack.c.l.s8.bf16 %v1249
        %v1558 = vunpack.c.h.s8.bf16 %v1246
        %v1559 = vunpack.c.h.s8.bf16 %v1247
        %v1560 = vunpack.c.h.s8.bf16 %v1248
        %v1561 = vunpack.c.h.s8.bf16 %v1249
        %v1562 = vunpack.c.l.s8.bf16 %v1250
        %v1563 = vunpack.c.l.s8.bf16 %v1251
        %v1564 = vunpack.c.l.s8.bf16 %v1252
        %v1565 = vunpack.c.l.s8.bf16 %v1253
        %v1566 = vunpack.c.h.s8.bf16 %v1250
        %v1567 = vunpack.c.h.s8.bf16 %v1251
        %v1568 = vunpack.c.h.s8.bf16 %v1252
        %v1569 = vunpack.c.h.s8.bf16 %v1253
        %v1570 = vunpack.c.l.s8.bf16 %v1254
        %v1571 = vunpack.c.l.s8.bf16 %v1255
        %v1572 = vunpack.c.l.s8.bf16 %v1256
        %v1573 = vunpack.c.l.s8.bf16 %v1257
        %v1574 = vunpack.c.h.s8.bf16 %v1254
        %v1575 = vunpack.c.h.s8.bf16 %v1255
        %v1576 = vunpack.c.h.s8.bf16 %v1256
        %v1577 = vunpack.c.h.s8.bf16 %v1257
        %v1578 = vunpack.c.l.s8.bf16 %v1258
        %v1579 = vunpack.c.l.s8.bf16 %v1259
        %v1580 = vunpack.c.l.s8.bf16 %v1260
        %v1581 = vunpack.c.l.s8.bf16 %v1261
        %v1582 = vunpack.c.h.s8.bf16 %v1258
        %v1583 = vunpack.c.h.s8.bf16 %v1259
        %v1584 = vunpack.c.h.s8.bf16 %v1260
        %v1585 = vunpack.c.h.s8.bf16 %v1261
        %v1586 = vunpack.c.l.s8.bf16 %v1262
        %v1587 = vunpack.c.l.s8.bf16 %v1263
        %v1588 = vunpack.c.l.s8.bf16 %v1264
        %v1589 = vunpack.c.l.s8.bf16 %v1265
        %v1590 = vunpack.c.h.s8.bf16 %v1262
        %v1591 = vunpack.c.h.s8.bf16 %v1263
        %v1592 = vunpack.c.h.s8.bf16 %v1264
        %v1593 = vunpack.c.h.s8.bf16 %v1265
        %v1594 = vunpack.c.l.s8.bf16 %v1266
        %v1595 = vunpack.c.l.s8.bf16 %v1267
        %v1596 = vunpack.c.l.s8.bf16 %v1268
        %v1597 = vunpack.c.l.s8.bf16 %v1269
        %v1598 = vunpack.c.h.s8.bf16 %v1266
        %v1599 = vunpack.c.h.s8.bf16 %v1267
        %v1600 = vunpack.c.h.s8.bf16 %v1268
        %v1601 = vunpack.c.h.s8.bf16 %v1269
        %v1602 = vunpack.c.l.s8.bf16 %v1270
        %v1603 = vunpack.c.l.s8.bf16 %v1271
        %v1604 = vunpack.c.l.s8.bf16 %v1272
        %v1605 = vunpack.c.l.s8.bf16 %v1273
        %v1606 = vunpack.c.h.s8.bf16 %v1270
        %v1607 = vunpack.c.h.s8.bf16 %v1271
        %v1608 = vunpack.c.h.s8.bf16 %v1272
        %v1609 = vunpack.c.h.s8.bf16 %v1273
        %v1610 = vunpack.c.l.s8.bf16 %v1274
        %v1611 = vunpack.c.l.s8.bf16 %v1275
        %v1612 = vunpack.c.l.s8.bf16 %v1276
        %v1613 = vunpack.c.l.s8.bf16 %v1277
        %v1614 = vunpack.c.h.s8.bf16 %v1274
        %v1615 = vunpack.c.h.s8.bf16 %v1275
        %v1616 = vunpack.c.h.s8.bf16 %v1276
        %v1617 = vunpack.c.h.s8.bf16 %v1277
        %v1618 = vunpack.c.l.s8.bf16 %v1278
        %v1619 = vunpack.c.l.s8.bf16 %v1279
        %v1620 = vunpack.c.l.s8.bf16 %v1280
        %v1621 = vunpack.c.l.s8.bf16 %v1281
        %v1622 = vunpack.c.h.s8.bf16 %v1278
        %v1623 = vunpack.c.h.s8.bf16 %v1279
        %v1624 = vunpack.c.h.s8.bf16 %v1280
        %v1625 = vunpack.c.h.s8.bf16 %v1281
        %v1626 = vunpack.c.l.s8.bf16 %v1282
        %v1627 = vunpack.c.l.s8.bf16 %v1283
        %v1628 = vunpack.c.l.s8.bf16 %v1284
        %v1629 = vunpack.c.l.s8.bf16 %v1285
        %v1630 = vunpack.c.h.s8.bf16 %v1282
        %v1631 = vunpack.c.h.s8.bf16 %v1283
        %v1632 = vunpack.c.h.s8.bf16 %v1284
        %v1633 = vunpack.c.h.s8.bf16 %v1285
        %v1634 = vunpack.c.l.s8.bf16 %v1286
        %v1635 = vunpack.c.l.s8.bf16 %v1287
        %v1636 = vunpack.c.l.s8.bf16 %v1288
        %v1637 = vunpack.c.l.s8.bf16 %v1289
        %v1638 = vunpack.c.h.s8.bf16 %v1286
        %v1639 = vunpack.c.h.s8.bf16 %v1287
        %v1640 = vunpack.c.h.s8.bf16 %v1288
        %v1641 = vunpack.c.h.s8.bf16 %v1289
        %v1642 = vunpack.c.l.s8.bf16 %v1290
        %v1643 = vunpack.c.l.s8.bf16 %v1291
        %v1644 = vunpack.c.l.s8.bf16 %v1292
        %v1645 = vunpack.c.l.s8.bf16 %v1293
        %v1646 = vunpack.c.h.s8.bf16 %v1290
        %v1647 = vunpack.c.h.s8.bf16 %v1291
        %v1648 = vunpack.c.h.s8.bf16 %v1292
        %v1649 = vunpack.c.h.s8.bf16 %v1293
        %v1650 = vunpack.c.l.s8.bf16 %v1294
        %v1651 = vunpack.c.l.s8.bf16 %v1295
        %v1652 = vunpack.c.l.s8.bf16 %v1296
        %v1653 = vunpack.c.l.s8.bf16 %v1297
        %v1654 = vunpack.c.h.s8.bf16 %v1294
        %v1655 = vunpack.c.h.s8.bf16 %v1295
        %v1656 = vunpack.c.h.s8.bf16 %v1296
        %v1657 = vunpack.c.h.s8.bf16 %v1297
        %v1658 = vunpack.c.l.s8.bf16 %v1298
        %v1659 = vunpack.c.l.s8.bf16 %v1299
        %v1660 = vunpack.c.l.s8.bf16 %v1300
        %v1661 = vunpack.c.l.s8.bf16 %v1301
        %v1662 = vunpack.c.h.s8.bf16 %v1298
        %v1663 = vunpack.c.h.s8.bf16 %v1299
        %v1664 = vunpack.c.h.s8.bf16 %v1300
        %v1665 = vunpack.c.h.s8.bf16 %v1301
        %v1666 = vunpack.c.l.s8.bf16 %v1302
        %v1667 = vunpack.c.l.s8.bf16 %v1303
        %v1668 = vunpack.c.l.s8.bf16 %v1304
        %v1669 = vunpack.c.l.s8.bf16 %v1305
        %v1670 = vunpack.c.h.s8.bf16 %v1302
        %v1671 = vunpack.c.h.s8.bf16 %v1303
        %v1672 = vunpack.c.h.s8.bf16 %v1304
        %v1673 = vunpack.c.h.s8.bf16 %v1305
        %v1674 = vunpack.c.l.s8.bf16 %v1306
        %v1675 = vunpack.c.l.s8.bf16 %v1307
        %v1676 = vunpack.c.l.s8.bf16 %v1308
        %v1677 = vunpack.c.l.s8.bf16 %v1309
        %v1678 = vunpack.c.h.s8.bf16 %v1306
        %v1679 = vunpack.c.h.s8.bf16 %v1307
        %v1680 = vunpack.c.h.s8.bf16 %v1308
        %v1681 = vunpack.c.h.s8.bf16 %v1309
        %v1682 = vunpack.c.l.s8.bf16 %v1310
        %v1683 = vunpack.c.l.s8.bf16 %v1311
        %v1684 = vunpack.c.l.s8.bf16 %v1312
        %v1685 = vunpack.c.l.s8.bf16 %v1313
        %v1686 = vunpack.c.h.s8.bf16 %v1310
        %v1687 = vunpack.c.h.s8.bf16 %v1311
        %v1688 = vunpack.c.h.s8.bf16 %v1312
        %v1689 = vunpack.c.h.s8.bf16 %v1313
        %v1690 = vunpack.c.l.s8.bf16 %v1314
        %v1691 = vunpack.c.l.s8.bf16 %v1315
        %v1692 = vunpack.c.l.s8.bf16 %v1316
        %v1693 = vunpack.c.l.s8.bf16 %v1317
        %v1694 = vunpack.c.h.s8.bf16 %v1314
        %v1695 = vunpack.c.h.s8.bf16 %v1315
        %v1696 = vunpack.c.h.s8.bf16 %v1316
        %v1697 = vunpack.c.h.s8.bf16 %v1317
        %v1698 = vunpack.c.l.s8.bf16 %v1318
        %v1699 = vunpack.c.l.s8.bf16 %v1319
        %v1700 = vunpack.c.l.s8.bf16 %v1320
        %v1701 = vunpack.c.l.s8.bf16 %v1321
        %v1702 = vunpack.c.h.s8.bf16 %v1318
        %v1703 = vunpack.c.h.s8.bf16 %v1319
        %v1704 = vunpack.c.h.s8.bf16 %v1320
        %v1705 = vunpack.c.h.s8.bf16 %v1321
        %v1706 = vunpack.c.l.s8.bf16 %v1322
        %v1707 = vunpack.c.l.s8.bf16 %v1323
        %v1708 = vunpack.c.l.s8.bf16 %v1324
        %v1709 = vunpack.c.l.s8.bf16 %v1325
        %v1710 = vunpack.c.h.s8.bf16 %v1322
        %v1711 = vunpack.c.h.s8.bf16 %v1323
        %v1712 = vunpack.c.h.s8.bf16 %v1324
        %v1713 = vunpack.c.h.s8.bf16 %v1325
        %v1714 = vunpack.c.l.s8.bf16 %v1326
        %v1715 = vunpack.c.l.s8.bf16 %v1327
        %v1716 = vunpack.c.l.s8.bf16 %v1328
        %v1717 = vunpack.c.l.s8.bf16 %v1329
        %v1718 = vunpack.c.h.s8.bf16 %v1326
        %v1719 = vunpack.c.h.s8.bf16 %v1327
        %v1720 = vunpack.c.h.s8.bf16 %v1328
        %v1721 = vunpack.c.h.s8.bf16 %v1329
        %v1722 = vunpack.c.l.s8.bf16 %v1330
        %v1723 = vunpack.c.l.s8.bf16 %v1331
        %v1724 = vunpack.c.l.s8.bf16 %v1332
        %v1725 = vunpack.c.l.s8.bf16 %v1333
        %v1726 = vunpack.c.h.s8.bf16 %v1330
        %v1727 = vunpack.c.h.s8.bf16 %v1331
        %v1728 = vunpack.c.h.s8.bf16 %v1332
        %v1729 = vunpack.c.h.s8.bf16 %v1333
        %v1730 = vunpack.c.l.s8.bf16 %v1334
        %v1731 = vunpack.c.l.s8.bf16 %v1335
        %v1732 = vunpack.c.l.s8.bf16 %v1336
        %v1733 = vunpack.c.l.s8.bf16 %v1337
        %v1734 = vunpack.c.h.s8.bf16 %v1334
        %v1735 = vunpack.c.h.s8.bf16 %v1335
        %v1736 = vunpack.c.h.s8.bf16 %v1336
        %v1737 = vunpack.c.h.s8.bf16 %v1337
        %v1738 = vunpack.c.l.s8.bf16 %v1338
        %v1739 = vunpack.c.l.s8.bf16 %v1339
        %v1740 = vunpack.c.l.s8.bf16 %v1340
        %v1741 = vunpack.c.l.s8.bf16 %v1341
        %v1742 = vunpack.c.h.s8.bf16 %v1338
        %v1743 = vunpack.c.h.s8.bf16 %v1339
        %v1744 = vunpack.c.h.s8.bf16 %v1340
        %v1745 = vunpack.c.h.s8.bf16 %v1341
        %v1746 = vunpack.c.l.s8.bf16 %v1342
        %v1747 = vunpack.c.l.s8.bf16 %v1343
        %v1748 = vunpack.c.l.s8.bf16 %v1344
        %v1749 = vunpack.c.l.s8.bf16 %v1345
        %v1750 = vunpack.c.h.s8.bf16 %v1342
        %v1751 = vunpack.c.h.s8.bf16 %v1343
        %v1752 = vunpack.c.h.s8.bf16 %v1344
        %v1753 = vunpack.c.h.s8.bf16 %v1345
        %v1754 = vunpack.c.l.s8.bf16 %v1346
        %v1755 = vunpack.c.l.s8.bf16 %v1347
        %v1756 = vunpack.c.l.s8.bf16 %v1348
        %v1757 = vunpack.c.l.s8.bf16 %v1349
        %v1758 = vunpack.c.h.s8.bf16 %v1346
        %v1759 = vunpack.c.h.s8.bf16 %v1347
        %v1760 = vunpack.c.h.s8.bf16 %v1348
        %v1761 = vunpack.c.h.s8.bf16 %v1349
        %v1762 = vunpack.c.l.s8.bf16 %v1350
        %v1763 = vunpack.c.l.s8.bf16 %v1351
        %v1764 = vunpack.c.l.s8.bf16 %v1352
        %v1765 = vunpack.c.l.s8.bf16 %v1353
        %v1766 = vunpack.c.h.s8.bf16 %v1350
        %v1767 = vunpack.c.h.s8.bf16 %v1351
        %v1768 = vunpack.c.h.s8.bf16 %v1352
        %v1769 = vunpack.c.h.s8.bf16 %v1353
        %v1770 = vunpack.c.l.s8.bf16 %v1354
        %v1771 = vunpack.c.l.s8.bf16 %v1355
        %v1772 = vunpack.c.l.s8.bf16 %v1356
        %v1773 = vunpack.c.l.s8.bf16 %v1357
        %v1774 = vunpack.c.h.s8.bf16 %v1354
        %v1775 = vunpack.c.h.s8.bf16 %v1355
        %v1776 = vunpack.c.h.s8.bf16 %v1356
        %v1777 = vunpack.c.h.s8.bf16 %v1357
        %v1778 = vunpack.c.l.s8.bf16 %v1358
        %v1779 = vunpack.c.l.s8.bf16 %v1359
        %v1780 = vunpack.c.l.s8.bf16 %v1360
        %v1781 = vunpack.c.l.s8.bf16 %v1361
        %v1782 = vunpack.c.h.s8.bf16 %v1358
        %v1783 = vunpack.c.h.s8.bf16 %v1359
        %v1784 = vunpack.c.h.s8.bf16 %v1360
        %v1785 = vunpack.c.h.s8.bf16 %v1361
        %v1786 = vunpack.c.l.s8.bf16 %v1362
        %v1787 = vunpack.c.l.s8.bf16 %v1363
        %v1788 = vunpack.c.l.s8.bf16 %v1364
        %v1789 = vunpack.c.l.s8.bf16 %v1365
        %v1790 = vunpack.c.h.s8.bf16 %v1362
        %v1791 = vunpack.c.h.s8.bf16 %v1363
        %v1792 = vunpack.c.h.s8.bf16 %v1364
        %v1793 = vunpack.c.h.s8.bf16 %v1365
        %v1794 = vunpack.c.l.s8.bf16 %v1366
        %v1795 = vunpack.c.l.s8.bf16 %v1367
        %v1796 = vunpack.c.l.s8.bf16 %v1368
        %v1797 = vunpack.c.l.s8.bf16 %v1369
        %v1798 = vunpack.c.h.s8.bf16 %v1366
        %v1799 = vunpack.c.h.s8.bf16 %v1367
        %v1800 = vunpack.c.h.s8.bf16 %v1368
        %v1801 = vunpack.c.h.s8.bf16 %v1369
        %v1802 = vunpack.c.l.s8.bf16 %v1370
        %v1803 = vunpack.c.l.s8.bf16 %v1371
        %v1804 = vunpack.c.l.s8.bf16 %v1372
        %v1805 = vunpack.c.l.s8.bf16 %v1373
        %v1806 = vunpack.c.h.s8.bf16 %v1370
        %v1807 = vunpack.c.h.s8.bf16 %v1371
        %v1808 = vunpack.c.h.s8.bf16 %v1372
        %v1809 = vunpack.c.h.s8.bf16 %v1373
        %v1810 = vunpack.c.l.s8.bf16 %v1374
        %v1811 = vunpack.c.l.s8.bf16 %v1375
        %v1812 = vunpack.c.l.s8.bf16 %v1376
        %v1813 = vunpack.c.l.s8.bf16 %v1377
        %v1814 = vunpack.c.h.s8.bf16 %v1374
        %v1815 = vunpack.c.h.s8.bf16 %v1375
        %v1816 = vunpack.c.h.s8.bf16 %v1376
        %v1817 = vunpack.c.h.s8.bf16 %v1377
        %v1818 = vunpack.c.l.s8.bf16 %v1378
        %v1819 = vunpack.c.l.s8.bf16 %v1379
        %v1820 = vunpack.c.l.s8.bf16 %v1380
        %v1821 = vunpack.c.l.s8.bf16 %v1381
        %v1822 = vunpack.c.h.s8.bf16 %v1378
        %v1823 = vunpack.c.h.s8.bf16 %v1379
        %v1824 = vunpack.c.h.s8.bf16 %v1380
        %v1825 = vunpack.c.h.s8.bf16 %v1381
        %v1826 = vunpack.c.l.s8.bf16 %v1382
        %v1827 = vunpack.c.l.s8.bf16 %v1383
        %v1828 = vunpack.c.l.s8.bf16 %v1384
        %v1829 = vunpack.c.l.s8.bf16 %v1385
        %v1830 = vunpack.c.h.s8.bf16 %v1382
        %v1831 = vunpack.c.h.s8.bf16 %v1383
        %v1832 = vunpack.c.h.s8.bf16 %v1384
        %v1833 = vunpack.c.h.s8.bf16 %v1385
        %v1834 = vunpack.c.l.s8.bf16 %v1386
        %v1835 = vunpack.c.l.s8.bf16 %v1387
        %v1836 = vunpack.c.l.s8.bf16 %v1388
        %v1837 = vunpack.c.l.s8.bf16 %v1389
        %v1838 = vunpack.c.h.s8.bf16 %v1386
        %v1839 = vunpack.c.h.s8.bf16 %v1387
        %v1840 = vunpack.c.h.s8.bf16 %v1388
        %v1841 = vunpack.c.h.s8.bf16 %v1389
        %v1842 = vunpack.c.l.s8.bf16 %v1390
        %v1843 = vunpack.c.l.s8.bf16 %v1391
        %v1844 = vunpack.c.l.s8.bf16 %v1392
        %v1845 = vunpack.c.l.s8.bf16 %v1393
        %v1846 = vunpack.c.h.s8.bf16 %v1390
        %v1847 = vunpack.c.h.s8.bf16 %v1391
        %v1848 = vunpack.c.h.s8.bf16 %v1392
        %v1849 = vunpack.c.h.s8.bf16 %v1393
        %v1850 = vunpack.c.l.s8.bf16 %v1394
        %v1851 = vunpack.c.l.s8.bf16 %v1395
        %v1852 = vunpack.c.l.s8.bf16 %v1396
        %v1853 = vunpack.c.l.s8.bf16 %v1397
        %v1854 = vunpack.c.h.s8.bf16 %v1394
        %v1855 = vunpack.c.h.s8.bf16 %v1395
        %v1856 = vunpack.c.h.s8.bf16 %v1396
        %v1857 = vunpack.c.h.s8.bf16 %v1397
        %v1858 = vunpack.c.l.s8.bf16 %v1398
        %v1859 = vunpack.c.l.s8.bf16 %v1399
        %v1860 = vunpack.c.l.s8.bf16 %v1400
        %v1861 = vunpack.c.l.s8.bf16 %v1401
        %v1862 = vunpack.c.h.s8.bf16 %v1398
        %v1863 = vunpack.c.h.s8.bf16 %v1399
        %v1864 = vunpack.c.h.s8.bf16 %v1400
        %v1865 = vunpack.c.h.s8.bf16 %v1401
        %v1866 = vunpack.c.l.s8.bf16 %v1402
        %v1867 = vunpack.c.l.s8.bf16 %v1403
        %v1868 = vunpack.c.l.s8.bf16 %v1404
        %v1869 = vunpack.c.l.s8.bf16 %v1405
        %v1870 = vunpack.c.h.s8.bf16 %v1402
        %v1871 = vunpack.c.h.s8.bf16 %v1403
        %v1872 = vunpack.c.h.s8.bf16 %v1404
        %v1873 = vunpack.c.h.s8.bf16 %v1405
        %v1874 = vunpack.c.l.s8.bf16 %v1406
        %v1875 = vunpack.c.l.s8.bf16 %v1407
        %v1876 = vunpack.c.l.s8.bf16 %v1408
        %v1877 = vunpack.c.l.s8.bf16 %v1409
        %v1878 = vunpack.c.h.s8.bf16 %v1406
        %v1879 = vunpack.c.h.s8.bf16 %v1407
        %v1880 = vunpack.c.h.s8.bf16 %v1408
        %v1881 = vunpack.c.h.s8.bf16 %v1409
        %v1882 = vunpack.c.l.s8.bf16 %v1410
        %v1883 = vunpack.c.l.s8.bf16 %v1411
        %v1884 = vunpack.c.l.s8.bf16 %v1412
        %v1885 = vunpack.c.l.s8.bf16 %v1413
        %v1886 = vunpack.c.h.s8.bf16 %v1410
        %v1887 = vunpack.c.h.s8.bf16 %v1411
        %v1888 = vunpack.c.h.s8.bf16 %v1412
        %v1889 = vunpack.c.h.s8.bf16 %v1413
        %v1890 = vunpack.c.l.s8.bf16 %v1414
        %v1891 = vunpack.c.l.s8.bf16 %v1415
        %v1892 = vunpack.c.l.s8.bf16 %v1416
        %v1893 = vunpack.c.l.s8.bf16 %v1417
        %v1894 = vunpack.c.h.s8.bf16 %v1414
        %v1895 = vunpack.c.h.s8.bf16 %v1415
        %v1896 = vunpack.c.h.s8.bf16 %v1416
        %v1897 = vunpack.c.h.s8.bf16 %v1417
        %v1898 = vunpack.c.l.s8.bf16 %v1418
        %v1899 = vunpack.c.l.s8.bf16 %v1419
        %v1900 = vunpack.c.l.s8.bf16 %v1420
        %v1901 = vunpack.c.l.s8.bf16 %v1421
        %v1902 = vunpack.c.h.s8.bf16 %v1418
        %v1903 = vunpack.c.h.s8.bf16 %v1419
        %v1904 = vunpack.c.h.s8.bf16 %v1420
        %v1905 = vunpack.c.h.s8.bf16 %v1421
        %v1906 = vunpack.c.l.s8.bf16 %v1422
        %v1907 = vunpack.c.l.s8.bf16 %v1423
        %v1908 = vunpack.c.l.s8.bf16 %v1424
        %v1909 = vunpack.c.l.s8.bf16 %v1425
        %v1910 = vunpack.c.h.s8.bf16 %v1422
        %v1911 = vunpack.c.h.s8.bf16 %v1423
        %v1912 = vunpack.c.h.s8.bf16 %v1424
        %v1913 = vunpack.c.h.s8.bf16 %v1425
        %v1914 = vunpack.c.l.s8.bf16 %v1426
        %v1915 = vunpack.c.l.s8.bf16 %v1427
        %v1916 = vunpack.c.l.s8.bf16 %v1428
        %v1917 = vunpack.c.l.s8.bf16 %v1429
        %v1918 = vunpack.c.h.s8.bf16 %v1426
        %v1919 = vunpack.c.h.s8.bf16 %v1427
        %v1920 = vunpack.c.h.s8.bf16 %v1428
        %v1921 = vunpack.c.h.s8.bf16 %v1429
        %v1922 = vunpack.c.l.s8.bf16 %v1430
        %v1923 = vunpack.c.l.s8.bf16 %v1431
        %v1924 = vunpack.c.l.s8.bf16 %v1432
        %v1925 = vunpack.c.l.s8.bf16 %v1433
        %v1926 = vunpack.c.h.s8.bf16 %v1430
        %v1927 = vunpack.c.h.s8.bf16 %v1431
        %v1928 = vunpack.c.h.s8.bf16 %v1432
        %v1929 = vunpack.c.h.s8.bf16 %v1433
        %v1930 = vunpack.c.l.s8.bf16 %v1434
        %v1931 = vunpack.c.l.s8.bf16 %v1435
        %v1932 = vunpack.c.l.s8.bf16 %v1436
        %v1933 = vunpack.c.l.s8.bf16 %v1437
        %v1934 = vunpack.c.h.s8.bf16 %v1434
        %v1935 = vunpack.c.h.s8.bf16 %v1435
        %v1936 = vunpack.c.h.s8.bf16 %v1436
        %v1937 = vunpack.c.h.s8.bf16 %v1437
        %v1938 = vunpack.c.l.s8.bf16 %v1438
        %v1939 = vunpack.c.l.s8.bf16 %v1439
        %v1940 = vunpack.c.l.s8.bf16 %v1440
        %v1941 = vunpack.c.l.s8.bf16 %v1441
        %v1942 = vunpack.c.h.s8.bf16 %v1438
        %v1943 = vunpack.c.h.s8.bf16 %v1439
        %v1944 = vunpack.c.h.s8.bf16 %v1440
        %v1945 = vunpack.c.h.s8.bf16 %v1441
        %v1946 = vunpack.c.l.s8.bf16 %v1442
        %v1947 = vunpack.c.l.s8.bf16 %v1443
        %v1948 = vunpack.c.l.s8.bf16 %v1444
        %v1949 = vunpack.c.l.s8.bf16 %v1445
        %v1950 = vunpack.c.h.s8.bf16 %v1442
        %v1951 = vunpack.c.h.s8.bf16 %v1443
        %v1952 = vunpack.c.h.s8.bf16 %v1444
        %v1953 = vunpack.c.h.s8.bf16 %v1445
        %v1954 = vunpack.c.l.s8.bf16 %v1446
        %v1955 = vunpack.c.l.s8.bf16 %v1447
        %v1956 = vunpack.c.l.s8.bf16 %v1448
        %v1957 = vunpack.c.l.s8.bf16 %v1449
        %v1958 = vunpack.c.h.s8.bf16 %v1446
        %v1959 = vunpack.c.h.s8.bf16 %v1447
        %v1960 = vunpack.c.h.s8.bf16 %v1448
        %v1961 = vunpack.c.h.s8.bf16 %v1449
        %v1962 = vld [vmem:[%s0] sm:$0xff]
        %v1963 = vld [vmem:[%s0 + $0x8] sm:$0xff]
        %v1966 = vunpack.c.l.b16 %v1962
        %v1967 = vunpack.c.h.b16 %v1962
        %v1968 = vunpack.c.l.b16 %v1963
        %v1969 = vunpack.c.h.b16 %v1963
        %v1970 = vpack.c.b16 %v1966, %v1966
        %v1971 = vpack.c.b16 %v1967, %v1967
        %v1972 = vpack.c.b16 %v1968, %v1968
        %v1973 = vpack.c.b16 %v1969, %v1969
        %1978 = vmatprep.subr.bf16.mxu0 %v795
        %1979 = vmatpush1.bf16.msra.mxu0 %v794
        %1980 = vmatprep.subr.bf16.mxu0 %v779
        %1981 = vmatpush1.bf16.msra.mxu0 %v778
        %1982 = vmatprep.subr.bf16.mxu0 %v763
        %1983 = vmatpush1.bf16.msra.mxu0 %v762
        %1984 = vmatprep.subr.bf16.mxu0 %v747
        %1985 = vmatpush1.bf16.msra.mxu0 %v746
        %1986 = vmatprep.subr.bf16.mxu0 %v731
        %1987 = vmatpush1.bf16.msra.mxu0 %v730
        %1988 = vmatprep.subr.bf16.mxu0 %v715
        %1989 = vmatpush1.bf16.msra.mxu0 %v714
        %1990 = vmatprep.subr.bf16.mxu0 %v699
        %1991 = vmatpush1.bf16.msra.mxu0 %v698
        %1992 = vmatprep.subr.bf16.mxu0 %v683
        %1993 = vmatpush1.bf16.msra.mxu0 %v682
        %1994 = vmatprep.subr.bf16.mxu0 %v923
        %1995 = vmatpush2.bf16.msra.mxu0 %v922
        %1996 = vmatprep.subr.bf16.mxu0 %v907
        %1997 = vmatpush2.bf16.msra.mxu0 %v906
        %1998 = vmatprep.subr.bf16.mxu0 %v891
        %1999 = vmatpush2.bf16.msra.mxu0 %v890
        %2000 = vmatprep.subr.bf16.mxu0 %v875
        %2001 = vmatpush2.bf16.msra.mxu0 %v874
        %2002 = vmatprep.subr.bf16.mxu0 %v859
        %2003 = vmatpush2.bf16.msra.mxu0 %v858
        %2004 = vmatprep.subr.bf16.mxu0 %v843
        %2005 = vmatpush2.bf16.msra.mxu0 %v842
        %2006 = vmatprep.subr.bf16.mxu0 %v827
        %2007 = vmatpush2.bf16.msra.mxu0 %v826
        %2008 = vmatprep.subr.bf16.mxu0 %v811
        %2009 = vmatpush2.bf16.msra.mxu0 %v810
        %2010 = vmatprep.mubr.bf16.mxu0 %v1971
        %2011 = vmatmul.mubr.bf16.gmra.mxu0 %v1970
        %v2012 = vpop.f32.mrf.mxu0
        %v2013 = vadd.f32 0.0, %v2012
        %v2014 = vpop.f32.mrf.mxu0
        %v2015 = vadd.f32 0.0, %v2014
        %v2016 = vpop.f32.mrf.mxu0
        %v2017 = vpop.f32.mrf.mxu0
        %2018 = vdwg.mxu0
        %2019 = vmatprep.subr.bf16.mxu0 %v1051
        %2020 = vmatpush1.bf16.msra.mxu0 %v1050
        %2021 = vmatprep.subr.bf16.mxu0 %v1035
        %2022 = vmatpush1.bf16.msra.mxu0 %v1034
        %2023 = vmatprep.subr.bf16.mxu0 %v1019
        %2024 = vmatpush1.bf16.msra.mxu0 %v1018
        %2025 = vmatprep.subr.bf16.mxu0 %v1003
        %2026 = vmatpush1.bf16.msra.mxu0 %v1002
        %2027 = vmatprep.subr.bf16.mxu0 %v987
        %2028 = vmatpush1.bf16.msra.mxu0 %v986
        %2029 = vmatprep.subr.bf16.mxu0 %v971
        %2030 = vmatpush1.bf16.msra.mxu0 %v970
        %2031 = vmatprep.subr.bf16.mxu0 %v955
        %2032 = vmatpush1.bf16.msra.mxu0 %v954
        %2033 = vmatprep.subr.bf16.mxu0 %v939
        %2034 = vmatpush1.bf16.msra.mxu0 %v938
        %2035 = vmatprep.subr.bf16.mxu0 %v1179
        %2036 = vmatpush2.bf16.msra.mxu0 %v1178
        %2037 = vmatprep.subr.bf16.mxu0 %v1163
        %2038 = vmatpush2.bf16.msra.mxu0 %v1162
        %2039 = vmatprep.subr.bf16.mxu0 %v1147
        %2040 = vmatpush2.bf16.msra.mxu0 %v1146
        %2041 = vmatprep.subr.bf16.mxu0 %v1131
        %2042 = vmatpush2.bf16.msra.mxu0 %v1130
        %2043 = vmatprep.subr.bf16.mxu0 %v1115
        %2044 = vmatpush2.bf16.msra.mxu0 %v1114
        %2045 = vmatprep.subr.bf16.mxu0 %v1099
        %2046 = vmatpush2.bf16.msra.mxu0 %v1098
        %2047 = vmatprep.subr.bf16.mxu0 %v1083
        %2048 = vmatpush2.bf16.msra.mxu0 %v1082
        %2049 = vmatprep.subr.bf16.mxu0 %v1067
        %2050 = vmatpush2.bf16.msra.mxu0 %v1066
        %2051 = vmatprep.mubr.bf16.mxu0 %v1973
        %2052 = vmatmul.mubr.bf16.gmra.mxu0 %v1972
        %v2053 = vpop.f32.mrf.mxu0
        %v2054 = vadd.f32 %v2013, %v2053
        %v2055 = vpop.f32.mrf.mxu0
        %v2056 = vadd.f32 %v2015, %v2055
        %v2057 = vpop.f32.mrf.mxu0
        %v2058 = vpop.f32.mrf.mxu0
        %2059 = vdwg.mxu0
        %2060 = vmatprep.subr.bf16.mxu0 %v797
        %2061 = vmatpush1.bf16.msra.mxu0 %v796
        %2062 = vmatprep.subr.bf16.mxu0 %v781
        %2063 = vmatpush1.bf16.msra.mxu0 %v780
        %2064 = vmatprep.subr.bf16.mxu0 %v765
        %2065 = vmatpush1.bf16.msra.mxu0 %v764
        %2066 = vmatprep.subr.bf16.mxu0 %v749
        %2067 = vmatpush1.bf16.msra.mxu0 %v748
        %2068 = vmatprep.subr.bf16.mxu0 %v733
        %2069 = vmatpush1.bf16.msra.mxu0 %v732
        %2070 = vmatprep.subr.bf16.mxu0 %v717
        %2071 = vmatpush1.bf16.msra.mxu0 %v716
        %2072 = vmatprep.subr.bf16.mxu0 %v701
        %2073 = vmatpush1.bf16.msra.mxu0 %v700
        %2074 = vmatprep.subr.bf16.mxu0 %v685
        %2075 = vmatpush1.bf16.msra.mxu0 %v684
        %2076 = vmatprep.subr.bf16.mxu0 %v925
        %2077 = vmatpush2.bf16.msra.mxu0 %v924
        %2078 = vmatprep.subr.bf16.mxu0 %v909
        %2079 = vmatpush2.bf16.msra.mxu0 %v908
        %2080 = vmatprep.subr.bf16.mxu0 %v893
        %2081 = vmatpush2.bf16.msra.mxu0 %v892
        %2082 = vmatprep.subr.bf16.mxu0 %v877
        %2083 = vmatpush2.bf16.msra.mxu0 %v876
        %2084 = vmatprep.subr.bf16.mxu0 %v861
        %2085 = vmatpush2.bf16.msra.mxu0 %v860
        %2086 = vmatprep.subr.bf16.mxu0 %v845
        %2087 = vmatpush2.bf16.msra.mxu0 %v844
        %2088 = vmatprep.subr.bf16.mxu0 %v829
        %2089 = vmatpush2.bf16.msra.mxu0 %v828
        %2090 = vmatprep.subr.bf16.mxu0 %v813
        %2091 = vmatpush2.bf16.msra.mxu0 %v812
        %2092 = vmatprep.mubr.bf16.mxu0 %v1971
        %2093 = vmatmul.mubr.bf16.gmra.mxu0 %v1970
        %v2094 = vpop.f32.mrf.mxu0
        %v2095 = vadd.f32 0.0, %v2094
        %v2096 = vpop.f32.mrf.mxu0
        %v2097 = vadd.f32 0.0, %v2096
        %v2098 = vpop.f32.mrf.mxu0
        %v2099 = vpop.f32.mrf.mxu0
        %2100 = vdwg.mxu0
        %2101 = vmatprep.subr.bf16.mxu0 %v1053
        %2102 = vmatpush1.bf16.msra.mxu0 %v1052
        %2103 = vmatprep.subr.bf16.mxu0 %v1037
        %2104 = vmatpush1.bf16.msra.mxu0 %v1036
        %2105 = vmatprep.subr.bf16.mxu0 %v1021
        %2106 = vmatpush1.bf16.msra.mxu0 %v1020
        %2107 = vmatprep.subr.bf16.mxu0 %v1005
        %2108 = vmatpush1.bf16.msra.mxu0 %v1004
        %2109 = vmatprep.subr.bf16.mxu0 %v989
        %2110 = vmatpush1.bf16.msra.mxu0 %v988
        %2111 = vmatprep.subr.bf16.mxu0 %v973
        %2112 = vmatpush1.bf16.msra.mxu0 %v972
        %2113 = vmatprep.subr.bf16.mxu0 %v957
        %2114 = vmatpush1.bf16.msra.mxu0 %v956
        %2115 = vmatprep.subr.bf16.mxu0 %v941
        %2116 = vmatpush1.bf16.msra.mxu0 %v940
        %2117 = vmatprep.subr.bf16.mxu0 %v1181
        %2118 = vmatpush2.bf16.msra.mxu0 %v1180
        %2119 = vmatprep.subr.bf16.mxu0 %v1165
        %2120 = vmatpush2.bf16.msra.mxu0 %v1164
        %2121 = vmatprep.subr.bf16.mxu0 %v1149
        %2122 = vmatpush2.bf16.msra.mxu0 %v1148
        %2123 = vmatprep.subr.bf16.mxu0 %v1133
        %2124 = vmatpush2.bf16.msra.mxu0 %v1132
        %2125 = vmatprep.subr.bf16.mxu0 %v1117
        %2126 = vmatpush2.bf16.msra.mxu0 %v1116
        %2127 = vmatprep.subr.bf16.mxu0 %v1101
        %2128 = vmatpush2.bf16.msra.mxu0 %v1100
        %2129 = vmatprep.subr.bf16.mxu0 %v1085
        %2130 = vmatpush2.bf16.msra.mxu0 %v1084
        %2131 = vmatprep.subr.bf16.mxu0 %v1069
        %2132 = vmatpush2.bf16.msra.mxu0 %v1068
        %2133 = vmatprep.mubr.bf16.mxu0 %v1973
        %2134 = vmatmul.mubr.bf16.gmra.mxu0 %v1972
        %v2135 = vpop.f32.mrf.mxu0
        %v2136 = vadd.f32 %v2095, %v2135
        %v2137 = vpop.f32.mrf.mxu0
        %v2138 = vadd.f32 %v2097, %v2137
        %v2139 = vpop.f32.mrf.mxu0
        %v2140 = vpop.f32.mrf.mxu0
        %2141 = vdwg.mxu0
        %2142 = vmatprep.subr.bf16.mxu0 %v799
        %2143 = vmatpush1.bf16.msra.mxu0 %v798
        %2144 = vmatprep.subr.bf16.mxu0 %v783
        %2145 = vmatpush1.bf16.msra.mxu0 %v782
        %2146 = vmatprep.subr.bf16.mxu0 %v767
        %2147 = vmatpush1.bf16.msra.mxu0 %v766
        %2148 = vmatprep.subr.bf16.mxu0 %v751
        %2149 = vmatpush1.bf16.msra.mxu0 %v750
        %2150 = vmatprep.subr.bf16.mxu0 %v735
        %2151 = vmatpush1.bf16.msra.mxu0 %v734
        %2152 = vmatprep.subr.bf16.mxu0 %v719
        %2153 = vmatpush1.bf16.msra.mxu0 %v718
        %2154 = vmatprep.subr.bf16.mxu0 %v703
        %2155 = vmatpush1.bf16.msra.mxu0 %v702
        %2156 = vmatprep.subr.bf16.mxu0 %v687
        %2157 = vmatpush1.bf16.msra.mxu0 %v686
        %2158 = vmatprep.subr.bf16.mxu0 %v927
        %2159 = vmatpush2.bf16.msra.mxu0 %v926
        %2160 = vmatprep.subr.bf16.mxu0 %v911
        %2161 = vmatpush2.bf16.msra.mxu0 %v910
        %2162 = vmatprep.subr.bf16.mxu0 %v895
        %2163 = vmatpush2.bf16.msra.mxu0 %v894
        %2164 = vmatprep.subr.bf16.mxu0 %v879
        %2165 = vmatpush2.bf16.msra.mxu0 %v878
        %2166 = vmatprep.subr.bf16.mxu0 %v863
        %2167 = vmatpush2.bf16.msra.mxu0 %v862
        %2168 = vmatprep.subr.bf16.mxu0 %v847
        %2169 = vmatpush2.bf16.msra.mxu0 %v846
        %2170 = vmatprep.subr.bf16.mxu0 %v831
        %2171 = vmatpush2.bf16.msra.mxu0 %v830
        %2172 = vmatprep.subr.bf16.mxu0 %v815
        %2173 = vmatpush2.bf16.msra.mxu0 %v814
        %2174 = vmatprep.mubr.bf16.mxu0 %v1971
        %2175 = vmatmul.mubr.bf16.gmra.mxu0 %v1970
        %v2176 = vpop.f32.mrf.mxu0
        %v2177 = vadd.f32 0.0, %v2176
        %v2178 = vpop.f32.mrf.mxu0
        %v2179 = vadd.f32 0.0, %v2178
        %v2180 = vpop.f32.mrf.mxu0
        %v2181 = vpop.f32.mrf.mxu0
        %2182 = vdwg.mxu0
        %2183 = vmatprep.subr.bf16.mxu0 %v1055
        %2184 = vmatpush1.bf16.msra.mxu0 %v1054
        %2185 = vmatprep.subr.bf16.mxu0 %v1039
        %2186 = vmatpush1.bf16.msra.mxu0 %v1038
        %2187 = vmatprep.subr.bf16.mxu0 %v1023
        %2188 = vmatpush1.bf16.msra.mxu0 %v1022
        %2189 = vmatprep.subr.bf16.mxu0 %v1007
        %2190 = vmatpush1.bf16.msra.mxu0 %v1006
        %2191 = vmatprep.subr.bf16.mxu0 %v991
        %2192 = vmatpush1.bf16.msra.mxu0 %v990
        %2193 = vmatprep.subr.bf16.mxu0 %v975
        %2194 = vmatpush1.bf16.msra.mxu0 %v974
        %2195 = vmatprep.subr.bf16.mxu0 %v959
        %2196 = vmatpush1.bf16.msra.mxu0 %v958
        %2197 = vmatprep.subr.bf16.mxu0 %v943
        %2198 = vmatpush1.bf16.msra.mxu0 %v942
        %2199 = vmatprep.subr.bf16.mxu0 %v1183
        %2200 = vmatpush2.bf16.msra.mxu0 %v1182
        %2201 = vmatprep.subr.bf16.mxu0 %v1167
        %2202 = vmatpush2.bf16.msra.mxu0 %v1166
        %2203 = vmatprep.subr.bf16.mxu0 %v1151
        %2204 = vmatpush2.bf16.msra.mxu0 %v1150
        %2205 = vmatprep.subr.bf16.mxu0 %v1135
        %2206 = vmatpush2.bf16.msra.mxu0 %v1134
        %2207 = vmatprep.subr.bf16.mxu0 %v1119
        %2208 = vmatpush2.bf16.msra.mxu0 %v1118
        %2209 = vmatprep.subr.bf16.mxu0 %v1103
        %2210 = vmatpush2.bf16.msra.mxu0 %v1102
        %2211 = vmatprep.subr.bf16.mxu0 %v1087
        %2212 = vmatpush2.bf16.msra.mxu0 %v1086
        %2213 = vmatprep.subr.bf16.mxu0 %v1071
        %2214 = vmatpush2.bf16.msra.mxu0 %v1070
        %2215 = vmatprep.mubr.bf16.mxu0 %v1973
        %2216 = vmatmul.mubr.bf16.gmra.mxu0 %v1972
        %v2217 = vpop.f32.mrf.mxu0
        %v2218 = vadd.f32 %v2177, %v2217
        %v2219 = vpop.f32.mrf.mxu0
        %v2220 = vadd.f32 %v2179, %v2219
        %v2221 = vpop.f32.mrf.mxu0
        %v2222 = vpop.f32.mrf.mxu0
        %2223 = vdwg.mxu0
        %2224 = vmatprep.subr.bf16.mxu0 %v801
        %2225 = vmatpush1.bf16.msra.mxu0 %v800
        %2226 = vmatprep.subr.bf16.mxu0 %v785
        %2227 = vmatpush1.bf16.msra.mxu0 %v784
        %2228 = vmatprep.subr.bf16.mxu0 %v769
        %2229 = vmatpush1.bf16.msra.mxu0 %v768
        %2230 = vmatprep.subr.bf16.mxu0 %v753
        %2231 = vmatpush1.bf16.msra.mxu0 %v752
        %2232 = vmatprep.subr.bf16.mxu0 %v737
        %2233 = vmatpush1.bf16.msra.mxu0 %v736
        %2234 = vmatprep.subr.bf16.mxu0 %v721
        %2235 = vmatpush1.bf16.msra.mxu0 %v720
        %2236 = vmatprep.subr.bf16.mxu0 %v705
        %2237 = vmatpush1.bf16.msra.mxu0 %v704
        %2238 = vmatprep.subr.bf16.mxu0 %v689
        %2239 = vmatpush1.bf16.msra.mxu0 %v688
        %2240 = vmatprep.subr.bf16.mxu0 %v929
        %2241 = vmatpush2.bf16.msra.mxu0 %v928
        %2242 = vmatprep.subr.bf16.mxu0 %v913
        %2243 = vmatpush2.bf16.msra.mxu0 %v912
        %2244 = vmatprep.subr.bf16.mxu0 %v897
        %2245 = vmatpush2.bf16.msra.mxu0 %v896
        %2246 = vmatprep.subr.bf16.mxu0 %v881
        %2247 = vmatpush2.bf16.msra.mxu0 %v880
        %2248 = vmatprep.subr.bf16.mxu0 %v865
        %2249 = vmatpush2.bf16.msra.mxu0 %v864
        %2250 = vmatprep.subr.bf16.mxu0 %v849
        %2251 = vmatpush2.bf16.msra.mxu0 %v848
        %2252 = vmatprep.subr.bf16.mxu0 %v833
        %2253 = vmatpush2.bf16.msra.mxu0 %v832
        %2254 = vmatprep.subr.bf16.mxu0 %v817
        %2255 = vmatpush2.bf16.msra.mxu0 %v816
        %2256 = vmatprep.mubr.bf16.mxu0 %v1971
        %2257 = vmatmul.mubr.bf16.gmra.mxu0 %v1970
        %v2258 = vpop.f32.mrf.mxu0
        %v2259 = vadd.f32 0.0, %v2258
        %v2260 = vpop.f32.mrf.mxu0
        %v2261 = vadd.f32 0.0, %v2260
        %v2262 = vpop.f32.mrf.mxu0
        %v2263 = vpop.f32.mrf.mxu0
        %2264 = vdwg.mxu0
        %2265 = vmatprep.subr.bf16.mxu0 %v1057
        %2266 = vmatpush1.bf16.msra.mxu0 %v1056
        %2267 = vmatprep.subr.bf16.mxu0 %v1041
        %2268 = vmatpush1.bf16.msra.mxu0 %v1040
        %2269 = vmatprep.subr.bf16.mxu0 %v1025
        %2270 = vmatpush1.bf16.msra.mxu0 %v1024
        %2271 = vmatprep.subr.bf16.mxu0 %v1009
        %2272 = vmatpush1.bf16.msra.mxu0 %v1008
        %2273 = vmatprep.subr.bf16.mxu0 %v993
        %2274 = vmatpush1.bf16.msra.mxu0 %v992
        %2275 = vmatprep.subr.bf16.mxu0 %v977
        %2276 = vmatpush1.bf16.msra.mxu0 %v976
        %2277 = vmatprep.subr.bf16.mxu0 %v961
        %2278 = vmatpush1.bf16.msra.mxu0 %v960
        %2279 = vmatprep.subr.bf16.mxu0 %v945
        %2280 = vmatpush1.bf16.msra.mxu0 %v944
        %2281 = vmatprep.subr.bf16.mxu0 %v1185
        %2282 = vmatpush2.bf16.msra.mxu0 %v1184
        %2283 = vmatprep.subr.bf16.mxu0 %v1169
        %2284 = vmatpush2.bf16.msra.mxu0 %v1168
        %2285 = vmatprep.subr.bf16.mxu0 %v1153
        %2286 = vmatpush2.bf16.msra.mxu0 %v1152
        %2287 = vmatprep.subr.bf16.mxu0 %v1137
        %2288 = vmatpush2.bf16.msra.mxu0 %v1136
        %2289 = vmatprep.subr.bf16.mxu0 %v1121
        %2290 = vmatpush2.bf16.msra.mxu0 %v1120
        %2291 = vmatprep.subr.bf16.mxu0 %v1105
        %2292 = vmatpush2.bf16.msra.mxu0 %v1104
        %2293 = vmatprep.subr.bf16.mxu0 %v1089
        %2294 = vmatpush2.bf16.msra.mxu0 %v1088
        %2295 = vmatprep.subr.bf16.mxu0 %v1073
        %2296 = vmatpush2.bf16.msra.mxu0 %v1072
        %2297 = vmatprep.mubr.bf16.mxu0 %v1973
        %2298 = vmatmul.mubr.bf16.gmra.mxu0 %v1972
        %v2299 = vpop.f32.mrf.mxu0
        %v2300 = vadd.f32 %v2259, %v2299
        %v2301 = vpop.f32.mrf.mxu0
        %v2302 = vadd.f32 %v2261, %v2301
        %v2303 = vpop.f32.mrf.mxu0
        %v2304 = vpop.f32.mrf.mxu0
        %2305 = vdwg.mxu0
        %2306 = vmatprep.subr.bf16.mxu0 %v803
        %2307 = vmatpush1.bf16.msra.mxu0 %v802
        %2308 = vmatprep.subr.bf16.mxu0 %v787
        %2309 = vmatpush1.bf16.msra.mxu0 %v786
        %2310 = vmatprep.subr.bf16.mxu0 %v771
        %2311 = vmatpush1.bf16.msra.mxu0 %v770
        %2312 = vmatprep.subr.bf16.mxu0 %v755
        %2313 = vmatpush1.bf16.msra.mxu0 %v754
        %2314 = vmatprep.subr.bf16.mxu0 %v739
        %2315 = vmatpush1.bf16.msra.mxu0 %v738
        %2316 = vmatprep.subr.bf16.mxu0 %v723
        %2317 = vmatpush1.bf16.msra.mxu0 %v722
        %2318 = vmatprep.subr.bf16.mxu0 %v707
        %2319 = vmatpush1.bf16.msra.mxu0 %v706
        %2320 = vmatprep.subr.bf16.mxu0 %v691
        %2321 = vmatpush1.bf16.msra.mxu0 %v690
        %2322 = vmatprep.subr.bf16.mxu0 %v931
        %2323 = vmatpush2.bf16.msra.mxu0 %v930
        %2324 = vmatprep.subr.bf16.mxu0 %v915
        %2325 = vmatpush2.bf16.msra.mxu0 %v914
        %2326 = vmatprep.subr.bf16.mxu0 %v899
        %2327 = vmatpush2.bf16.msra.mxu0 %v898
        %2328 = vmatprep.subr.bf16.mxu0 %v883
        %2329 = vmatpush2.bf16.msra.mxu0 %v882
        %2330 = vmatprep.subr.bf16.mxu0 %v867
        %2331 = vmatpush2.bf16.msra.mxu0 %v866
        %2332 = vmatprep.subr.bf16.mxu0 %v851
        %2333 = vmatpush2.bf16.msra.mxu0 %v850
        %2334 = vmatprep.subr.bf16.mxu0 %v835
        %2335 = vmatpush2.bf16.msra.mxu0 %v834
        %2336 = vmatprep.subr.bf16.mxu0 %v819
        %2337 = vmatpush2.bf16.msra.mxu0 %v818
        %2338 = vmatprep.mubr.bf16.mxu0 %v1971
        %2339 = vmatmul.mubr.bf16.gmra.mxu0 %v1970
        %v2340 = vpop.f32.mrf.mxu0
        %v2341 = vadd.f32 0.0, %v2340
        %v2342 = vpop.f32.mrf.mxu0
        %v2343 = vadd.f32 0.0, %v2342
        %v2344 = vpop.f32.mrf.mxu0
        %v2345 = vpop.f32.mrf.mxu0
        %2346 = vdwg.mxu0
        %2347 = vmatprep.subr.bf16.mxu0 %v1059
        %2348 = vmatpush1.bf16.msra.mxu0 %v1058
        %2349 = vmatprep.subr.bf16.mxu0 %v1043
        %2350 = vmatpush1.bf16.msra.mxu0 %v1042
        %2351 = vmatprep.subr.bf16.mxu0 %v1027
        %2352 = vmatpush1.bf16.msra.mxu0 %v1026
        %2353 = vmatprep.subr.bf16.mxu0 %v1011
        %2354 = vmatpush1.bf16.msra.mxu0 %v1010
        %2355 = vmatprep.subr.bf16.mxu0 %v995
        %2356 = vmatpush1.bf16.msra.mxu0 %v994
        %2357 = vmatprep.subr.bf16.mxu0 %v979
        %2358 = vmatpush1.bf16.msra.mxu0 %v978
        %2359 = vmatprep.subr.bf16.mxu0 %v963
        %2360 = vmatpush1.bf16.msra.mxu0 %v962
        %2361 = vmatprep.subr.bf16.mxu0 %v947
        %2362 = vmatpush1.bf16.msra.mxu0 %v946
        %2363 = vmatprep.subr.bf16.mxu0 %v1187
        %2364 = vmatpush2.bf16.msra.mxu0 %v1186
        %2365 = vmatprep.subr.bf16.mxu0 %v1171
        %2366 = vmatpush2.bf16.msra.mxu0 %v1170
        %2367 = vmatprep.subr.bf16.mxu0 %v1155
        %2368 = vmatpush2.bf16.msra.mxu0 %v1154
        %2369 = vmatprep.subr.bf16.mxu0 %v1139
        %2370 = vmatpush2.bf16.msra.mxu0 %v1138
        %2371 = vmatprep.subr.bf16.mxu0 %v1123
        %2372 = vmatpush2.bf16.msra.mxu0 %v1122
        %2373 = vmatprep.subr.bf16.mxu0 %v1107
        %2374 = vmatpush2.bf16.msra.mxu0 %v1106
        %2375 = vmatprep.subr.bf16.mxu0 %v1091
        %2376 = vmatpush2.bf16.msra.mxu0 %v1090
        %2377 = vmatprep.subr.bf16.mxu0 %v1075
        %2378 = vmatpush2.bf16.msra.mxu0 %v1074
        %2379 = vmatprep.mubr.bf16.mxu0 %v1973
        %2380 = vmatmul.mubr.bf16.gmra.mxu0 %v1972
        %v2381 = vpop.f32.mrf.mxu0
        %v2382 = vadd.f32 %v2341, %v2381
        %v2383 = vpop.f32.mrf.mxu0
        %v2384 = vadd.f32 %v2343, %v2383
        %v2385 = vpop.f32.mrf.mxu0
        %v2386 = vpop.f32.mrf.mxu0
        %2387 = vdwg.mxu0
        %2388 = vmatprep.subr.bf16.mxu0 %v805
        %2389 = vmatpush1.bf16.msra.mxu0 %v804
        %2390 = vmatprep.subr.bf16.mxu0 %v789
        %2391 = vmatpush1.bf16.msra.mxu0 %v788
        %2392 = vmatprep.subr.bf16.mxu0 %v773
        %2393 = vmatpush1.bf16.msra.mxu0 %v772
        %2394 = vmatprep.subr.bf16.mxu0 %v757
        %2395 = vmatpush1.bf16.msra.mxu0 %v756
        %2396 = vmatprep.subr.bf16.mxu0 %v741
        %2397 = vmatpush1.bf16.msra.mxu0 %v740
        %2398 = vmatprep.subr.bf16.mxu0 %v725
        %2399 = vmatpush1.bf16.msra.mxu0 %v724
        %2400 = vmatprep.subr.bf16.mxu0 %v709
        %2401 = vmatpush1.bf16.msra.mxu0 %v708
        %2402 = vmatprep.subr.bf16.mxu0 %v693
        %2403 = vmatpush1.bf16.msra.mxu0 %v692
        %2404 = vmatprep.subr.bf16.mxu0 %v933
        %2405 = vmatpush2.bf16.msra.mxu0 %v932
        %2406 = vmatprep.subr.bf16.mxu0 %v917
        %2407 = vmatpush2.bf16.msra.mxu0 %v916
        %2408 = vmatprep.subr.bf16.mxu0 %v901
        %2409 = vmatpush2.bf16.msra.mxu0 %v900
        %2410 = vmatprep.subr.bf16.mxu0 %v885
        %2411 = vmatpush2.bf16.msra.mxu0 %v884
        %2412 = vmatprep.subr.bf16.mxu0 %v869
        %2413 = vmatpush2.bf16.msra.mxu0 %v868
        %2414 = vmatprep.subr.bf16.mxu0 %v853
        %2415 = vmatpush2.bf16.msra.mxu0 %v852
        %2416 = vmatprep.subr.bf16.mxu0 %v837
        %2417 = vmatpush2.bf16.msra.mxu0 %v836
        %2418 = vmatprep.subr.bf16.mxu0 %v821
        %2419 = vmatpush2.bf16.msra.mxu0 %v820
        %2420 = vmatprep.mubr.bf16.mxu0 %v1971
        %2421 = vmatmul.mubr.bf16.gmra.mxu0 %v1970
        %v2422 = vpop.f32.mrf.mxu0
        %v2423 = vadd.f32 0.0, %v2422
        %v2424 = vpop.f32.mrf.mxu0
        %v2425 = vadd.f32 0.0, %v2424
        %v2426 = vpop.f32.mrf.mxu0
        %v2427 = vpop.f32.mrf.mxu0
        %2428 = vdwg.mxu0
        %2429 = vmatprep.subr.bf16.mxu0 %v1061
        %2430 = vmatpush1.bf16.msra.mxu0 %v1060
        %2431 = vmatprep.subr.bf16.mxu0 %v1045
        %2432 = vmatpush1.bf16.msra.mxu0 %v1044
        %2433 = vmatprep.subr.bf16.mxu0 %v1029
        %2434 = vmatpush1.bf16.msra.mxu0 %v1028
        %2435 = vmatprep.subr.bf16.mxu0 %v1013
        %2436 = vmatpush1.bf16.msra.mxu0 %v1012
        %2437 = vmatprep.subr.bf16.mxu0 %v997
        %2438 = vmatpush1.bf16.msra.mxu0 %v996
        %2439 = vmatprep.subr.bf16.mxu0 %v981
        %2440 = vmatpush1.bf16.msra.mxu0 %v980
        %2441 = vmatprep.subr.bf16.mxu0 %v965
        %2442 = vmatpush1.bf16.msra.mxu0 %v964
        %2443 = vmatprep.subr.bf16.mxu0 %v949
        %2444 = vmatpush1.bf16.msra.mxu0 %v948
        %2445 = vmatprep.subr.bf16.mxu0 %v1189
        %2446 = vmatpush2.bf16.msra.mxu0 %v1188
        %2447 = vmatprep.subr.bf16.mxu0 %v1173
        %2448 = vmatpush2.bf16.msra.mxu0 %v1172
        %2449 = vmatprep.subr.bf16.mxu0 %v1157
        %2450 = vmatpush2.bf16.msra.mxu0 %v1156
        %2451 = vmatprep.subr.bf16.mxu0 %v1141
        %2452 = vmatpush2.bf16.msra.mxu0 %v1140
        %2453 = vmatprep.subr.bf16.mxu0 %v1125
        %2454 = vmatpush2.bf16.msra.mxu0 %v1124
        %2455 = vmatprep.subr.bf16.mxu0 %v1109
        %2456 = vmatpush2.bf16.msra.mxu0 %v1108
        %2457 = vmatprep.subr.bf16.mxu0 %v1093
        %2458 = vmatpush2.bf16.msra.mxu0 %v1092
        %2459 = vmatprep.subr.bf16.mxu0 %v1077
        %2460 = vmatpush2.bf16.msra.mxu0 %v1076
        %2461 = vmatprep.mubr.bf16.mxu0 %v1973
        %2462 = vmatmul.mubr.bf16.gmra.mxu0 %v1972
        %v2463 = vpop.f32.mrf.mxu0
        %v2464 = vadd.f32 %v2423, %v2463
        %v2465 = vpop.f32.mrf.mxu0
        %v2466 = vadd.f32 %v2425, %v2465
        %v2467 = vpop.f32.mrf.mxu0
        %v2468 = vpop.f32.mrf.mxu0
        %2469 = vdwg.mxu0
        %2470 = vmatprep.subr.bf16.mxu0 %v807
        %2471 = vmatpush1.bf16.msra.mxu0 %v806
        %2472 = vmatprep.subr.bf16.mxu0 %v791
        %2473 = vmatpush1.bf16.msra.mxu0 %v790
        %2474 = vmatprep.subr.bf16.mxu0 %v775
        %2475 = vmatpush1.bf16.msra.mxu0 %v774
        %2476 = vmatprep.subr.bf16.mxu0 %v759
        %2477 = vmatpush1.bf16.msra.mxu0 %v758
        %2478 = vmatprep.subr.bf16.mxu0 %v743
        %2479 = vmatpush1.bf16.msra.mxu0 %v742
        %2480 = vmatprep.subr.bf16.mxu0 %v727
        %2481 = vmatpush1.bf16.msra.mxu0 %v726
        %2482 = vmatprep.subr.bf16.mxu0 %v711
        %2483 = vmatpush1.bf16.msra.mxu0 %v710
        %2484 = vmatprep.subr.bf16.mxu0 %v695
        %2485 = vmatpush1.bf16.msra.mxu0 %v694
        %2486 = vmatprep.subr.bf16.mxu0 %v935
        %2487 = vmatpush2.bf16.msra.mxu0 %v934
        %2488 = vmatprep.subr.bf16.mxu0 %v919
        %2489 = vmatpush2.bf16.msra.mxu0 %v918
        %2490 = vmatprep.subr.bf16.mxu0 %v903
        %2491 = vmatpush2.bf16.msra.mxu0 %v902
        %2492 = vmatprep.subr.bf16.mxu0 %v887
        %2493 = vmatpush2.bf16.msra.mxu0 %v886
        %2494 = vmatprep.subr.bf16.mxu0 %v871
        %2495 = vmatpush2.bf16.msra.mxu0 %v870
        %2496 = vmatprep.subr.bf16.mxu0 %v855
        %2497 = vmatpush2.bf16.msra.mxu0 %v854
        %2498 = vmatprep.subr.bf16.mxu0 %v839
        %2499 = vmatpush2.bf16.msra.mxu0 %v838
        %2500 = vmatprep.subr.bf16.mxu0 %v823
        %2501 = vmatpush2.bf16.msra.mxu0 %v822
        %2502 = vmatprep.mubr.bf16.mxu0 %v1971
        %2503 = vmatmul.mubr.bf16.gmra.mxu0 %v1970
        %v2504 = vpop.f32.mrf.mxu0
        %v2505 = vadd.f32 0.0, %v2504
        %v2506 = vpop.f32.mrf.mxu0
        %v2507 = vadd.f32 0.0, %v2506
        %v2508 = vpop.f32.mrf.mxu0
        %v2509 = vpop.f32.mrf.mxu0
        %2510 = vdwg.mxu0
        %2511 = vmatprep.subr.bf16.mxu0 %v1063
        %2512 = vmatpush1.bf16.msra.mxu0 %v1062
        %2513 = vmatprep.subr.bf16.mxu0 %v1047
        %2514 = vmatpush1.bf16.msra.mxu0 %v1046
        %2515 = vmatprep.subr.bf16.mxu0 %v1031
        %2516 = vmatpush1.bf16.msra.mxu0 %v1030
        %2517 = vmatprep.subr.bf16.mxu0 %v1015
        %2518 = vmatpush1.bf16.msra.mxu0 %v1014
        %2519 = vmatprep.subr.bf16.mxu0 %v999
        %2520 = vmatpush1.bf16.msra.mxu0 %v998
        %2521 = vmatprep.subr.bf16.mxu0 %v983
        %2522 = vmatpush1.bf16.msra.mxu0 %v982
        %2523 = vmatprep.subr.bf16.mxu0 %v967
        %2524 = vmatpush1.bf16.msra.mxu0 %v966
        %2525 = vmatprep.subr.bf16.mxu0 %v951
        %2526 = vmatpush1.bf16.msra.mxu0 %v950
        %2527 = vmatprep.subr.bf16.mxu0 %v1191
        %2528 = vmatpush2.bf16.msra.mxu0 %v1190
        %2529 = vmatprep.subr.bf16.mxu0 %v1175
        %2530 = vmatpush2.bf16.msra.mxu0 %v1174
        %2531 = vmatprep.subr.bf16.mxu0 %v1159
        %2532 = vmatpush2.bf16.msra.mxu0 %v1158
        %2533 = vmatprep.subr.bf16.mxu0 %v1143
        %2534 = vmatpush2.bf16.msra.mxu0 %v1142
        %2535 = vmatprep.subr.bf16.mxu0 %v1127
        %2536 = vmatpush2.bf16.msra.mxu0 %v1126
        %2537 = vmatprep.subr.bf16.mxu0 %v1111
        %2538 = vmatpush2.bf16.msra.mxu0 %v1110
        %2539 = vmatprep.subr.bf16.mxu0 %v1095
        %2540 = vmatpush2.bf16.msra.mxu0 %v1094
        %2541 = vmatprep.subr.bf16.mxu0 %v1079
        %2542 = vmatpush2.bf16.msra.mxu0 %v1078
        %2543 = vmatprep.mubr.bf16.mxu0 %v1973
        %2544 = vmatmul.mubr.bf16.gmra.mxu0 %v1972
        %v2545 = vpop.f32.mrf.mxu0
        %v2546 = vadd.f32 %v2505, %v2545
        %v2547 = vpop.f32.mrf.mxu0
        %v2548 = vadd.f32 %v2507, %v2547
        %v2549 = vpop.f32.mrf.mxu0
        %v2550 = vpop.f32.mrf.mxu0
        %2551 = vdwg.mxu0
        %2552 = vmatprep.subr.bf16.mxu0 %v809
        %2553 = vmatpush1.bf16.msra.mxu0 %v808
        %2554 = vmatprep.subr.bf16.mxu0 %v793
        %2555 = vmatpush1.bf16.msra.mxu0 %v792
        %2556 = vmatprep.subr.bf16.mxu0 %v777
        %2557 = vmatpush1.bf16.msra.mxu0 %v776
        %2558 = vmatprep.subr.bf16.mxu0 %v761
        %2559 = vmatpush1.bf16.msra.mxu0 %v760
        %2560 = vmatprep.subr.bf16.mxu0 %v745
        %2561 = vmatpush1.bf16.msra.mxu0 %v744
        %2562 = vmatprep.subr.bf16.mxu0 %v729
        %2563 = vmatpush1.bf16.msra.mxu0 %v728
        %2564 = vmatprep.subr.bf16.mxu0 %v713
        %2565 = vmatpush1.bf16.msra.mxu0 %v712
        %2566 = vmatprep.subr.bf16.mxu0 %v697
        %2567 = vmatpush1.bf16.msra.mxu0 %v696
        %2568 = vmatprep.subr.bf16.mxu0 %v937
        %2569 = vmatpush2.bf16.msra.mxu0 %v936
        %2570 = vmatprep.subr.bf16.mxu0 %v921
        %2571 = vmatpush2.bf16.msra.mxu0 %v920
        %2572 = vmatprep.subr.bf16.mxu0 %v905
        %2573 = vmatpush2.bf16.msra.mxu0 %v904
        %2574 = vmatprep.subr.bf16.mxu0 %v889
        %2575 = vmatpush2.bf16.msra.mxu0 %v888
        %2576 = vmatprep.subr.bf16.mxu0 %v873
        %2577 = vmatpush2.bf16.msra.mxu0 %v872
        %2578 = vmatprep.subr.bf16.mxu0 %v857
        %2579 = vmatpush2.bf16.msra.mxu0 %v856
        %2580 = vmatprep.subr.bf16.mxu0 %v841
        %2581 = vmatpush2.bf16.msra.mxu0 %v840
        %2582 = vmatprep.subr.bf16.mxu0 %v825
        %2583 = vmatpush2.bf16.msra.mxu0 %v824
        %2584 = vmatprep.mubr.bf16.mxu0 %v1971
        %2585 = vmatmul.mubr.bf16.gmra.mxu0 %v1970
        %v2586 = vpop.f32.mrf.mxu0
        %v2587 = vadd.f32 0.0, %v2586
        %v2588 = vpop.f32.mrf.mxu0
        %v2589 = vadd.f32 0.0, %v2588
        %v2590 = vpop.f32.mrf.mxu0
        %v2591 = vpop.f32.mrf.mxu0
        %2592 = vdwg.mxu0
        %2593 = vmatprep.subr.bf16.mxu0 %v1065
        %2594 = vmatpush1.bf16.msra.mxu0 %v1064
        %2595 = vmatprep.subr.bf16.mxu0 %v1049
        %2596 = vmatpush1.bf16.msra.mxu0 %v1048
        %2597 = vmatprep.subr.bf16.mxu0 %v1033
        %2598 = vmatpush1.bf16.msra.mxu0 %v1032
        %2599 = vmatprep.subr.bf16.mxu0 %v1017
        %2600 = vmatpush1.bf16.msra.mxu0 %v1016
        %2601 = vmatprep.subr.bf16.mxu0 %v1001
        %2602 = vmatpush1.bf16.msra.mxu0 %v1000
        %2603 = vmatprep.subr.bf16.mxu0 %v985
        %2604 = vmatpush1.bf16.msra.mxu0 %v984
        %2605 = vmatprep.subr.bf16.mxu0 %v969
        %2606 = vmatpush1.bf16.msra.mxu0 %v968
        %2607 = vmatprep.subr.bf16.mxu0 %v953
        %2608 = vmatpush1.bf16.msra.mxu0 %v952
        %2609 = vmatprep.subr.bf16.mxu0 %v1193
        %2610 = vmatpush2.bf16.msra.mxu0 %v1192
        %2611 = vmatprep.subr.bf16.mxu0 %v1177
        %2612 = vmatpush2.bf16.msra.mxu0 %v1176
        %2613 = vmatprep.subr.bf16.mxu0 %v1161
        %2614 = vmatpush2.bf16.msra.mxu0 %v1160
        %2615 = vmatprep.subr.bf16.mxu0 %v1145
        %2616 = vmatpush2.bf16.msra.mxu0 %v1144
        %2617 = vmatprep.subr.bf16.mxu0 %v1129
        %2618 = vmatpush2.bf16.msra.mxu0 %v1128
        %2619 = vmatprep.subr.bf16.mxu0 %v1113
        %2620 = vmatpush2.bf16.msra.mxu0 %v1112
        %2621 = vmatprep.subr.bf16.mxu0 %v1097
        %2622 = vmatpush2.bf16.msra.mxu0 %v1096
        %2623 = vmatprep.subr.bf16.mxu0 %v1081
        %2624 = vmatpush2.bf16.msra.mxu0 %v1080
        %2625 = vmatprep.mubr.bf16.mxu0 %v1973
        %2626 = vmatmul.mubr.bf16.gmra.mxu0 %v1972
        %v2627 = vpop.f32.mrf.mxu0
        %v2628 = vadd.f32 %v2587, %v2627
        %v2629 = vpop.f32.mrf.mxu0
        %v2630 = vadd.f32 %v2589, %v2629
        %v2631 = vpop.f32.mrf.mxu0
        %v2632 = vpop.f32.mrf.mxu0
        %2633 = vdwg.mxu0
        %v2634 = vld [vmem:[%s356] sm:$0xff]
        %v2635 = vld [vmem:[%s356 + $0x8] sm:$0xff]
        %v2638 = vlaneseq
        %v2639 = vshrl.u32 %v2638, 7
        %v2640 = vsub.s32 0, %v2639
        %v2641 = vrot.slane %v2634, %v2640
        %v2642 = vlaneseq
        %v2643 = vshrl.u32 %v2642, 7
        %v2644 = vsub.s32 1, %v2643
        %v2645 = vrot.slane %v2634, %v2644
        %v2646 = vlaneseq
        %v2647 = vshrl.u32 %v2646, 7
        %v2648 = vsub.s32 2, %v2647
        %v2649 = vrot.slane %v2634, %v2648
        %v2650 = vlaneseq
        %v2651 = vshrl.u32 %v2650, 7
        %v2652 = vsub.s32 3, %v2651
        %v2653 = vrot.slane %v2634, %v2652
        %v2654 = vlaneseq
        %v2655 = vshrl.u32 %v2654, 7
        %v2656 = vsub.s32 4, %v2655
        %v2657 = vrot.slane %v2634, %v2656
        %v2658 = vlaneseq
        %v2659 = vshrl.u32 %v2658, 7
        %v2660 = vsub.s32 5, %v2659
        %v2661 = vrot.slane %v2634, %v2660
        %v2662 = vlaneseq
        %v2663 = vshrl.u32 %v2662, 7
        %v2664 = vsub.s32 6, %v2663
        %v2665 = vrot.slane %v2634, %v2664
        %v2666 = vlaneseq
        %v2667 = vshrl.u32 %v2666, 7
        %v2668 = vsub.s32 7, %v2667
        %v2669 = vrot.slane %v2634, %v2668
        %v2670 = vlaneseq
        %v2671 = vshrl.u32 %v2670, 7
        %v2672 = vsub.s32 0, %v2671
        %v2673 = vrot.slane %v2635, %v2672
        %v2674 = vlaneseq
        %v2675 = vshrl.u32 %v2674, 7
        %v2676 = vsub.s32 1, %v2675
        %v2677 = vrot.slane %v2635, %v2676
        %v2678 = vlaneseq
        %v2679 = vshrl.u32 %v2678, 7
        %v2680 = vsub.s32 2, %v2679
        %v2681 = vrot.slane %v2635, %v2680
        %v2682 = vlaneseq
        %v2683 = vshrl.u32 %v2682, 7
        %v2684 = vsub.s32 3, %v2683
        %v2685 = vrot.slane %v2635, %v2684
        %v2686 = vlaneseq
        %v2687 = vshrl.u32 %v2686, 7
        %v2688 = vsub.s32 4, %v2687
        %v2689 = vrot.slane %v2635, %v2688
        %v2690 = vlaneseq
        %v2691 = vshrl.u32 %v2690, 7
        %v2692 = vsub.s32 5, %v2691
        %v2693 = vrot.slane %v2635, %v2692
        %v2694 = vlaneseq
        %v2695 = vshrl.u32 %v2694, 7
        %v2696 = vsub.s32 6, %v2695
        %v2697 = vrot.slane %v2635, %v2696
        %v2698 = vlaneseq
        %v2699 = vshrl.u32 %v2698, 7
        %v2700 = vsub.s32 7, %v2699
        %v2701 = vrot.slane %v2635, %v2700
        %v2718 = vmul.f32 %v2054, %v2641
        %v2719 = vmul.f32 %v2056, %v2645
        %v2720 = vmul.f32 %v2136, %v2649
        %v2721 = vmul.f32 %v2138, %v2653
        %v2722 = vmul.f32 %v2218, %v2657
        %v2723 = vmul.f32 %v2220, %v2661
        %v2724 = vmul.f32 %v2300, %v2665
        %v2725 = vmul.f32 %v2302, %v2669
        %v2726 = vmul.f32 %v2382, %v2673
        %v2727 = vmul.f32 %v2384, %v2677
        %v2728 = vmul.f32 %v2464, %v2681
        %v2729 = vmul.f32 %v2466, %v2685
        %v2730 = vmul.f32 %v2546, %v2689
        %v2731 = vmul.f32 %v2548, %v2693
        %v2732 = vmul.f32 %v2628, %v2697
        %v2733 = vmul.f32 %v2630, %v2701
        %v2734 = vld [vmem:[%s365] sm:$0xff]
        %v2735 = vld [vmem:[%s365 + $0x8] sm:$0xff]
        %v2738 = vlaneseq
        %v2739 = vshrl.u32 %v2738, 7
        %v2740 = vsub.s32 0, %v2739
        %v2741 = vrot.slane %v2734, %v2740
        %v2742 = vlaneseq
        %v2743 = vshrl.u32 %v2742, 7
        %v2744 = vsub.s32 1, %v2743
        %v2745 = vrot.slane %v2734, %v2744
        %v2746 = vlaneseq
        %v2747 = vshrl.u32 %v2746, 7
        %v2748 = vsub.s32 2, %v2747
        %v2749 = vrot.slane %v2734, %v2748
        %v2750 = vlaneseq
        %v2751 = vshrl.u32 %v2750, 7
        %v2752 = vsub.s32 3, %v2751
        %v2753 = vrot.slane %v2734, %v2752
        %v2754 = vlaneseq
        %v2755 = vshrl.u32 %v2754, 7
        %v2756 = vsub.s32 4, %v2755
        %v2757 = vrot.slane %v2734, %v2756
        %v2758 = vlaneseq
        %v2759 = vshrl.u32 %v2758, 7
        %v2760 = vsub.s32 5, %v2759
        %v2761 = vrot.slane %v2734, %v2760
        %v2762 = vlaneseq
        %v2763 = vshrl.u32 %v2762, 7
        %v2764 = vsub.s32 6, %v2763
        %v2765 = vrot.slane %v2734, %v2764
        %v2766 = vlaneseq
        %v2767 = vshrl.u32 %v2766, 7
        %v2768 = vsub.s32 7, %v2767
        %v2769 = vrot.slane %v2734, %v2768
        %v2770 = vlaneseq
        %v2771 = vshrl.u32 %v2770, 7
        %v2772 = vsub.s32 0, %v2771
        %v2773 = vrot.slane %v2735, %v2772
        %v2774 = vlaneseq
        %v2775 = vshrl.u32 %v2774, 7
        %v2776 = vsub.s32 1, %v2775
        %v2777 = vrot.slane %v2735, %v2776
        %v2778 = vlaneseq
        %v2779 = vshrl.u32 %v2778, 7
        %v2780 = vsub.s32 2, %v2779
        %v2781 = vrot.slane %v2735, %v2780
        %v2782 = vlaneseq
        %v2783 = vshrl.u32 %v2782, 7
        %v2784 = vsub.s32 3, %v2783
        %v2785 = vrot.slane %v2735, %v2784
        %v2786 = vlaneseq
        %v2787 = vshrl.u32 %v2786, 7
        %v2788 = vsub.s32 4, %v2787
        %v2789 = vrot.slane %v2735, %v2788
        %v2790 = vlaneseq
        %v2791 = vshrl.u32 %v2790, 7
        %v2792 = vsub.s32 5, %v2791
        %v2793 = vrot.slane %v2735, %v2792
        %v2794 = vlaneseq
        %v2795 = vshrl.u32 %v2794, 7
        %v2796 = vsub.s32 6, %v2795
        %v2797 = vrot.slane %v2735, %v2796
        %v2798 = vlaneseq
        %v2799 = vshrl.u32 %v2798, 7
        %v2800 = vsub.s32 7, %v2799
        %v2801 = vrot.slane %v2735, %v2800
        %v2818 = vadd.f32 %v2718, %v2741
        %v2819 = vadd.f32 %v2719, %v2745
        %v2820 = vadd.f32 %v2720, %v2749
        %v2821 = vadd.f32 %v2721, %v2753
        %v2822 = vadd.f32 %v2722, %v2757
        %v2823 = vadd.f32 %v2723, %v2761
        %v2824 = vadd.f32 %v2724, %v2765
        %v2825 = vadd.f32 %v2725, %v2769
        %v2826 = vadd.f32 %v2726, %v2773
        %v2827 = vadd.f32 %v2727, %v2777
        %v2828 = vadd.f32 %v2728, %v2781
        %v2829 = vadd.f32 %v2729, %v2785
        %v2830 = vadd.f32 %v2730, %v2789
        %v2831 = vadd.f32 %v2731, %v2793
        %v2832 = vadd.f32 %v2732, %v2797
        %v2833 = vadd.f32 %v2733, %v2801
        %vm2834 = vcmp.gt.f32.partialorder %v2818, 0.0
        %vm2835 = vcmp.gt.f32.partialorder %v2819, 0.0
        %vm2836 = vcmp.gt.f32.partialorder %v2820, 0.0
        %vm2837 = vcmp.gt.f32.partialorder %v2821, 0.0
        %vm2838 = vcmp.gt.f32.partialorder %v2822, 0.0
        %vm2839 = vcmp.gt.f32.partialorder %v2823, 0.0
        %vm2840 = vcmp.gt.f32.partialorder %v2824, 0.0
        %vm2841 = vcmp.gt.f32.partialorder %v2825, 0.0
        %vm2842 = vcmp.gt.f32.partialorder %v2826, 0.0
        %vm2843 = vcmp.gt.f32.partialorder %v2827, 0.0
        %vm2844 = vcmp.gt.f32.partialorder %v2828, 0.0
        %vm2845 = vcmp.gt.f32.partialorder %v2829, 0.0
        %vm2846 = vcmp.gt.f32.partialorder %v2830, 0.0
        %vm2847 = vcmp.gt.f32.partialorder %v2831, 0.0
        %vm2848 = vcmp.gt.f32.partialorder %v2832, 0.0
        %vm2849 = vcmp.gt.f32.partialorder %v2833, 0.0
        %v2850 = vmul.f32 %v2818, 0.2
        %v2851 = vmul.f32 %v2819, 0.2
        %v2852 = vmul.f32 %v2820, 0.2
        %v2853 = vmul.f32 %v2821, 0.2
        %v2854 = vmul.f32 %v2822, 0.2
        %v2855 = vmul.f32 %v2823, 0.2
        %v2856 = vmul.f32 %v2824, 0.2
        %v2857 = vmul.f32 %v2825, 0.2
        %v2858 = vmul.f32 %v2826, 0.2
        %v2859 = vmul.f32 %v2827, 0.2
        %v2860 = vmul.f32 %v2828, 0.2
        %v2861 = vmul.f32 %v2829, 0.2
        %v2862 = vmul.f32 %v2830, 0.2
        %v2863 = vmul.f32 %v2831, 0.2
        %v2864 = vmul.f32 %v2832, 0.2
        %v2865 = vmul.f32 %v2833, 0.2
        %v2866 = vsel %vm2834, %v2818, %v2850
        %v2867 = vsel %vm2835, %v2819, %v2851
        %v2868 = vsel %vm2836, %v2820, %v2852
        %v2869 = vsel %vm2837, %v2821, %v2853
        %v2870 = vsel %vm2838, %v2822, %v2854
        %v2871 = vsel %vm2839, %v2823, %v2855
        %v2872 = vsel %vm2840, %v2824, %v2856
        %v2873 = vsel %vm2841, %v2825, %v2857
        %v2874 = vsel %vm2842, %v2826, %v2858
        %v2875 = vsel %vm2843, %v2827, %v2859
        %v2876 = vsel %vm2844, %v2828, %v2860
        %v2877 = vsel %vm2845, %v2829, %v2861
        %v2878 = vsel %vm2846, %v2830, %v2862
        %v2879 = vsel %vm2847, %v2831, %v2863
        %v2880 = vsel %vm2848, %v2832, %v2864
        %v2881 = vsel %vm2849, %v2833, %v2865
        %v2882 = vpack.c.bf16 %v2866, %v2866
        %v2883 = vpack.c.bf16 %v2867, %v2867
        %v2884 = vpack.c.bf16 %v2868, %v2868
        %v2885 = vpack.c.bf16 %v2869, %v2869
        %v2886 = vpack.c.bf16 %v2870, %v2870
        %v2887 = vpack.c.bf16 %v2871, %v2871
        %v2888 = vpack.c.bf16 %v2872, %v2872
        %v2889 = vpack.c.bf16 %v2873, %v2873
        %v2890 = vpack.c.bf16 %v2874, %v2874
        %v2891 = vpack.c.bf16 %v2875, %v2875
        %v2892 = vpack.c.bf16 %v2876, %v2876
        %v2893 = vpack.c.bf16 %v2877, %v2877
        %v2894 = vpack.c.bf16 %v2878, %v2878
        %v2895 = vpack.c.bf16 %v2879, %v2879
        %v2896 = vpack.c.bf16 %v2880, %v2880
        %v2897 = vpack.c.bf16 %v2881, %v2881
        %2898 = vmatprep.subr.bf16.mxu0 %v1479
        %2899 = vmatpush1.bf16.msra.mxu0 %v1478
        %2900 = vmatprep.subr.bf16.mxu0 %v1475
        %2901 = vmatpush1.bf16.msra.mxu0 %v1474
        %2902 = vmatprep.subr.bf16.mxu0 %v1471
        %2903 = vmatpush1.bf16.msra.mxu0 %v1470
        %2904 = vmatprep.subr.bf16.mxu0 %v1467
        %2905 = vmatpush1.bf16.msra.mxu0 %v1466
        %2906 = vmatprep.subr.bf16.mxu0 %v1463
        %2907 = vmatpush1.bf16.msra.mxu0 %v1462
        %2908 = vmatprep.subr.bf16.mxu0 %v1459
        %2909 = vmatpush1.bf16.msra.mxu0 %v1458
        %2910 = vmatprep.subr.bf16.mxu0 %v1455
        %2911 = vmatpush1.bf16.msra.mxu0 %v1454
        %2912 = vmatprep.subr.bf16.mxu0 %v1451
        %2913 = vmatpush1.bf16.msra.mxu0 %v1450
        %2914 = vmatprep.subr.bf16.mxu0 %v1511
        %2915 = vmatpush2.bf16.msra.mxu0 %v1510
        %2916 = vmatprep.subr.bf16.mxu0 %v1507
        %2917 = vmatpush2.bf16.msra.mxu0 %v1506
        %2918 = vmatprep.subr.bf16.mxu0 %v1503
        %2919 = vmatpush2.bf16.msra.mxu0 %v1502
        %2920 = vmatprep.subr.bf16.mxu0 %v1499
        %2921 = vmatpush2.bf16.msra.mxu0 %v1498
        %2922 = vmatprep.subr.bf16.mxu0 %v1495
        %2923 = vmatpush2.bf16.msra.mxu0 %v1494
        %2924 = vmatprep.subr.bf16.mxu0 %v1491
        %2925 = vmatpush2.bf16.msra.mxu0 %v1490
        %2926 = vmatprep.subr.bf16.mxu0 %v1487
        %2927 = vmatpush2.bf16.msra.mxu0 %v1486
        %2928 = vmatprep.subr.bf16.mxu0 %v1483
        %2929 = vmatpush2.bf16.msra.mxu0 %v1482
        %2930 = vmatprep.mubr.bf16.mxu0 %v2883
        %2931 = vmatmul.mubr.bf16.gmra.mxu0 %v2882
        %v2932 = vpop.f32.mrf.mxu0
        %v2933 = vadd.f32 0.0, %v2932
        %v2934 = vpop.f32.mrf.mxu0
        %v2935 = vadd.f32 0.0, %v2934
        %v2936 = vpop.f32.mrf.mxu0
        %v2937 = vpop.f32.mrf.mxu0
        %2938 = vdwg.mxu0
        %2939 = vmatprep.subr.bf16.mxu0 %v1543
        %2940 = vmatpush1.bf16.msra.mxu0 %v1542
        %2941 = vmatprep.subr.bf16.mxu0 %v1539
        %2942 = vmatpush1.bf16.msra.mxu0 %v1538
        %2943 = vmatprep.subr.bf16.mxu0 %v1535
        %2944 = vmatpush1.bf16.msra.mxu0 %v1534
        %2945 = vmatprep.subr.bf16.mxu0 %v1531
        %2946 = vmatpush1.bf16.msra.mxu0 %v1530
        %2947 = vmatprep.subr.bf16.mxu0 %v1527
        %2948 = vmatpush1.bf16.msra.mxu0 %v1526
        %2949 = vmatprep.subr.bf16.mxu0 %v1523
        %2950 = vmatpush1.bf16.msra.mxu0 %v1522
        %2951 = vmatprep.subr.bf16.mxu0 %v1519
        %2952 = vmatpush1.bf16.msra.mxu0 %v1518
        %2953 = vmatprep.subr.bf16.mxu0 %v1515
        %2954 = vmatpush1.bf16.msra.mxu0 %v1514
        %2955 = vmatprep.subr.bf16.mxu0 %v1575
        %2956 = vmatpush2.bf16.msra.mxu0 %v1574
        %2957 = vmatprep.subr.bf16.mxu0 %v1571
        %2958 = vmatpush2.bf16.msra.mxu0 %v1570
        %2959 = vmatprep.subr.bf16.mxu0 %v1567
        %2960 = vmatpush2.bf16.msra.mxu0 %v1566
        %2961 = vmatprep.subr.bf16.mxu0 %v1563
        %2962 = vmatpush2.bf16.msra.mxu0 %v1562
        %2963 = vmatprep.subr.bf16.mxu0 %v1559
        %2964 = vmatpush2.bf16.msra.mxu0 %v1558
        %2965 = vmatprep.subr.bf16.mxu0 %v1555
        %2966 = vmatpush2.bf16.msra.mxu0 %v1554
        %2967 = vmatprep.subr.bf16.mxu0 %v1551
        %2968 = vmatpush2.bf16.msra.mxu0 %v1550
        %2969 = vmatprep.subr.bf16.mxu0 %v1547
        %2970 = vmatpush2.bf16.msra.mxu0 %v1546
        %2971 = vmatprep.mubr.bf16.mxu0 %v2885
        %2972 = vmatmul.mubr.bf16.gmra.mxu0 %v2884
        %v2973 = vpop.f32.mrf.mxu0
        %v2974 = vadd.f32 %v2933, %v2973
        %v2975 = vpop.f32.mrf.mxu0
        %v2976 = vadd.f32 %v2935, %v2975
        %v2977 = vpop.f32.mrf.mxu0
        %v2978 = vpop.f32.mrf.mxu0
        %2979 = vdwg.mxu0
        %2980 = vmatprep.subr.bf16.mxu0 %v1607
        %2981 = vmatpush1.bf16.msra.mxu0 %v1606
        %2982 = vmatprep.subr.bf16.mxu0 %v1603
        %2983 = vmatpush1.bf16.msra.mxu0 %v1602
        %2984 = vmatprep.subr.bf16.mxu0 %v1599
        %2985 = vmatpush1.bf16.msra.mxu0 %v1598
        %2986 = vmatprep.subr.bf16.mxu0 %v1595
        %2987 = vmatpush1.bf16.msra.mxu0 %v1594
        %2988 = vmatprep.subr.bf16.mxu0 %v1591
        %2989 = vmatpush1.bf16.msra.mxu0 %v1590
        %2990 = vmatprep.subr.bf16.mxu0 %v1587
        %2991 = vmatpush1.bf16.msra.mxu0 %v1586
        %2992 = vmatprep.subr.bf16.mxu0 %v1583
        %2993 = vmatpush1.bf16.msra.mxu0 %v1582
        %2994 = vmatprep.subr.bf16.mxu0 %v1579
        %2995 = vmatpush1.bf16.msra.mxu0 %v1578
        %2996 = vmatprep.subr.bf16.mxu0 %v1639
        %2997 = vmatpush2.bf16.msra.mxu0 %v1638
        %2998 = vmatprep.subr.bf16.mxu0 %v1635
        %2999 = vmatpush2.bf16.msra.mxu0 %v1634
        %3000 = vmatprep.subr.bf16.mxu0 %v1631
        %3001 = vmatpush2.bf16.msra.mxu0 %v1630
        %3002 = vmatprep.subr.bf16.mxu0 %v1627
        %3003 = vmatpush2.bf16.msra.mxu0 %v1626
        %3004 = vmatprep.subr.bf16.mxu0 %v1623
        %3005 = vmatpush2.bf16.msra.mxu0 %v1622
        %3006 = vmatprep.subr.bf16.mxu0 %v1619
        %3007 = vmatpush2.bf16.msra.mxu0 %v1618
        %3008 = vmatprep.subr.bf16.mxu0 %v1615
        %3009 = vmatpush2.bf16.msra.mxu0 %v1614
        %3010 = vmatprep.subr.bf16.mxu0 %v1611
        %3011 = vmatpush2.bf16.msra.mxu0 %v1610
        %3012 = vmatprep.mubr.bf16.mxu0 %v2887
        %3013 = vmatmul.mubr.bf16.gmra.mxu0 %v2886
        %v3014 = vpop.f32.mrf.mxu0
        %v3015 = vadd.f32 %v2974, %v3014
        %v3016 = vpop.f32.mrf.mxu0
        %v3017 = vadd.f32 %v2976, %v3016
        %v3018 = vpop.f32.mrf.mxu0
        %v3019 = vpop.f32.mrf.mxu0
        %3020 = vdwg.mxu0
        %3021 = vmatprep.subr.bf16.mxu0 %v1671
        %3022 = vmatpush1.bf16.msra.mxu0 %v1670
        %3023 = vmatprep.subr.bf16.mxu0 %v1667
        %3024 = vmatpush1.bf16.msra.mxu0 %v1666
        %3025 = vmatprep.subr.bf16.mxu0 %v1663
        %3026 = vmatpush1.bf16.msra.mxu0 %v1662
        %3027 = vmatprep.subr.bf16.mxu0 %v1659
        %3028 = vmatpush1.bf16.msra.mxu0 %v1658
        %3029 = vmatprep.subr.bf16.mxu0 %v1655
        %3030 = vmatpush1.bf16.msra.mxu0 %v1654
        %3031 = vmatprep.subr.bf16.mxu0 %v1651
        %3032 = vmatpush1.bf16.msra.mxu0 %v1650
        %3033 = vmatprep.subr.bf16.mxu0 %v1647
        %3034 = vmatpush1.bf16.msra.mxu0 %v1646
        %3035 = vmatprep.subr.bf16.mxu0 %v1643
        %3036 = vmatpush1.bf16.msra.mxu0 %v1642
        %3037 = vmatprep.subr.bf16.mxu0 %v1703
        %3038 = vmatpush2.bf16.msra.mxu0 %v1702
        %3039 = vmatprep.subr.bf16.mxu0 %v1699
        %3040 = vmatpush2.bf16.msra.mxu0 %v1698
        %3041 = vmatprep.subr.bf16.mxu0 %v1695
        %3042 = vmatpush2.bf16.msra.mxu0 %v1694
        %3043 = vmatprep.subr.bf16.mxu0 %v1691
        %3044 = vmatpush2.bf16.msra.mxu0 %v1690
        %3045 = vmatprep.subr.bf16.mxu0 %v1687
        %3046 = vmatpush2.bf16.msra.mxu0 %v1686
        %3047 = vmatprep.subr.bf16.mxu0 %v1683
        %3048 = vmatpush2.bf16.msra.mxu0 %v1682
        %3049 = vmatprep.subr.bf16.mxu0 %v1679
        %3050 = vmatpush2.bf16.msra.mxu0 %v1678
        %3051 = vmatprep.subr.bf16.mxu0 %v1675
        %3052 = vmatpush2.bf16.msra.mxu0 %v1674
        %3053 = vmatprep.mubr.bf16.mxu0 %v2889
        %3054 = vmatmul.mubr.bf16.gmra.mxu0 %v2888
        %v3055 = vpop.f32.mrf.mxu0
        %v3056 = vadd.f32 %v3015, %v3055
        %v3057 = vpop.f32.mrf.mxu0
        %v3058 = vadd.f32 %v3017, %v3057
        %v3059 = vpop.f32.mrf.mxu0
        %v3060 = vpop.f32.mrf.mxu0
        %3061 = vdwg.mxu0
        %3062 = vmatprep.subr.bf16.mxu0 %v1735
        %3063 = vmatpush1.bf16.msra.mxu0 %v1734
        %3064 = vmatprep.subr.bf16.mxu0 %v1731
        %3065 = vmatpush1.bf16.msra.mxu0 %v1730
        %3066 = vmatprep.subr.bf16.mxu0 %v1727
        %3067 = vmatpush1.bf16.msra.mxu0 %v1726
        %3068 = vmatprep.subr.bf16.mxu0 %v1723
        %3069 = vmatpush1.bf16.msra.mxu0 %v1722
        %3070 = vmatprep.subr.bf16.mxu0 %v1719
        %3071 = vmatpush1.bf16.msra.mxu0 %v1718
        %3072 = vmatprep.subr.bf16.mxu0 %v1715
        %3073 = vmatpush1.bf16.msra.mxu0 %v1714
        %3074 = vmatprep.subr.bf16.mxu0 %v1711
        %3075 = vmatpush1.bf16.msra.mxu0 %v1710
        %3076 = vmatprep.subr.bf16.mxu0 %v1707
        %3077 = vmatpush1.bf16.msra.mxu0 %v1706
        %3078 = vmatprep.subr.bf16.mxu0 %v1767
        %3079 = vmatpush2.bf16.msra.mxu0 %v1766
        %3080 = vmatprep.subr.bf16.mxu0 %v1763
        %3081 = vmatpush2.bf16.msra.mxu0 %v1762
        %3082 = vmatprep.subr.bf16.mxu0 %v1759
        %3083 = vmatpush2.bf16.msra.mxu0 %v1758
        %3084 = vmatprep.subr.bf16.mxu0 %v1755
        %3085 = vmatpush2.bf16.msra.mxu0 %v1754
        %3086 = vmatprep.subr.bf16.mxu0 %v1751
        %3087 = vmatpush2.bf16.msra.mxu0 %v1750
        %3088 = vmatprep.subr.bf16.mxu0 %v1747
        %3089 = vmatpush2.bf16.msra.mxu0 %v1746
        %3090 = vmatprep.subr.bf16.mxu0 %v1743
        %3091 = vmatpush2.bf16.msra.mxu0 %v1742
        %3092 = vmatprep.subr.bf16.mxu0 %v1739
        %3093 = vmatpush2.bf16.msra.mxu0 %v1738
        %3094 = vmatprep.mubr.bf16.mxu0 %v2891
        %3095 = vmatmul.mubr.bf16.gmra.mxu0 %v2890
        %v3096 = vpop.f32.mrf.mxu0
        %v3097 = vadd.f32 %v3056, %v3096
        %v3098 = vpop.f32.mrf.mxu0
        %v3099 = vadd.f32 %v3058, %v3098
        %v3100 = vpop.f32.mrf.mxu0
        %v3101 = vpop.f32.mrf.mxu0
        %3102 = vdwg.mxu0
        %3103 = vmatprep.subr.bf16.mxu0 %v1799
        %3104 = vmatpush1.bf16.msra.mxu0 %v1798
        %3105 = vmatprep.subr.bf16.mxu0 %v1795
        %3106 = vmatpush1.bf16.msra.mxu0 %v1794
        %3107 = vmatprep.subr.bf16.mxu0 %v1791
        %3108 = vmatpush1.bf16.msra.mxu0 %v1790
        %3109 = vmatprep.subr.bf16.mxu0 %v1787
        %3110 = vmatpush1.bf16.msra.mxu0 %v1786
        %3111 = vmatprep.subr.bf16.mxu0 %v1783
        %3112 = vmatpush1.bf16.msra.mxu0 %v1782
        %3113 = vmatprep.subr.bf16.mxu0 %v1779
        %3114 = vmatpush1.bf16.msra.mxu0 %v1778
        %3115 = vmatprep.subr.bf16.mxu0 %v1775
        %3116 = vmatpush1.bf16.msra.mxu0 %v1774
        %3117 = vmatprep.subr.bf16.mxu0 %v1771
        %3118 = vmatpush1.bf16.msra.mxu0 %v1770
        %3119 = vmatprep.subr.bf16.mxu0 %v1831
        %3120 = vmatpush2.bf16.msra.mxu0 %v1830
        %3121 = vmatprep.subr.bf16.mxu0 %v1827
        %3122 = vmatpush2.bf16.msra.mxu0 %v1826
        %3123 = vmatprep.subr.bf16.mxu0 %v1823
        %3124 = vmatpush2.bf16.msra.mxu0 %v1822
        %3125 = vmatprep.subr.bf16.mxu0 %v1819
        %3126 = vmatpush2.bf16.msra.mxu0 %v1818
        %3127 = vmatprep.subr.bf16.mxu0 %v1815
        %3128 = vmatpush2.bf16.msra.mxu0 %v1814
        %3129 = vmatprep.subr.bf16.mxu0 %v1811
        %3130 = vmatpush2.bf16.msra.mxu0 %v1810
        %3131 = vmatprep.subr.bf16.mxu0 %v1807
        %3132 = vmatpush2.bf16.msra.mxu0 %v1806
        %3133 = vmatprep.subr.bf16.mxu0 %v1803
        %3134 = vmatpush2.bf16.msra.mxu0 %v1802
        %3135 = vmatprep.mubr.bf16.mxu0 %v2893
        %3136 = vmatmul.mubr.bf16.gmra.mxu0 %v2892
        %v3137 = vpop.f32.mrf.mxu0
        %v3138 = vadd.f32 %v3097, %v3137
        %v3139 = vpop.f32.mrf.mxu0
        %v3140 = vadd.f32 %v3099, %v3139
        %v3141 = vpop.f32.mrf.mxu0
        %v3142 = vpop.f32.mrf.mxu0
        %3143 = vdwg.mxu0
        %3144 = vmatprep.subr.bf16.mxu0 %v1863
        %3145 = vmatpush1.bf16.msra.mxu0 %v1862
        %3146 = vmatprep.subr.bf16.mxu0 %v1859
        %3147 = vmatpush1.bf16.msra.mxu0 %v1858
        %3148 = vmatprep.subr.bf16.mxu0 %v1855
        %3149 = vmatpush1.bf16.msra.mxu0 %v1854
        %3150 = vmatprep.subr.bf16.mxu0 %v1851
        %3151 = vmatpush1.bf16.msra.mxu0 %v1850
        %3152 = vmatprep.subr.bf16.mxu0 %v1847
        %3153 = vmatpush1.bf16.msra.mxu0 %v1846
        %3154 = vmatprep.subr.bf16.mxu0 %v1843
        %3155 = vmatpush1.bf16.msra.mxu0 %v1842
        %3156 = vmatprep.subr.bf16.mxu0 %v1839
        %3157 = vmatpush1.bf16.msra.mxu0 %v1838
        %3158 = vmatprep.subr.bf16.mxu0 %v1835
        %3159 = vmatpush1.bf16.msra.mxu0 %v1834
        %3160 = vmatprep.subr.bf16.mxu0 %v1895
        %3161 = vmatpush2.bf16.msra.mxu0 %v1894
        %3162 = vmatprep.subr.bf16.mxu0 %v1891
        %3163 = vmatpush2.bf16.msra.mxu0 %v1890
        %3164 = vmatprep.subr.bf16.mxu0 %v1887
        %3165 = vmatpush2.bf16.msra.mxu0 %v1886
        %3166 = vmatprep.subr.bf16.mxu0 %v1883
        %3167 = vmatpush2.bf16.msra.mxu0 %v1882
        %3168 = vmatprep.subr.bf16.mxu0 %v1879
        %3169 = vmatpush2.bf16.msra.mxu0 %v1878
        %3170 = vmatprep.subr.bf16.mxu0 %v1875
        %3171 = vmatpush2.bf16.msra.mxu0 %v1874
        %3172 = vmatprep.subr.bf16.mxu0 %v1871
        %3173 = vmatpush2.bf16.msra.mxu0 %v1870
        %3174 = vmatprep.subr.bf16.mxu0 %v1867
        %3175 = vmatpush2.bf16.msra.mxu0 %v1866
        %3176 = vmatprep.mubr.bf16.mxu0 %v2895
        %3177 = vmatmul.mubr.bf16.gmra.mxu0 %v2894
        %v3178 = vpop.f32.mrf.mxu0
        %v3179 = vadd.f32 %v3138, %v3178
        %v3180 = vpop.f32.mrf.mxu0
        %v3181 = vadd.f32 %v3140, %v3180
        %v3182 = vpop.f32.mrf.mxu0
        %v3183 = vpop.f32.mrf.mxu0
        %3184 = vdwg.mxu0
        %3185 = vmatprep.subr.bf16.mxu0 %v1927
        %3186 = vmatpush1.bf16.msra.mxu0 %v1926
        %3187 = vmatprep.subr.bf16.mxu0 %v1923
        %3188 = vmatpush1.bf16.msra.mxu0 %v1922
        %3189 = vmatprep.subr.bf16.mxu0 %v1919
        %3190 = vmatpush1.bf16.msra.mxu0 %v1918
        %3191 = vmatprep.subr.bf16.mxu0 %v1915
        %3192 = vmatpush1.bf16.msra.mxu0 %v1914
        %3193 = vmatprep.subr.bf16.mxu0 %v1911
        %3194 = vmatpush1.bf16.msra.mxu0 %v1910
        %3195 = vmatprep.subr.bf16.mxu0 %v1907
        %3196 = vmatpush1.bf16.msra.mxu0 %v1906
        %3197 = vmatprep.subr.bf16.mxu0 %v1903
        %3198 = vmatpush1.bf16.msra.mxu0 %v1902
        %3199 = vmatprep.subr.bf16.mxu0 %v1899
        %3200 = vmatpush1.bf16.msra.mxu0 %v1898
        %3201 = vmatprep.subr.bf16.mxu0 %v1959
        %3202 = vmatpush2.bf16.msra.mxu0 %v1958
        %3203 = vmatprep.subr.bf16.mxu0 %v1955
        %3204 = vmatpush2.bf16.msra.mxu0 %v1954
        %3205 = vmatprep.subr.bf16.mxu0 %v1951
        %3206 = vmatpush2.bf16.msra.mxu0 %v1950
        %3207 = vmatprep.subr.bf16.mxu0 %v1947
        %3208 = vmatpush2.bf16.msra.mxu0 %v1946
        %3209 = vmatprep.subr.bf16.mxu0 %v1943
        %3210 = vmatpush2.bf16.msra.mxu0 %v1942
        %3211 = vmatprep.subr.bf16.mxu0 %v1939
        %3212 = vmatpush2.bf16.msra.mxu0 %v1938
        %3213 = vmatprep.subr.bf16.mxu0 %v1935
        %3214 = vmatpush2.bf16.msra.mxu0 %v1934
        %3215 = vmatprep.subr.bf16.mxu0 %v1931
        %3216 = vmatpush2.bf16.msra.mxu0 %v1930
        %3217 = vmatprep.mubr.bf16.mxu0 %v2897
        %3218 = vmatmul.mubr.bf16.gmra.mxu0 %v2896
        %v3219 = vpop.f32.mrf.mxu0
        %v3220 = vadd.f32 %v3179, %v3219
        %v3221 = vpop.f32.mrf.mxu0
        %v3222 = vadd.f32 %v3181, %v3221
        %v3223 = vpop.f32.mrf.mxu0
        %v3224 = vpop.f32.mrf.mxu0
        %3225 = vdwg.mxu0
        %3226 = vmatprep.subr.bf16.mxu0 %v1481
        %3227 = vmatpush1.bf16.msra.mxu0 %v1480
        %3228 = vmatprep.subr.bf16.mxu0 %v1477
        %3229 = vmatpush1.bf16.msra.mxu0 %v1476
        %3230 = vmatprep.subr.bf16.mxu0 %v1473
        %3231 = vmatpush1.bf16.msra.mxu0 %v1472
        %3232 = vmatprep.subr.bf16.mxu0 %v1469
        %3233 = vmatpush1.bf16.msra.mxu0 %v1468
        %3234 = vmatprep.subr.bf16.mxu0 %v1465
        %3235 = vmatpush1.bf16.msra.mxu0 %v1464
        %3236 = vmatprep.subr.bf16.mxu0 %v1461
        %3237 = vmatpush1.bf16.msra.mxu0 %v1460
        %3238 = vmatprep.subr.bf16.mxu0 %v1457
        %3239 = vmatpush1.bf16.msra.mxu0 %v1456
        %3240 = vmatprep.subr.bf16.mxu0 %v1453
        %3241 = vmatpush1.bf16.msra.mxu0 %v1452
        %3242 = vmatprep.subr.bf16.mxu0 %v1513
        %3243 = vmatpush2.bf16.msra.mxu0 %v1512
        %3244 = vmatprep.subr.bf16.mxu0 %v1509
        %3245 = vmatpush2.bf16.msra.mxu0 %v1508
        %3246 = vmatprep.subr.bf16.mxu0 %v1505
        %3247 = vmatpush2.bf16.msra.mxu0 %v1504
        %3248 = vmatprep.subr.bf16.mxu0 %v1501
        %3249 = vmatpush2.bf16.msra.mxu0 %v1500
        %3250 = vmatprep.subr.bf16.mxu0 %v1497
        %3251 = vmatpush2.bf16.msra.mxu0 %v1496
        %3252 = vmatprep.subr.bf16.mxu0 %v1493
        %3253 = vmatpush2.bf16.msra.mxu0 %v1492
        %3254 = vmatprep.subr.bf16.mxu0 %v1489
        %3255 = vmatpush2.bf16.msra.mxu0 %v1488
        %3256 = vmatprep.subr.bf16.mxu0 %v1485
        %3257 = vmatpush2.bf16.msra.mxu0 %v1484
        %3258 = vmatprep.mubr.bf16.mxu0 %v2883
        %3259 = vmatmul.mubr.bf16.gmra.mxu0 %v2882
        %v3260 = vpop.f32.mrf.mxu0
        %v3261 = vadd.f32 0.0, %v3260
        %v3262 = vpop.f32.mrf.mxu0
        %v3263 = vadd.f32 0.0, %v3262
        %v3264 = vpop.f32.mrf.mxu0
        %v3265 = vpop.f32.mrf.mxu0
        %3266 = vdwg.mxu0
        %3267 = vmatprep.subr.bf16.mxu0 %v1545
        %3268 = vmatpush1.bf16.msra.mxu0 %v1544
        %3269 = vmatprep.subr.bf16.mxu0 %v1541
        %3270 = vmatpush1.bf16.msra.mxu0 %v1540
        %3271 = vmatprep.subr.bf16.mxu0 %v1537
        %3272 = vmatpush1.bf16.msra.mxu0 %v1536
        %3273 = vmatprep.subr.bf16.mxu0 %v1533
        %3274 = vmatpush1.bf16.msra.mxu0 %v1532
        %3275 = vmatprep.subr.bf16.mxu0 %v1529
        %3276 = vmatpush1.bf16.msra.mxu0 %v1528
        %3277 = vmatprep.subr.bf16.mxu0 %v1525
        %3278 = vmatpush1.bf16.msra.mxu0 %v1524
        %3279 = vmatprep.subr.bf16.mxu0 %v1521
        %3280 = vmatpush1.bf16.msra.mxu0 %v1520
        %3281 = vmatprep.subr.bf16.mxu0 %v1517
        %3282 = vmatpush1.bf16.msra.mxu0 %v1516
        %3283 = vmatprep.subr.bf16.mxu0 %v1577
        %3284 = vmatpush2.bf16.msra.mxu0 %v1576
        %3285 = vmatprep.subr.bf16.mxu0 %v1573
        %3286 = vmatpush2.bf16.msra.mxu0 %v1572
        %3287 = vmatprep.subr.bf16.mxu0 %v1569
        %3288 = vmatpush2.bf16.msra.mxu0 %v1568
        %3289 = vmatprep.subr.bf16.mxu0 %v1565
        %3290 = vmatpush2.bf16.msra.mxu0 %v1564
        %3291 = vmatprep.subr.bf16.mxu0 %v1561
        %3292 = vmatpush2.bf16.msra.mxu0 %v1560
        %3293 = vmatprep.subr.bf16.mxu0 %v1557
        %3294 = vmatpush2.bf16.msra.mxu0 %v1556
        %3295 = vmatprep.subr.bf16.mxu0 %v1553
        %3296 = vmatpush2.bf16.msra.mxu0 %v1552
        %3297 = vmatprep.subr.bf16.mxu0 %v1549
        %3298 = vmatpush2.bf16.msra.mxu0 %v1548
        %3299 = vmatprep.mubr.bf16.mxu0 %v2885
        %3300 = vmatmul.mubr.bf16.gmra.mxu0 %v2884
        %v3301 = vpop.f32.mrf.mxu0
        %v3302 = vadd.f32 %v3261, %v3301
        %v3303 = vpop.f32.mrf.mxu0
        %v3304 = vadd.f32 %v3263, %v3303
        %v3305 = vpop.f32.mrf.mxu0
        %v3306 = vpop.f32.mrf.mxu0
        %3307 = vdwg.mxu0
        %3308 = vmatprep.subr.bf16.mxu0 %v1609
        %3309 = vmatpush1.bf16.msra.mxu0 %v1608
        %3310 = vmatprep.subr.bf16.mxu0 %v1605
        %3311 = vmatpush1.bf16.msra.mxu0 %v1604
        %3312 = vmatprep.subr.bf16.mxu0 %v1601
        %3313 = vmatpush1.bf16.msra.mxu0 %v1600
        %3314 = vmatprep.subr.bf16.mxu0 %v1597
        %3315 = vmatpush1.bf16.msra.mxu0 %v1596
        %3316 = vmatprep.subr.bf16.mxu0 %v1593
        %3317 = vmatpush1.bf16.msra.mxu0 %v1592
        %3318 = vmatprep.subr.bf16.mxu0 %v1589
        %3319 = vmatpush1.bf16.msra.mxu0 %v1588
        %3320 = vmatprep.subr.bf16.mxu0 %v1585
        %3321 = vmatpush1.bf16.msra.mxu0 %v1584
        %3322 = vmatprep.subr.bf16.mxu0 %v1581
        %3323 = vmatpush1.bf16.msra.mxu0 %v1580
        %3324 = vmatprep.subr.bf16.mxu0 %v1641
        %3325 = vmatpush2.bf16.msra.mxu0 %v1640
        %3326 = vmatprep.subr.bf16.mxu0 %v1637
        %3327 = vmatpush2.bf16.msra.mxu0 %v1636
        %3328 = vmatprep.subr.bf16.mxu0 %v1633
        %3329 = vmatpush2.bf16.msra.mxu0 %v1632
        %3330 = vmatprep.subr.bf16.mxu0 %v1629
        %3331 = vmatpush2.bf16.msra.mxu0 %v1628
        %3332 = vmatprep.subr.bf16.mxu0 %v1625
        %3333 = vmatpush2.bf16.msra.mxu0 %v1624
        %3334 = vmatprep.subr.bf16.mxu0 %v1621
        %3335 = vmatpush2.bf16.msra.mxu0 %v1620
        %3336 = vmatprep.subr.bf16.mxu0 %v1617
        %3337 = vmatpush2.bf16.msra.mxu0 %v1616
        %3338 = vmatprep.subr.bf16.mxu0 %v1613
        %3339 = vmatpush2.bf16.msra.mxu0 %v1612
        %3340 = vmatprep.mubr.bf16.mxu0 %v2887
        %3341 = vmatmul.mubr.bf16.gmra.mxu0 %v2886
        %v3342 = vpop.f32.mrf.mxu0
        %v3343 = vadd.f32 %v3302, %v3342
        %v3344 = vpop.f32.mrf.mxu0
        %v3345 = vadd.f32 %v3304, %v3344
        %v3346 = vpop.f32.mrf.mxu0
        %v3347 = vpop.f32.mrf.mxu0
        %3348 = vdwg.mxu0
        %3349 = vmatprep.subr.bf16.mxu0 %v1673
        %3350 = vmatpush1.bf16.msra.mxu0 %v1672
        %3351 = vmatprep.subr.bf16.mxu0 %v1669
        %3352 = vmatpush1.bf16.msra.mxu0 %v1668
        %3353 = vmatprep.subr.bf16.mxu0 %v1665
        %3354 = vmatpush1.bf16.msra.mxu0 %v1664
        %3355 = vmatprep.subr.bf16.mxu0 %v1661
        %3356 = vmatpush1.bf16.msra.mxu0 %v1660
        %3357 = vmatprep.subr.bf16.mxu0 %v1657
        %3358 = vmatpush1.bf16.msra.mxu0 %v1656
        %3359 = vmatprep.subr.bf16.mxu0 %v1653
        %3360 = vmatpush1.bf16.msra.mxu0 %v1652
        %3361 = vmatprep.subr.bf16.mxu0 %v1649
        %3362 = vmatpush1.bf16.msra.mxu0 %v1648
        %3363 = vmatprep.subr.bf16.mxu0 %v1645
        %3364 = vmatpush1.bf16.msra.mxu0 %v1644
        %3365 = vmatprep.subr.bf16.mxu0 %v1705
        %3366 = vmatpush2.bf16.msra.mxu0 %v1704
        %3367 = vmatprep.subr.bf16.mxu0 %v1701
        %3368 = vmatpush2.bf16.msra.mxu0 %v1700
        %3369 = vmatprep.subr.bf16.mxu0 %v1697
        %3370 = vmatpush2.bf16.msra.mxu0 %v1696
        %3371 = vmatprep.subr.bf16.mxu0 %v1693
        %3372 = vmatpush2.bf16.msra.mxu0 %v1692
        %3373 = vmatprep.subr.bf16.mxu0 %v1689
        %3374 = vmatpush2.bf16.msra.mxu0 %v1688
        %3375 = vmatprep.subr.bf16.mxu0 %v1685
        %3376 = vmatpush2.bf16.msra.mxu0 %v1684
        %3377 = vmatprep.subr.bf16.mxu0 %v1681
        %3378 = vmatpush2.bf16.msra.mxu0 %v1680
        %3379 = vmatprep.subr.bf16.mxu0 %v1677
        %3380 = vmatpush2.bf16.msra.mxu0 %v1676
        %3381 = vmatprep.mubr.bf16.mxu0 %v2889
        %3382 = vmatmul.mubr.bf16.gmra.mxu0 %v2888
        %v3383 = vpop.f32.mrf.mxu0
        %v3384 = vadd.f32 %v3343, %v3383
        %v3385 = vpop.f32.mrf.mxu0
        %v3386 = vadd.f32 %v3345, %v3385
        %v3387 = vpop.f32.mrf.mxu0
        %v3388 = vpop.f32.mrf.mxu0
        %3389 = vdwg.mxu0
        %3390 = vmatprep.subr.bf16.mxu0 %v1737
        %3391 = vmatpush1.bf16.msra.mxu0 %v1736
        %3392 = vmatprep.subr.bf16.mxu0 %v1733
        %3393 = vmatpush1.bf16.msra.mxu0 %v1732
        %3394 = vmatprep.subr.bf16.mxu0 %v1729
        %3395 = vmatpush1.bf16.msra.mxu0 %v1728
        %3396 = vmatprep.subr.bf16.mxu0 %v1725
        %3397 = vmatpush1.bf16.msra.mxu0 %v1724
        %3398 = vmatprep.subr.bf16.mxu0 %v1721
        %3399 = vmatpush1.bf16.msra.mxu0 %v1720
        %3400 = vmatprep.subr.bf16.mxu0 %v1717
        %3401 = vmatpush1.bf16.msra.mxu0 %v1716
        %3402 = vmatprep.subr.bf16.mxu0 %v1713
        %3403 = vmatpush1.bf16.msra.mxu0 %v1712
        %3404 = vmatprep.subr.bf16.mxu0 %v1709
        %3405 = vmatpush1.bf16.msra.mxu0 %v1708
        %3406 = vmatprep.subr.bf16.mxu0 %v1769
        %3407 = vmatpush2.bf16.msra.mxu0 %v1768
        %3408 = vmatprep.subr.bf16.mxu0 %v1765
        %3409 = vmatpush2.bf16.msra.mxu0 %v1764
        %3410 = vmatprep.subr.bf16.mxu0 %v1761
        %3411 = vmatpush2.bf16.msra.mxu0 %v1760
        %3412 = vmatprep.subr.bf16.mxu0 %v1757
        %3413 = vmatpush2.bf16.msra.mxu0 %v1756
        %3414 = vmatprep.subr.bf16.mxu0 %v1753
        %3415 = vmatpush2.bf16.msra.mxu0 %v1752
        %3416 = vmatprep.subr.bf16.mxu0 %v1749
        %3417 = vmatpush2.bf16.msra.mxu0 %v1748
        %3418 = vmatprep.subr.bf16.mxu0 %v1745
        %3419 = vmatpush2.bf16.msra.mxu0 %v1744
        %3420 = vmatprep.subr.bf16.mxu0 %v1741
        %3421 = vmatpush2.bf16.msra.mxu0 %v1740
        %3422 = vmatprep.mubr.bf16.mxu0 %v2891
        %3423 = vmatmul.mubr.bf16.gmra.mxu0 %v2890
        %v3424 = vpop.f32.mrf.mxu0
        %v3425 = vadd.f32 %v3384, %v3424
        %v3426 = vpop.f32.mrf.mxu0
        %v3427 = vadd.f32 %v3386, %v3426
        %v3428 = vpop.f32.mrf.mxu0
        %v3429 = vpop.f32.mrf.mxu0
        %3430 = vdwg.mxu0
        %3431 = vmatprep.subr.bf16.mxu0 %v1801
        %3432 = vmatpush1.bf16.msra.mxu0 %v1800
        %3433 = vmatprep.subr.bf16.mxu0 %v1797
        %3434 = vmatpush1.bf16.msra.mxu0 %v1796
        %3435 = vmatprep.subr.bf16.mxu0 %v1793
        %3436 = vmatpush1.bf16.msra.mxu0 %v1792
        %3437 = vmatprep.subr.bf16.mxu0 %v1789
        %3438 = vmatpush1.bf16.msra.mxu0 %v1788
        %3439 = vmatprep.subr.bf16.mxu0 %v1785
        %3440 = vmatpush1.bf16.msra.mxu0 %v1784
        %3441 = vmatprep.subr.bf16.mxu0 %v1781
        %3442 = vmatpush1.bf16.msra.mxu0 %v1780
        %3443 = vmatprep.subr.bf16.mxu0 %v1777
        %3444 = vmatpush1.bf16.msra.mxu0 %v1776
        %3445 = vmatprep.subr.bf16.mxu0 %v1773
        %3446 = vmatpush1.bf16.msra.mxu0 %v1772
        %3447 = vmatprep.subr.bf16.mxu0 %v1833
        %3448 = vmatpush2.bf16.msra.mxu0 %v1832
        %3449 = vmatprep.subr.bf16.mxu0 %v1829
        %3450 = vmatpush2.bf16.msra.mxu0 %v1828
        %3451 = vmatprep.subr.bf16.mxu0 %v1825
        %3452 = vmatpush2.bf16.msra.mxu0 %v1824
        %3453 = vmatprep.subr.bf16.mxu0 %v1821
        %3454 = vmatpush2.bf16.msra.mxu0 %v1820
        %3455 = vmatprep.subr.bf16.mxu0 %v1817
        %3456 = vmatpush2.bf16.msra.mxu0 %v1816
        %3457 = vmatprep.subr.bf16.mxu0 %v1813
        %3458 = vmatpush2.bf16.msra.mxu0 %v1812
        %3459 = vmatprep.subr.bf16.mxu0 %v1809
        %3460 = vmatpush2.bf16.msra.mxu0 %v1808
        %3461 = vmatprep.subr.bf16.mxu0 %v1805
        %3462 = vmatpush2.bf16.msra.mxu0 %v1804
        %3463 = vmatprep.mubr.bf16.mxu0 %v2893
        %3464 = vmatmul.mubr.bf16.gmra.mxu0 %v2892
        %v3465 = vpop.f32.mrf.mxu0
        %v3466 = vadd.f32 %v3425, %v3465
        %v3467 = vpop.f32.mrf.mxu0
        %v3468 = vadd.f32 %v3427, %v3467
        %v3469 = vpop.f32.mrf.mxu0
        %v3470 = vpop.f32.mrf.mxu0
        %3471 = vdwg.mxu0
        %3472 = vmatprep.subr.bf16.mxu0 %v1865
        %3473 = vmatpush1.bf16.msra.mxu0 %v1864
        %3474 = vmatprep.subr.bf16.mxu0 %v1861
        %3475 = vmatpush1.bf16.msra.mxu0 %v1860
        %3476 = vmatprep.subr.bf16.mxu0 %v1857
        %3477 = vmatpush1.bf16.msra.mxu0 %v1856
        %3478 = vmatprep.subr.bf16.mxu0 %v1853
        %3479 = vmatpush1.bf16.msra.mxu0 %v1852
        %3480 = vmatprep.subr.bf16.mxu0 %v1849
        %3481 = vmatpush1.bf16.msra.mxu0 %v1848
        %3482 = vmatprep.subr.bf16.mxu0 %v1845
        %3483 = vmatpush1.bf16.msra.mxu0 %v1844
        %3484 = vmatprep.subr.bf16.mxu0 %v1841
        %3485 = vmatpush1.bf16.msra.mxu0 %v1840
        %3486 = vmatprep.subr.bf16.mxu0 %v1837
        %3487 = vmatpush1.bf16.msra.mxu0 %v1836
        %3488 = vmatprep.subr.bf16.mxu0 %v1897
        %3489 = vmatpush2.bf16.msra.mxu0 %v1896
        %3490 = vmatprep.subr.bf16.mxu0 %v1893
        %3491 = vmatpush2.bf16.msra.mxu0 %v1892
        %3492 = vmatprep.subr.bf16.mxu0 %v1889
        %3493 = vmatpush2.bf16.msra.mxu0 %v1888
        %3494 = vmatprep.subr.bf16.mxu0 %v1885
        %3495 = vmatpush2.bf16.msra.mxu0 %v1884
        %3496 = vmatprep.subr.bf16.mxu0 %v1881
        %3497 = vmatpush2.bf16.msra.mxu0 %v1880
        %3498 = vmatprep.subr.bf16.mxu0 %v1877
        %3499 = vmatpush2.bf16.msra.mxu0 %v1876
        %3500 = vmatprep.subr.bf16.mxu0 %v1873
        %3501 = vmatpush2.bf16.msra.mxu0 %v1872
        %3502 = vmatprep.subr.bf16.mxu0 %v1869
        %3503 = vmatpush2.bf16.msra.mxu0 %v1868
        %3504 = vmatprep.mubr.bf16.mxu0 %v2895
        %3505 = vmatmul.mubr.bf16.gmra.mxu0 %v2894
        %v3506 = vpop.f32.mrf.mxu0
        %v3507 = vadd.f32 %v3466, %v3506
        %v3508 = vpop.f32.mrf.mxu0
        %v3509 = vadd.f32 %v3468, %v3508
        %v3510 = vpop.f32.mrf.mxu0
        %v3511 = vpop.f32.mrf.mxu0
        %3512 = vdwg.mxu0
        %3513 = vmatprep.subr.bf16.mxu0 %v1929
        %3514 = vmatpush1.bf16.msra.mxu0 %v1928
        %3515 = vmatprep.subr.bf16.mxu0 %v1925
        %3516 = vmatpush1.bf16.msra.mxu0 %v1924
        %3517 = vmatprep.subr.bf16.mxu0 %v1921
        %3518 = vmatpush1.bf16.msra.mxu0 %v1920
        %3519 = vmatprep.subr.bf16.mxu0 %v1917
        %3520 = vmatpush1.bf16.msra.mxu0 %v1916
        %3521 = vmatprep.subr.bf16.mxu0 %v1913
        %3522 = vmatpush1.bf16.msra.mxu0 %v1912
        %3523 = vmatprep.subr.bf16.mxu0 %v1909
        %3524 = vmatpush1.bf16.msra.mxu0 %v1908
        %3525 = vmatprep.subr.bf16.mxu0 %v1905
        %3526 = vmatpush1.bf16.msra.mxu0 %v1904
        %3527 = vmatprep.subr.bf16.mxu0 %v1901
        %3528 = vmatpush1.bf16.msra.mxu0 %v1900
        %3529 = vmatprep.subr.bf16.mxu0 %v1961
        %3530 = vmatpush2.bf16.msra.mxu0 %v1960
        %3531 = vmatprep.subr.bf16.mxu0 %v1957
        %3532 = vmatpush2.bf16.msra.mxu0 %v1956
        %3533 = vmatprep.subr.bf16.mxu0 %v1953
        %3534 = vmatpush2.bf16.msra.mxu0 %v1952
        %3535 = vmatprep.subr.bf16.mxu0 %v1949
        %3536 = vmatpush2.bf16.msra.mxu0 %v1948
        %3537 = vmatprep.subr.bf16.mxu0 %v1945
        %3538 = vmatpush2.bf16.msra.mxu0 %v1944
        %3539 = vmatprep.subr.bf16.mxu0 %v1941
        %3540 = vmatpush2.bf16.msra.mxu0 %v1940
        %3541 = vmatprep.subr.bf16.mxu0 %v1937
        %3542 = vmatpush2.bf16.msra.mxu0 %v1936
        %3543 = vmatprep.subr.bf16.mxu0 %v1933
        %3544 = vmatpush2.bf16.msra.mxu0 %v1932
        %3545 = vmatprep.mubr.bf16.mxu0 %v2897
        %3546 = vmatmul.mubr.bf16.gmra.mxu0 %v2896
        %v3547 = vpop.f32.mrf.mxu0
        %v3548 = vadd.f32 %v3507, %v3547
        %v3549 = vpop.f32.mrf.mxu0
        %v3550 = vadd.f32 %v3509, %v3549
        %v3551 = vpop.f32.mrf.mxu0
        %v3552 = vpop.f32.mrf.mxu0
        %3553 = vdwg.mxu0
        %p3554 = scmp.eq.s32.totalorder %s28, 0
        // Predicated region
        $region73: #{generator_forward.1} parent=47 // pred_check
          %p3555 = pneg %p3554
        $region74: #{generator_forward.1} parent=47 // pred_check_branch
          %3557 = sbr.rel (%p3555) target = $region76
        $region75: #{generator_forward.1} parent=47 // pred_region
          %3558 = vst [vmem:[%s7] sm:$0xff] %v3220
          %3559 = vst [vmem:[%s7 + $0x8] sm:$0xff] %v3222
          %3560 = vst [vmem:[%s7 + $0x10] sm:$0xff] %v3548
          %3561 = vst [vmem:[%s7 + $0x18] sm:$0xff] %v3550
        $region76: #{generator_forward.1} parent=47 // pred_fallthru
          _
        %p3562 = scmp.gt.s32.totalorder %s28, 0
        // Predicated region
        $region77: #{generator_forward.1} parent=47 // pred_check
          %p3563 = pneg %p3562
        $region78: #{generator_forward.1} parent=47 // pred_check_branch
          %3565 = sbr.rel (%p3563) target = $region80
        $region79: #{generator_forward.1} parent=47 // pred_region
          %v3566 = vld [vmem:[%s7] sm:$0xff]
          %v3567 = vld [vmem:[%s7 + $0x8] sm:$0xff]
          %v3568 = vld [vmem:[%s7 + $0x10] sm:$0xff]
          %v3569 = vld [vmem:[%s7 + $0x18] sm:$0xff]
          %v3570 = vadd.f32 %v3566, %v3220
          %v3571 = vadd.f32 %v3567, %v3222
          %v3572 = vadd.f32 %v3568, %v3548
          %v3573 = vadd.f32 %v3569, %v3550
          %3574 = vst [vmem:[%s7] sm:$0xff] %v3570
          %3575 = vst [vmem:[%s7 + $0x8] sm:$0xff] %v3571
          %3576 = vst [vmem:[%s7 + $0x10] sm:$0xff] %v3572
          %3577 = vst [vmem:[%s7 + $0x18] sm:$0xff] %v3573
        $region80: #{generator_forward.1} parent=47 // pred_fallthru
          _
        %p3578 = scmp.eq.s32.totalorder %s28, 1
        // Predicated region
        $region81: #{generator_forward.1} parent=47 // pred_check
          %p3579 = pneg %p3578
        $region82: #{generator_forward.1} parent=47 // pred_check_branch
          %3581 = sbr.rel (%p3579) target = $region84
        $region83: #{generator_forward.1} parent=47 // pred_region
          %v3582 = vld [vmem:[%s7] sm:$0xff]
          %v3583 = vld [vmem:[%s7 + $0x8] sm:$0xff]
          %v3584 = vld [vmem:[%s7 + $0x10] sm:$0xff]
          %v3585 = vld [vmem:[%s7 + $0x18] sm:$0xff]
          %v3586 = vld [vmem:[#allocation9] sm:$0xf]
          %v3588 = vlaneseq
          %v3589 = vshrl.u32 %v3588, 7
          %v3590 = vsub.s32 0, %v3589
          %v3591 = vrot.slane %v3586, %v3590
          %v3592 = vlaneseq
          %v3593 = vshrl.u32 %v3592, 7
          %v3594 = vsub.s32 1, %v3593
          %v3595 = vrot.slane %v3586, %v3594
          %v3596 = vlaneseq
          %v3597 = vshrl.u32 %v3596, 7
          %v3598 = vsub.s32 2, %v3597
          %v3599 = vrot.slane %v3586, %v3598
          %v3600 = vlaneseq
          %v3601 = vshrl.u32 %v3600, 7
          %v3602 = vsub.s32 3, %v3601
          %v3603 = vrot.slane %v3586, %v3602
          %v3608 = vmul.f32 %v3582, %v3591
          %v3609 = vmul.f32 %v3583, %v3595
          %v3610 = vmul.f32 %v3584, %v3599
          %v3611 = vmul.f32 %v3585, %v3603
          %v3612 = vld [vmem:[#allocation10] sm:$0xf]
          %v3614 = vlaneseq
          %v3615 = vshrl.u32 %v3614, 7
          %v3616 = vsub.s32 0, %v3615
          %v3617 = vrot.slane %v3612, %v3616
          %v3618 = vlaneseq
          %v3619 = vshrl.u32 %v3618, 7
          %v3620 = vsub.s32 1, %v3619
          %v3621 = vrot.slane %v3612, %v3620
          %v3622 = vlaneseq
          %v3623 = vshrl.u32 %v3622, 7
          %v3624 = vsub.s32 2, %v3623
          %v3625 = vrot.slane %v3612, %v3624
          %v3626 = vlaneseq
          %v3627 = vshrl.u32 %v3626, 7
          %v3628 = vsub.s32 3, %v3627
          %v3629 = vrot.slane %v3612, %v3628
          %v3634 = vadd.f32 %v3608, %v3617
          %v3635 = vadd.f32 %v3609, %v3621
          %v3636 = vadd.f32 %v3610, %v3625
          %v3637 = vadd.f32 %v3611, %v3629
          %3638 = vst [vmem:[%s7] sm:$0xff] %v3634
          %3639 = vst [vmem:[%s7 + $0x8] sm:$0xff] %v3635
          %3640 = vst [vmem:[%s7 + $0x10] sm:$0xff] %v3636
          %3641 = vst [vmem:[%s7 + $0x18] sm:$0xff] %v3637
        $region84: #{generator_forward.1} parent=47 // pred_fallthru
          _
        // Predicated region
        $region85: #{generator_forward.1} parent=47 // pred_check
          %p3642 = pneg %p208
        $region86: #{generator_forward.1} parent=47 // pred_check_branch
          %3644 = sbr.rel (%p3642) target = $region88
        $region87: #{generator_forward.1} parent=47 // pred_region
          _
        $region88: #{generator_forward.1} parent=47 // pred_fallthru
          _
        // Predicated region
        $region89: #{generator_forward.1} parent=47 // pred_check
          %p3645 = pneg %p208
        $region90: #{generator_forward.1} parent=47 // pred_check_branch
          %3647 = sbr.rel (%p3645) target = $region92
        $region91: #{generator_forward.1} parent=47 // pred_region
          _
        $region92: #{generator_forward.1} parent=47 // pred_fallthru
          _
      $region48: #{generator_forward.1} parent=5 // pred_fallthru
        _
      %p3648 = scmp.le.s32.totalorder 2, %s23
      // Predicated region
      $region93: #{generator_forward.1} parent=5 // pred_check
        %p3649 = pneg %p3648
      $region94: #{generator_forward.1} parent=5 // pred_check_branch
        %3651 = sbr.rel (%p3649) target = $region96
      $region95: #{generator_forward.1} parent=5 // pred_region
        %s3652 = ssub.s32 %s23, 2
      $region96: #{generator_forward.1} parent=5 // pred_fallthru
        _
    $region6: #{generator_forward.1} parent=1 // loop_footer
      %s27 = sadd.s32 1, %s23
    $region7: #{generator_forward.1} parent=1 // loop_footer_branch
      %22 = sbr.rel target = $region3
    $region8: #{generator_forward.1} parent=1 // loop_exit
      _
    %3653 = vsyncpa [#allocation3], 1
    %s3654 = scalar_lea.sflag [#allocation3], 1
    %3655 = vsyncpa %s3654, 1
    %3656 = vsyncpa [#allocation5], 1
    %s3657 = scalar_lea.sflag [#allocation5], 1
    %3658 = vsyncpa %s3657, 1
    %3659 = vsyncpa [#allocation8], 1
    %s3660 = scalar_lea.sflag [#allocation8], 1
    %3661 = vsyncpa %s3660, 1
    %3662 = vsyncpa [#allocation11], 1

</llo_original>
